<compile_context>
chip_gen: v6e
topology: v6e:2x2x1
jax: 0.10.0
libtpu: 0.0.40
codegen_flags: <defaults>
</compile_context>

<pallas_src>
import math
import functools
import jax
import jax.numpy as jnp
from jax.experimental import pallas as pl
from jax.experimental.pallas import tpu as pltpu

# ---- small synthetic hyper-parameters (structure mirrors vit_base_patch16) ----
BATCH = 2
C_IN = 4
IMG = 16
PATCH = 8
NUM_PATCHES = (IMG // PATCH) ** 2          # 4
SEQ = NUM_PATCHES + 1                      # 5  (cls token + patches)
SEQ_PAD = 8                                # sublane-aligned rows per sequence
EMBED = 32
HEADS = 4
HEAD_DIM = EMBED // HEADS                  # 8
MLP_HIDDEN = 4 * EMBED                     # 128
DEPTH = 2
NUM_CLASSES = 10
PAD_CLASSES = 128                          # lane-dense classifier width
LN_EPS = 1e-6
T_FRAMES = 4                               # self.T in the PyTorch module
CPP = C_IN * PATCH * PATCH                 # 256 flattened patch size

# indices of packed per-block (EMBED,) vectors inside the `vecs` slab
VEC_G1, VEC_BE1, VEC_BO, VEC_G2, VEC_BE2, VEC_B2 = range(6)
NUM_VECS = 6

_SEQ_SHIFT = SEQ_PAD.bit_length() - 1      # log2(SEQ_PAD) = 3 (power of two)


# ----------------------------- in-kernel helpers -----------------------------
def _layernorm(x, g, b):
    mu = jnp.mean(x, axis=-1, keepdims=True)
    var = jnp.mean(jnp.square(x - mu), axis=-1, keepdims=True)
    return (x - mu) * jax.lax.rsqrt(var + LN_EPS) * g + b


def _gelu_tanh(x):
    # tanh GELU approximation (~1e-3 rel. deviation from torch's exact erf
    # GELU); jnp.tanh runs on the EUP slot instead of burning VALU ops.
    c = math.sqrt(2.0 / math.pi)
    return 0.5 * x * (1.0 + jnp.tanh(c * (x + 0.044715 * x * x * x)))


# --------------------------------- fused kernel --------------------------------
def fused_vit_kernel(ns,
                     patches_ref, pw_ref, tb_ref,
                     wqkv_ref, bqkv_ref, wo_ref,
                     w1_ref, b1_ref, w2_ref,
                     vecs_ref, gnbn_ref, wc_ref, bc_ref,
                     o_ref):
    """Full per-frame ViT forward for ns = (sequences in this block) * SEQ_PAD
    flattened rows.  cls rows and pad rows of `patches_ref` are zero; `tb_ref`
    carries cls+pos0 / patch_bias+pos / zeros (pad rows)."""
    f32 = jnp.float32
    bf16 = jnp.bfloat16
    scale = HEAD_DIM ** -0.5

    # Block-diagonal attention bias: query row i may attend key row j iff they
    # belong to the same (padded) sequence and j is a real token (< SEQ).
    # Built once, reused by every head of every block.  SEQ_PAD is a power of
    # two so shift/and replace integer div/mod.
    row = jax.lax.broadcasted_iota(jnp.int32, (ns, ns), 0)
    col = jax.lax.broadcasted_iota(jnp.int32, (ns, ns), 1)
    same_seq = (row >> _SEQ_SHIFT) == (col >> _SEQ_SHIFT)
    key_real = (col & (SEQ_PAD - 1)) < SEQ
    attn_bias = jnp.where(same_seq & key_real, 0.0, -1e30).astype(f32)

    # Patch embedding (Conv2d with kernel==stride == flattened matmul) plus the
    # folded cls-token / positional-embedding / patch-bias slab.
    x = jnp.dot(patches_ref[...].astype(bf16), pw_ref[...],
                preferred_element_type=f32) + tb_ref[...]

    for d in range(DEPTH):                                  # unrolled, DEPTH=2
        base = d * NUM_VECS
        g1 = vecs_ref[base + VEC_G1:base + VEC_G1 + 1, :]
        be1 = vecs_ref[base + VEC_BE1:base + VEC_BE1 + 1, :]
        bo = vecs_ref[base + VEC_BO:base + VEC_BO + 1, :]
        g2 = vecs_ref[base + VEC_G2:base + VEC_G2 + 1, :]
        be2 = vecs_ref[base + VEC_BE2:base + VEC_BE2 + 1, :]
        b2 = vecs_ref[base + VEC_B2:base + VEC_B2 + 1, :]

        # ---- attention (pre-norm) ----
        xn = _layernorm(x, g1, be1).astype(bf16)
        qkv = (jnp.dot(xn, wqkv_ref[d], preferred_element_type=f32)
               + bqkv_ref[d:d + 1, :])                      # (ns, 3*EMBED), f32

        attn_out = jnp.zeros((ns, EMBED), f32)
        for h in range(HEADS):                              # unrolled, HEADS=4
            q = qkv[:, h * HEAD_DIM:(h + 1) * HEAD_DIM]
            k = qkv[:, EMBED + h * HEAD_DIM:EMBED + (h + 1) * HEAD_DIM]
            v = qkv[:, 2 * EMBED + h * HEAD_DIM:2 * EMBED + (h + 1) * HEAD_DIM]
            s = jax.lax.dot_general(q.astype(bf16), k.astype(bf16),
                                    (((1,), (1,)), ((), ())),
                                    preferred_element_type=f32) * scale
            s = s + attn_bias
            s = s - jnp.max(s, axis=-1, keepdims=True)
            p = jnp.exp(s)
            p = p * pl.reciprocal(jnp.sum(p, axis=-1, keepdims=True), approx=True)
            head = jnp.dot(p.astype(bf16), v.astype(bf16),
                           preferred_element_type=f32)      # (ns, HEAD_DIM)
            # accumulate the output projection per head (no head concat)
            attn_out = attn_out + jnp.dot(head.astype(bf16),
                                          wo_ref[d * HEADS + h],
                                          preferred_element_type=f32)
        x = x + attn_out + bo

        # ---- MLP (pre-norm) ----
        xn2 = _layernorm(x, g2, be2).astype(bf16)
        hmid = _gelu_tanh(jnp.dot(xn2, w1_ref[d], preferred_element_type=f32)
                          + b1_ref[d:d + 1, :])
        x = x + jnp.dot(hmid.astype(bf16), w2_ref[d],
                        preferred_element_type=f32) + b2

    # Final LayerNorm + lane-dense (128-wide) classifier on every row; the cls
    # rows are selected outside the kernel (extra rows are free in the vregs).
    xn_final = _layernorm(x, gnbn_ref[0:1, :], gnbn_ref[1:2, :]).astype(bf16)
    o_ref[...] = (jnp.dot(xn_final, wc_ref[...], preferred_element_type=f32)
                  + bc_ref[...])


def _full_spec(*shape):
    nd = len(shape)
    return pl.BlockSpec(shape, lambda i, _nd=nd: (0,) * _nd)


def _build_fused_call(n_seqs):
    # Split the sequence batch in two blocks so v7x's two TensorCores both run
    # ("parallel" grid axis); on single-core chips the grid is just a 2-step
    # loop with negligible overhead.  Everything stays VMEM-resident.
    n_split = 2 if (n_seqs % 2 == 0 and n_seqs >= 2) else 1
    half = n_seqs // n_split
    ns = half * SEQ_PAD
    total = n_seqs * SEQ_PAD

    in_specs = [
        pl.BlockSpec((ns, CPP), lambda i: (i, 0)),      # patches (zero cls/pad rows)
        _full_spec(CPP, EMBED),                         # patch_w (bf16)
        pl.BlockSpec((ns, EMBED), lambda i: (i, 0)),    # token bias slab
        _full_spec(DEPTH, EMBED, 3 * EMBED),            # wqkv (bf16)
        _full_spec(DEPTH, 3 * EMBED),                   # bqkv
        _full_spec(DEPTH * HEADS, HEAD_DIM, EMBED),     # wo split per head (bf16)
        _full_spec(DEPTH, EMBED, MLP_HIDDEN),           # w1 (bf16)
        _full_spec(DEPTH, MLP_HIDDEN),                  # b1
        _full_spec(DEPTH, MLP_HIDDEN, EMBED),           # w2 (bf16)
        _full_spec(DEPTH * NUM_VECS, EMBED),            # LN gammas/betas + biases
        _full_spec(2, EMBED),                           # final LN gamma/beta
        _full_spec(EMBED, PAD_CLASSES),                 # classifier W (padded, bf16)
        _full_spec(1, PAD_CLASSES),                     # classifier b (padded)
    ]
    return pl.pallas_call(
        functools.partial(fused_vit_kernel, ns),
        out_shape=jax.ShapeDtypeStruct((total, PAD_CLASSES), jnp.float32),
        grid=(n_split,),
        in_specs=in_specs,
        out_specs=pl.BlockSpec((ns, PAD_CLASSES), lambda i: (i, 0)),
        compiler_params=pltpu.CompilerParams(
            dimension_semantics=("parallel",)),
    )


# --------------------------------- model glue ---------------------------------
def init_params(key):
    ks = jax.random.split(key, 64)
    it = iter(ks)

    def w(shape, std=0.02):
        return (std * jax.random.normal(next(it), shape)).astype(jnp.float32)

    conv_w = w((EMBED, C_IN, PATCH, PATCH))              # torch Conv2d layout

    wqkv, bqkv, wo, w1s, b1s, w2s, vec_rows = [], [], [], [], [], [], []
    for _ in range(DEPTH):
        wqkv.append(w((EMBED, 3 * EMBED)))
        bqkv.append(w((3 * EMBED,)))
        wo.append(w((EMBED, EMBED)).reshape(HEADS, HEAD_DIM, EMBED))
        w1s.append(w((EMBED, MLP_HIDDEN)))
        b1s.append(jnp.zeros((MLP_HIDDEN,), jnp.float32))
        w2s.append(w((MLP_HIDDEN, EMBED)))
        vec_rows += [
            jnp.ones((EMBED,), jnp.float32),     # g1  (LN1 gamma)
            jnp.zeros((EMBED,), jnp.float32),    # be1 (LN1 beta)
            jnp.zeros((EMBED,), jnp.float32),    # bo  (attn proj bias)
            jnp.ones((EMBED,), jnp.float32),     # g2  (LN2 gamma)
            jnp.zeros((EMBED,), jnp.float32),    # be2 (LN2 beta)
            jnp.zeros((EMBED,), jnp.float32),    # b2  (MLP out bias)
        ]

    wc = w((EMBED, NUM_CLASSES))
    wc_pad = jnp.zeros((EMBED, PAD_CLASSES), jnp.float32).at[:, :NUM_CLASSES].set(wc)

    return {
        'patch_w': conv_w.reshape(EMBED, CPP).T.astype(jnp.bfloat16),  # (CPP, D)
        'patch_b': w((1, EMBED)),
        'cls': w((1, 1, EMBED)),
        'pos': w((1, SEQ, EMBED)),
        'wqkv': jnp.stack(wqkv).astype(jnp.bfloat16),                  # (DEPTH, D, 3D)
        'bqkv': jnp.stack(bqkv),                                       # (DEPTH, 3D)
        'wo': jnp.stack(wo).reshape(DEPTH * HEADS, HEAD_DIM, EMBED
                                    ).astype(jnp.bfloat16),            # (DEPTH*H, hd, D)
        'w1': jnp.stack(w1s).astype(jnp.bfloat16),                     # (DEPTH, D, 4D)
        'b1': jnp.stack(b1s),                                          # (DEPTH, 4D)
        'w2': jnp.stack(w2s).astype(jnp.bfloat16),                     # (DEPTH, 4D, D)
        'vecs': jnp.stack(vec_rows),                                   # (DEPTH*6, D)
        'gnbn': jnp.stack([jnp.ones((EMBED,), jnp.float32),
                           jnp.zeros((EMBED,), jnp.float32)]),         # (2, D)
        'wc': wc_pad.astype(jnp.bfloat16),                             # (D, 128)
        'bc': jnp.zeros((1, PAD_CLASSES), jnp.float32),                # (1, 128)
    }


def _extract_patches(x):
    # NCHW -> (N, num_patches, C*P*P), flattened in (c, ph, pw) order to match
    # Conv2d weight flattening.
    n = x.shape[0]
    hp = IMG // PATCH
    p = x.reshape(n, C_IN, hp, PATCH, hp, PATCH)
    p = p.transpose(0, 2, 4, 1, 3, 5)
    return p.reshape(n, NUM_PATCHES, CPP)


def _forward_frames(params, x):
    """Fused forward for x of shape (N, C, H, W); returns (N, NUM_CLASSES)."""
    n = x.shape[0]
    # Patch matrix padded to SEQ_PAD rows per sequence: zero row at the cls
    # slot and zero rows at the pad slots, so the whole token slab is produced
    # by a single matmul + additive bias slab inside the kernel.
    patches = _extract_patches(x)
    patch_slab = jnp.concatenate(
        [jnp.zeros((n, 1, CPP), jnp.float32), patches,
         jnp.zeros((n, SEQ_PAD - SEQ, CPP), jnp.float32)], axis=1
    ).reshape(n * SEQ_PAD, CPP)
    # Additive token bias: cls rows get cls+pos[0]; patch rows get patch_b+pos;
    # pad rows get zeros (they are masked out of attention and discarded).
    # TODO(synk): build this bias in-kernel to avoid the tiny wrapper-side slab.
    tb_seq = jnp.concatenate(
        [params['cls'] + params['pos'][:, 0:1, :],
         params['pos'][:, 1:, :] + params['patch_b'],
         jnp.zeros((1, SEQ_PAD - SEQ, EMBED), jnp.float32)], axis=1)   # (1, 8, D)
    tb = jnp.broadcast_to(tb_seq, (n, SEQ_PAD, EMBED)).reshape(n * SEQ_PAD, EMBED)

    out = _build_fused_call(n)(
        patch_slab, params['patch_w'], tb,
        params['wqkv'], params['bqkv'], params['wo'],
        params['w1'], params['b1'], params['w2'],
        params['vecs'], params['gnbn'], params['wc'], params['bc'])
    # cls row of each sequence, real classes only.
    return out.reshape(n, SEQ_PAD, PAD_CLASSES)[:, 0, :NUM_CLASSES]


def vit_forward(params, x):
    # feature_transform is a constant 0.0 in the reference module's _forward.
    if x.ndim == 5:
        b = x.shape[0]
        frames = x[:, :T_FRAMES].reshape(b * T_FRAMES, C_IN, IMG, IMG)
        logits = _forward_frames(params, frames)                 # (B*T, NC)
        logit = jnp.mean(logits.reshape(b, T_FRAMES, NUM_CLASSES), axis=1)
        return logit, 0.0
    elif x.ndim == 4:
        return _forward_frames(params, x), 0.0
    else:
        raise NotImplementedError(f'Invalid inputs shape: {x.shape}')


if __name__ == "__main__":
    key = jax.random.PRNGKey(0)
    pkey, xkey, vkey = jax.random.split(key, 3)
    params = init_params(pkey)

    forward = jax.jit(vit_forward)

    # image path: (B, C, H, W)
    x_img = jax.random.normal(xkey, (BATCH, C_IN, IMG, IMG), dtype=jnp.float32)
    logits, feature_transform = forward(params, x_img)
    logits = jax.block_until_ready(logits)
    assert logits.shape == (BATCH, NUM_CLASSES)
    assert logits.dtype == jnp.float32
    assert bool(jnp.all(jnp.isfinite(logits)))
    assert feature_transform == 0.0

    # video path: (B, T, C, H, W) — frames folded into the batch, logits averaged.
    x_vid = jax.random.normal(vkey, (BATCH, T_FRAMES, C_IN, IMG, IMG),
                              dtype=jnp.float32)
    vlogits, vft = forward(params, x_vid)
    vlogits = jax.block_until_ready(vlogits)
    assert vlogits.shape == (BATCH, NUM_CLASSES)
    assert bool(jnp.all(jnp.isfinite(vlogits)))

    print("KERNEL_OK")
</pallas_src>

<mosaic_0001>
module attributes {stable_mosaic.version = 11 : i64} {
  func.func @fused_vit_kernel(%arg0: i32, %arg1: memref<8x256xf32, #tpu.memory_space<vmem>>, %arg2: memref<256x32xbf16, #tpu.memory_space<vmem>>, %arg3: memref<8x32xf32, #tpu.memory_space<vmem>>, %arg4: memref<2x32x96xbf16, #tpu.memory_space<vmem>>, %arg5: memref<2x96xf32, #tpu.memory_space<vmem>>, %arg6: memref<8x8x32xbf16, #tpu.memory_space<vmem>>, %arg7: memref<2x32x128xbf16, #tpu.memory_space<vmem>>, %arg8: memref<2x128xf32, #tpu.memory_space<vmem>>, %arg9: memref<2x128x32xbf16, #tpu.memory_space<vmem>>, %arg10: memref<12x32xf32, #tpu.memory_space<vmem>>, %arg11: memref<2x32xf32, #tpu.memory_space<vmem>>, %arg12: memref<32x128xbf16, #tpu.memory_space<vmem>>, %arg13: memref<1x128xf32, #tpu.memory_space<vmem>>, %arg14: memref<8x128xf32, #tpu.memory_space<vmem>>) attributes {dimension_semantics = [#tpu.dimension_semantics<parallel>], iteration_bounds = array<i64: 2>, scalar_prefetch = 0 : i64, scratch_operands = 0 : i64, tpu.core_type = #tpu.core_type<tc>, window_params = [{transform_indices = @transform_0, window_bounds = array<i64: 8, 256>}, {pipeline_mode = #tpu.pipeline_mode<synchronous>, transform_indices = @transform_1, window_bounds = array<i64: 256, 32>}, {transform_indices = @transform_2, window_bounds = array<i64: 8, 32>}, {pipeline_mode = #tpu.pipeline_mode<synchronous>, transform_indices = @transform_3, window_bounds = array<i64: 2, 32, 96>}, {pipeline_mode = #tpu.pipeline_mode<synchronous>, transform_indices = @transform_4, window_bounds = array<i64: 2, 96>}, {pipeline_mode = #tpu.pipeline_mode<synchronous>, transform_indices = @transform_5, window_bounds = array<i64: 8, 8, 32>}, {pipeline_mode = #tpu.pipeline_mode<synchronous>, transform_indices = @transform_6, window_bounds = array<i64: 2, 32, 128>}, {pipeline_mode = #tpu.pipeline_mode<synchronous>, transform_indices = @transform_7, window_bounds = array<i64: 2, 128>}, {pipeline_mode = #tpu.pipeline_mode<synchronous>, transform_indices = @transform_8, window_bounds = array<i64: 2, 128, 32>}, {pipeline_mode = #tpu.pipeline_mode<synchronous>, transform_indices = @transform_9, window_bounds = array<i64: 12, 32>}, {pipeline_mode = #tpu.pipeline_mode<synchronous>, transform_indices = @transform_10, window_bounds = array<i64: 2, 32>}, {pipeline_mode = #tpu.pipeline_mode<synchronous>, transform_indices = @transform_11, window_bounds = array<i64: 32, 128>}, {pipeline_mode = #tpu.pipeline_mode<synchronous>, transform_indices = @transform_12, window_bounds = array<i64: 1, 128>}, {transform_indices = @transform_13, window_bounds = array<i64: 8, 128>}]} {
    %0 = tpu.iota {dimensions = array<i32: 0>} : vector<8x8xi32>
    %1 = tpu.iota {dimensions = array<i32: 1>} : vector<8x8xi32>
    %c3_i32 = arith.constant 3 : i32
    %2 = vector.broadcast %c3_i32 : i32 to vector<8x8xi32>
    %3 = arith.shrsi %0, %2 : vector<8x8xi32>
    %c3_i32_0 = arith.constant 3 : i32
    %4 = vector.broadcast %c3_i32_0 : i32 to vector<8x8xi32>
    %5 = arith.shrsi %1, %4 : vector<8x8xi32>
    %6 = arith.cmpi eq, %3, %5 : vector<8x8xi32>
    %c7_i32 = arith.constant 7 : i32
    %7 = vector.broadcast %c7_i32 : i32 to vector<8x8xi32>
    %8 = arith.andi %1, %7 : vector<8x8xi32>
    %c5_i32 = arith.constant 5 : i32
    %9 = vector.broadcast %c5_i32 : i32 to vector<8x8xi32>
    %10 = arith.cmpi slt, %8, %9 : vector<8x8xi32>
    %11 = arith.andi %6, %10 : vector<8x8xi1>
    %cst = arith.constant 0.000000e+00 : f32
    %cst_1 = arith.constant -1.000000e+30 : f32
    %12 = vector.broadcast %cst : f32 to vector<8x8xf32>
    %13 = vector.broadcast %cst_1 : f32 to vector<8x8xf32>
    %14 = arith.select %11, %12, %13 : vector<8x8xi1>, vector<8x8xf32>
    %c0 = arith.constant 0 : index
    %c0_2 = arith.constant 0 : index
    %15 = vector.load %arg1[%c0, %c0_2] : memref<8x256xf32, #tpu.memory_space<vmem>>, vector<8x256xf32>
    %16 = arith.truncf %15 : vector<8x256xf32> to vector<8x256xbf16>
    %c0_3 = arith.constant 0 : index
    %c0_4 = arith.constant 0 : index
    %17 = vector.load %arg2[%c0_3, %c0_4] : memref<256x32xbf16, #tpu.memory_space<vmem>>, vector<256x32xbf16>
    %cst_5 = arith.constant dense<0.000000e+00> : vector<8x32xf32>
    %18 = tpu.matmul %16, %17, %cst_5 {dimension_numbers = #tpu.dot_dimension_numbers<[1], [0], [0], [1], [0, 0, 1, 1], [], []>} : vector<8x256xbf16>, vector<256x32xbf16>, vector<8x32xf32> -> vector<8x32xf32>
    %c0_6 = arith.constant 0 : index
    %c0_7 = arith.constant 0 : index
    %19 = vector.load %arg3[%c0_6, %c0_7] : memref<8x32xf32, #tpu.memory_space<vmem>>, vector<8x32xf32>
    %20 = arith.addf %18, %19 : vector<8x32xf32>
    %c0_8 = arith.constant 0 : index
    %c0_9 = arith.constant 0 : index
    %21 = vector.load %arg10[%c0_8, %c0_9] : memref<12x32xf32, #tpu.memory_space<vmem>>, vector<1x32xf32>
    %c1 = arith.constant 1 : index
    %c0_10 = arith.constant 0 : index
    %22 = vector.load %arg10[%c1, %c0_10] : memref<12x32xf32, #tpu.memory_space<vmem>>, vector<1x32xf32>
    %c2 = arith.constant 2 : index
    %c0_11 = arith.constant 0 : index
    %23 = vector.load %arg10[%c2, %c0_11] : memref<12x32xf32, #tpu.memory_space<vmem>>, vector<1x32xf32>
    %c3 = arith.constant 3 : index
    %c0_12 = arith.constant 0 : index
    %24 = vector.load %arg10[%c3, %c0_12] : memref<12x32xf32, #tpu.memory_space<vmem>>, vector<1x32xf32>
    %c4 = arith.constant 4 : index
    %c0_13 = arith.constant 0 : index
    %25 = vector.load %arg10[%c4, %c0_13] : memref<12x32xf32, #tpu.memory_space<vmem>>, vector<1x32xf32>
    %c5 = arith.constant 5 : index
    %c0_14 = arith.constant 0 : index
    %26 = vector.load %arg10[%c5, %c0_14] : memref<12x32xf32, #tpu.memory_space<vmem>>, vector<1x32xf32>
    %cst_15 = arith.constant dense<0.000000e+00> : vector<8xf32>
    %27 = vector.multi_reduction <add>, %20, %cst_15 [1] : vector<8x32xf32> to vector<8xf32>
    %28 = vector.shape_cast %27 : vector<8xf32> to vector<8x1xf32>
    %cst_16 = arith.constant 3.200000e+01 : f32
    %29 = vector.broadcast %cst_16 : f32 to vector<8x1xf32>
    %30 = arith.divf %28, %29 : vector<8x1xf32>
    %31 = vector.broadcast %30 : vector<8x1xf32> to vector<8x32xf32>
    %32 = arith.subf %20, %31 : vector<8x32xf32>
    %33 = arith.mulf %32, %32 : vector<8x32xf32>
    %cst_17 = arith.constant dense<0.000000e+00> : vector<8xf32>
    %34 = vector.multi_reduction <add>, %33, %cst_17 [1] : vector<8x32xf32> to vector<8xf32>
    %35 = vector.shape_cast %34 : vector<8xf32> to vector<8x1xf32>
    %cst_18 = arith.constant 3.200000e+01 : f32
    %36 = vector.broadcast %cst_18 : f32 to vector<8x1xf32>
    %37 = arith.divf %35, %36 : vector<8x1xf32>
    %38 = vector.broadcast %30 : vector<8x1xf32> to vector<8x32xf32>
    %39 = arith.subf %20, %38 : vector<8x32xf32>
    %cst_19 = arith.constant 9.99999997E-7 : f32
    %40 = vector.broadcast %cst_19 : f32 to vector<8x1xf32>
    %41 = arith.addf %37, %40 : vector<8x1xf32>
    %42 = math.rsqrt %41 : vector<8x1xf32>
    %43 = vector.broadcast %42 : vector<8x1xf32> to vector<8x32xf32>
    %44 = arith.mulf %39, %43 : vector<8x32xf32>
    %45 = vector.broadcast %21 : vector<1x32xf32> to vector<8x32xf32>
    %46 = arith.mulf %44, %45 : vector<8x32xf32>
    %47 = vector.broadcast %22 : vector<1x32xf32> to vector<8x32xf32>
    %48 = arith.addf %46, %47 : vector<8x32xf32>
    %49 = arith.truncf %48 : vector<8x32xf32> to vector<8x32xbf16>
    %c0_20 = arith.constant 0 : index
    %c0_21 = arith.constant 0 : index
    %c0_22 = arith.constant 0 : index
    %50 = vector.load %arg4[%c0_20, %c0_21, %c0_22] : memref<2x32x96xbf16, #tpu.memory_space<vmem>>, vector<1x32x96xbf16>
    %51 = vector.shape_cast %50 : vector<1x32x96xbf16> to vector<32x96xbf16>
    %cst_23 = arith.constant dense<0.000000e+00> : vector<8x96xf32>
    %52 = tpu.matmul %49, %51, %cst_23 {dimension_numbers = #tpu.dot_dimension_numbers<[1], [0], [0], [1], [0, 0, 1, 1], [], []>} : vector<8x32xbf16>, vector<32x96xbf16>, vector<8x96xf32> -> vector<8x96xf32>
    %c0_24 = arith.constant 0 : index
    %c0_25 = arith.constant 0 : index
    %53 = vector.load %arg5[%c0_24, %c0_25] : memref<2x96xf32, #tpu.memory_space<vmem>>, vector<1x96xf32>
    %54 = vector.broadcast %53 : vector<1x96xf32> to vector<8x96xf32>
    %55 = arith.addf %52, %54 : vector<8x96xf32>
    %cst_26 = arith.constant 0.000000e+00 : f32
    %56 = vector.broadcast %cst_26 : f32 to vector<8x32xf32>
    %57 = vector.extract_strided_slice %55 {offsets = [0, 0], sizes = [8, 8], strides = [1, 1]} : vector<8x96xf32> to vector<8x8xf32>
    %58 = vector.extract_strided_slice %55 {offsets = [0, 32], sizes = [8, 8], strides = [1, 1]} : vector<8x96xf32> to vector<8x8xf32>
    %59 = vector.extract_strided_slice %55 {offsets = [0, 64], sizes = [8, 8], strides = [1, 1]} : vector<8x96xf32> to vector<8x8xf32>
    %60 = arith.truncf %57 : vector<8x8xf32> to vector<8x8xbf16>
    %61 = arith.truncf %58 : vector<8x8xf32> to vector<8x8xbf16>
    %cst_27 = arith.constant dense<0.000000e+00> : vector<8x8xf32>
    %62 = tpu.matmul %60, %61, %cst_27 {dimension_numbers = #tpu.dot_dimension_numbers<[1], [1], [0], [0], [0, 0, 1, 0], [], []>} : vector<8x8xbf16>, vector<8x8xbf16>, vector<8x8xf32> -> vector<8x8xf32>
    %cst_28 = arith.constant 0.353553385 : f32
    %63 = vector.broadcast %cst_28 : f32 to vector<8x8xf32>
    %64 = arith.mulf %62, %63 : vector<8x8xf32>
    %65 = arith.addf %64, %14 : vector<8x8xf32>
    %cst_29 = arith.constant dense<0xFF800000> : vector<8xf32>
    %66 = vector.multi_reduction <maximumf>, %65, %cst_29 [1] : vector<8x8xf32> to vector<8xf32>
    %67 = vector.shape_cast %66 : vector<8xf32> to vector<8x1xf32>
    %68 = vector.broadcast %67 : vector<8x1xf32> to vector<8x8xf32>
    %69 = arith.subf %65, %68 : vector<8x8xf32>
    %70 = math.exp %69 : vector<8x8xf32>
    %cst_30 = arith.constant dense<0.000000e+00> : vector<8xf32>
    %71 = vector.multi_reduction <add>, %70, %cst_30 [1] : vector<8x8xf32> to vector<8xf32>
    %72 = vector.shape_cast %71 : vector<8xf32> to vector<8x1xf32>
    %73 = tpu.reciprocal %72 {approx = true} : vector<8x1xf32> -> vector<8x1xf32>
    %74 = vector.broadcast %73 : vector<8x1xf32> to vector<8x8xf32>
    %75 = arith.mulf %70, %74 : vector<8x8xf32>
    %76 = arith.truncf %75 : vector<8x8xf32> to vector<8x8xbf16>
    %77 = arith.truncf %59 : vector<8x8xf32> to vector<8x8xbf16>
    %cst_31 = arith.constant dense<0.000000e+00> : vector<8x8xf32>
    %78 = tpu.matmul %76, %77, %cst_31 {dimension_numbers = #tpu.dot_dimension_numbers<[1], [0], [0], [1], [0, 0, 1, 1], [], []>} : vector<8x8xbf16>, vector<8x8xbf16>, vector<8x8xf32> -> vector<8x8xf32>
    %79 = arith.truncf %78 : vector<8x8xf32> to vector<8x8xbf16>
    %c0_32 = arith.constant 0 : index
    %c0_33 = arith.constant 0 : index
    %c0_34 = arith.constant 0 : index
    %80 = vector.load %arg6[%c0_32, %c0_33, %c0_34] : memref<8x8x32xbf16, #tpu.memory_space<vmem>>, vector<1x8x32xbf16>
    %81 = vector.shape_cast %80 : vector<1x8x32xbf16> to vector<8x32xbf16>
    %cst_35 = arith.constant dense<0.000000e+00> : vector<8x32xf32>
    %82 = tpu.matmul %79, %81, %cst_35 {dimension_numbers = #tpu.dot_dimension_numbers<[1], [0], [0], [1], [0, 0, 1, 1], [], []>} : vector<8x8xbf16>, vector<8x32xbf16>, vector<8x32xf32> -> vector<8x32xf32>
    %83 = arith.addf %56, %82 : vector<8x32xf32>
    %84 = vector.extract_strided_slice %55 {offsets = [0, 8], sizes = [8, 8], strides = [1, 1]} : vector<8x96xf32> to vector<8x8xf32>
    %85 = vector.extract_strided_slice %55 {offsets = [0, 40], sizes = [8, 8], strides = [1, 1]} : vector<8x96xf32> to vector<8x8xf32>
    %86 = vector.extract_strided_slice %55 {offsets = [0, 72], sizes = [8, 8], strides = [1, 1]} : vector<8x96xf32> to vector<8x8xf32>
    %87 = arith.truncf %84 : vector<8x8xf32> to vector<8x8xbf16>
    %88 = arith.truncf %85 : vector<8x8xf32> to vector<8x8xbf16>
    %cst_36 = arith.constant dense<0.000000e+00> : vector<8x8xf32>
    %89 = tpu.matmul %87, %88, %cst_36 {dimension_numbers = #tpu.dot_dimension_numbers<[1], [1], [0], [0], [0, 0, 1, 0], [], []>} : vector<8x8xbf16>, vector<8x8xbf16>, vector<8x8xf32> -> vector<8x8xf32>
    %cst_37 = arith.constant 0.353553385 : f32
    %90 = vector.broadcast %cst_37 : f32 to vector<8x8xf32>
    %91 = arith.mulf %89, %90 : vector<8x8xf32>
    %92 = arith.addf %91, %14 : vector<8x8xf32>
    %cst_38 = arith.constant dense<0xFF800000> : vector<8xf32>
    %93 = vector.multi_reduction <maximumf>, %92, %cst_38 [1] : vector<8x8xf32> to vector<8xf32>
    %94 = vector.shape_cast %93 : vector<8xf32> to vector<8x1xf32>
    %95 = vector.broadcast %94 : vector<8x1xf32> to vector<8x8xf32>
    %96 = arith.subf %92, %95 : vector<8x8xf32>
    %97 = math.exp %96 : vector<8x8xf32>
    %cst_39 = arith.constant dense<0.000000e+00> : vector<8xf32>
    %98 = vector.multi_reduction <add>, %97, %cst_39 [1] : vector<8x8xf32> to vector<8xf32>
    %99 = vector.shape_cast %98 : vector<8xf32> to vector<8x1xf32>
    %100 = tpu.reciprocal %99 {approx = true} : vector<8x1xf32> -> vector<8x1xf32>
    %101 = vector.broadcast %100 : vector<8x1xf32> to vector<8x8xf32>
    %102 = arith.mulf %97, %101 : vector<8x8xf32>
    %103 = arith.truncf %102 : vector<8x8xf32> to vector<8x8xbf16>
    %104 = arith.truncf %86 : vector<8x8xf32> to vector<8x8xbf16>
    %cst_40 = arith.constant dense<0.000000e+00> : vector<8x8xf32>
    %105 = tpu.matmul %103, %104, %cst_40 {dimension_numbers = #tpu.dot_dimension_numbers<[1], [0], [0], [1], [0, 0, 1, 1], [], []>} : vector<8x8xbf16>, vector<8x8xbf16>, vector<8x8xf32> -> vector<8x8xf32>
    %106 = arith.truncf %105 : vector<8x8xf32> to vector<8x8xbf16>
    %c1_41 = arith.constant 1 : index
    %c0_42 = arith.constant 0 : index
    %c0_43 = arith.constant 0 : index
    %107 = vector.load %arg6[%c1_41, %c0_42, %c0_43] : memref<8x8x32xbf16, #tpu.memory_space<vmem>>, vector<1x8x32xbf16>
    %108 = vector.shape_cast %107 : vector<1x8x32xbf16> to vector<8x32xbf16>
    %cst_44 = arith.constant dense<0.000000e+00> : vector<8x32xf32>
    %109 = tpu.matmul %106, %108, %cst_44 {dimension_numbers = #tpu.dot_dimension_numbers<[1], [0], [0], [1], [0, 0, 1, 1], [], []>} : vector<8x8xbf16>, vector<8x32xbf16>, vector<8x32xf32> -> vector<8x32xf32>
    %110 = arith.addf %83, %109 : vector<8x32xf32>
    %111 = vector.extract_strided_slice %55 {offsets = [0, 16], sizes = [8, 8], strides = [1, 1]} : vector<8x96xf32> to vector<8x8xf32>
    %112 = vector.extract_strided_slice %55 {offsets = [0, 48], sizes = [8, 8], strides = [1, 1]} : vector<8x96xf32> to vector<8x8xf32>
    %113 = vector.extract_strided_slice %55 {offsets = [0, 80], sizes = [8, 8], strides = [1, 1]} : vector<8x96xf32> to vector<8x8xf32>
    %114 = arith.truncf %111 : vector<8x8xf32> to vector<8x8xbf16>
    %115 = arith.truncf %112 : vector<8x8xf32> to vector<8x8xbf16>
    %cst_45 = arith.constant dense<0.000000e+00> : vector<8x8xf32>
    %116 = tpu.matmul %114, %115, %cst_45 {dimension_numbers = #tpu.dot_dimension_numbers<[1], [1], [0], [0], [0, 0, 1, 0], [], []>} : vector<8x8xbf16>, vector<8x8xbf16>, vector<8x8xf32> -> vector<8x8xf32>
    %cst_46 = arith.constant 0.353553385 : f32
    %117 = vector.broadcast %cst_46 : f32 to vector<8x8xf32>
    %118 = arith.mulf %116, %117 : vector<8x8xf32>
    %119 = arith.addf %118, %14 : vector<8x8xf32>
    %cst_47 = arith.constant dense<0xFF800000> : vector<8xf32>
    %120 = vector.multi_reduction <maximumf>, %119, %cst_47 [1] : vector<8x8xf32> to vector<8xf32>
    %121 = vector.shape_cast %120 : vector<8xf32> to vector<8x1xf32>
    %122 = vector.broadcast %121 : vector<8x1xf32> to vector<8x8xf32>
    %123 = arith.subf %119, %122 : vector<8x8xf32>
    %124 = math.exp %123 : vector<8x8xf32>
    %cst_48 = arith.constant dense<0.000000e+00> : vector<8xf32>
    %125 = vector.multi_reduction <add>, %124, %cst_48 [1] : vector<8x8xf32> to vector<8xf32>
    %126 = vector.shape_cast %125 : vector<8xf32> to vector<8x1xf32>
    %127 = tpu.reciprocal %126 {approx = true} : vector<8x1xf32> -> vector<8x1xf32>
    %128 = vector.broadcast %127 : vector<8x1xf32> to vector<8x8xf32>
    %129 = arith.mulf %124, %128 : vector<8x8xf32>
    %130 = arith.truncf %129 : vector<8x8xf32> to vector<8x8xbf16>
    %131 = arith.truncf %113 : vector<8x8xf32> to vector<8x8xbf16>
    %cst_49 = arith.constant dense<0.000000e+00> : vector<8x8xf32>
    %132 = tpu.matmul %130, %131, %cst_49 {dimension_numbers = #tpu.dot_dimension_numbers<[1], [0], [0], [1], [0, 0, 1, 1], [], []>} : vector<8x8xbf16>, vector<8x8xbf16>, vector<8x8xf32> -> vector<8x8xf32>
    %133 = arith.truncf %132 : vector<8x8xf32> to vector<8x8xbf16>
    %c2_50 = arith.constant 2 : index
    %c0_51 = arith.constant 0 : index
    %c0_52 = arith.constant 0 : index
    %134 = vector.load %arg6[%c2_50, %c0_51, %c0_52] : memref<8x8x32xbf16, #tpu.memory_space<vmem>>, vector<1x8x32xbf16>
    %135 = vector.shape_cast %134 : vector<1x8x32xbf16> to vector<8x32xbf16>
    %cst_53 = arith.constant dense<0.000000e+00> : vector<8x32xf32>
    %136 = tpu.matmul %133, %135, %cst_53 {dimension_numbers = #tpu.dot_dimension_numbers<[1], [0], [0], [1], [0, 0, 1, 1], [], []>} : vector<8x8xbf16>, vector<8x32xbf16>, vector<8x32xf32> -> vector<8x32xf32>
    %137 = arith.addf %110, %136 : vector<8x32xf32>
    %138 = vector.extract_strided_slice %55 {offsets = [0, 24], sizes = [8, 8], strides = [1, 1]} : vector<8x96xf32> to vector<8x8xf32>
    %139 = vector.extract_strided_slice %55 {offsets = [0, 56], sizes = [8, 8], strides = [1, 1]} : vector<8x96xf32> to vector<8x8xf32>
    %140 = vector.extract_strided_slice %55 {offsets = [0, 88], sizes = [8, 8], strides = [1, 1]} : vector<8x96xf32> to vector<8x8xf32>
    %141 = arith.truncf %138 : vector<8x8xf32> to vector<8x8xbf16>
    %142 = arith.truncf %139 : vector<8x8xf32> to vector<8x8xbf16>
    %cst_54 = arith.constant dense<0.000000e+00> : vector<8x8xf32>
    %143 = tpu.matmul %141, %142, %cst_54 {dimension_numbers = #tpu.dot_dimension_numbers<[1], [1], [0], [0], [0, 0, 1, 0], [], []>} : vector<8x8xbf16>, vector<8x8xbf16>, vector<8x8xf32> -> vector<8x8xf32>
    %cst_55 = arith.constant 0.353553385 : f32
    %144 = vector.broadcast %cst_55 : f32 to vector<8x8xf32>
    %145 = arith.mulf %143, %144 : vector<8x8xf32>
    %146 = arith.addf %145, %14 : vector<8x8xf32>
    %cst_56 = arith.constant dense<0xFF800000> : vector<8xf32>
    %147 = vector.multi_reduction <maximumf>, %146, %cst_56 [1] : vector<8x8xf32> to vector<8xf32>
    %148 = vector.shape_cast %147 : vector<8xf32> to vector<8x1xf32>
    %149 = vector.broadcast %148 : vector<8x1xf32> to vector<8x8xf32>
    %150 = arith.subf %146, %149 : vector<8x8xf32>
    %151 = math.exp %150 : vector<8x8xf32>
    %cst_57 = arith.constant dense<0.000000e+00> : vector<8xf32>
    %152 = vector.multi_reduction <add>, %151, %cst_57 [1] : vector<8x8xf32> to vector<8xf32>
    %153 = vector.shape_cast %152 : vector<8xf32> to vector<8x1xf32>
    %154 = tpu.reciprocal %153 {approx = true} : vector<8x1xf32> -> vector<8x1xf32>
    %155 = vector.broadcast %154 : vector<8x1xf32> to vector<8x8xf32>
    %156 = arith.mulf %151, %155 : vector<8x8xf32>
    %157 = arith.truncf %156 : vector<8x8xf32> to vector<8x8xbf16>
    %158 = arith.truncf %140 : vector<8x8xf32> to vector<8x8xbf16>
    %cst_58 = arith.constant dense<0.000000e+00> : vector<8x8xf32>
    %159 = tpu.matmul %157, %158, %cst_58 {dimension_numbers = #tpu.dot_dimension_numbers<[1], [0], [0], [1], [0, 0, 1, 1], [], []>} : vector<8x8xbf16>, vector<8x8xbf16>, vector<8x8xf32> -> vector<8x8xf32>
    %160 = arith.truncf %159 : vector<8x8xf32> to vector<8x8xbf16>
    %c3_59 = arith.constant 3 : index
    %c0_60 = arith.constant 0 : index
    %c0_61 = arith.constant 0 : index
    %161 = vector.load %arg6[%c3_59, %c0_60, %c0_61] : memref<8x8x32xbf16, #tpu.memory_space<vmem>>, vector<1x8x32xbf16>
    %162 = vector.shape_cast %161 : vector<1x8x32xbf16> to vector<8x32xbf16>
    %cst_62 = arith.constant dense<0.000000e+00> : vector<8x32xf32>
    %163 = tpu.matmul %160, %162, %cst_62 {dimension_numbers = #tpu.dot_dimension_numbers<[1], [0], [0], [1], [0, 0, 1, 1], [], []>} : vector<8x8xbf16>, vector<8x32xbf16>, vector<8x32xf32> -> vector<8x32xf32>
    %164 = arith.addf %137, %163 : vector<8x32xf32>
    %165 = arith.addf %20, %164 : vector<8x32xf32>
    %166 = vector.broadcast %23 : vector<1x32xf32> to vector<8x32xf32>
    %167 = arith.addf %165, %166 : vector<8x32xf32>
    %cst_63 = arith.constant dense<0.000000e+00> : vector<8xf32>
    %168 = vector.multi_reduction <add>, %167, %cst_63 [1] : vector<8x32xf32> to vector<8xf32>
    %169 = vector.shape_cast %168 : vector<8xf32> to vector<8x1xf32>
    %cst_64 = arith.constant 3.200000e+01 : f32
    %170 = vector.broadcast %cst_64 : f32 to vector<8x1xf32>
    %171 = arith.divf %169, %170 : vector<8x1xf32>
    %172 = vector.broadcast %171 : vector<8x1xf32> to vector<8x32xf32>
    %173 = arith.subf %167, %172 : vector<8x32xf32>
    %174 = arith.mulf %173, %173 : vector<8x32xf32>
    %cst_65 = arith.constant dense<0.000000e+00> : vector<8xf32>
    %175 = vector.multi_reduction <add>, %174, %cst_65 [1] : vector<8x32xf32> to vector<8xf32>
    %176 = vector.shape_cast %175 : vector<8xf32> to vector<8x1xf32>
    %cst_66 = arith.constant 3.200000e+01 : f32
    %177 = vector.broadcast %cst_66 : f32 to vector<8x1xf32>
    %178 = arith.divf %176, %177 : vector<8x1xf32>
    %179 = vector.broadcast %171 : vector<8x1xf32> to vector<8x32xf32>
    %180 = arith.subf %167, %179 : vector<8x32xf32>
    %cst_67 = arith.constant 9.99999997E-7 : f32
    %181 = vector.broadcast %cst_67 : f32 to vector<8x1xf32>
    %182 = arith.addf %178, %181 : vector<8x1xf32>
    %183 = math.rsqrt %182 : vector<8x1xf32>
    %184 = vector.broadcast %183 : vector<8x1xf32> to vector<8x32xf32>
    %185 = arith.mulf %180, %184 : vector<8x32xf32>
    %186 = vector.broadcast %24 : vector<1x32xf32> to vector<8x32xf32>
    %187 = arith.mulf %185, %186 : vector<8x32xf32>
    %188 = vector.broadcast %25 : vector<1x32xf32> to vector<8x32xf32>
    %189 = arith.addf %187, %188 : vector<8x32xf32>
    %190 = arith.truncf %189 : vector<8x32xf32> to vector<8x32xbf16>
    %c0_68 = arith.constant 0 : index
    %c0_69 = arith.constant 0 : index
    %c0_70 = arith.constant 0 : index
    %191 = vector.load %arg7[%c0_68, %c0_69, %c0_70] : memref<2x32x128xbf16, #tpu.memory_space<vmem>>, vector<1x32x128xbf16>
    %192 = vector.shape_cast %191 : vector<1x32x128xbf16> to vector<32x128xbf16>
    %cst_71 = arith.constant dense<0.000000e+00> : vector<8x128xf32>
    %193 = tpu.matmul %190, %192, %cst_71 {dimension_numbers = #tpu.dot_dimension_numbers<[1], [0], [0], [1], [0, 0, 1, 1], [], []>} : vector<8x32xbf16>, vector<32x128xbf16>, vector<8x128xf32> -> vector<8x128xf32>
    %c0_72 = arith.constant 0 : index
    %c0_73 = arith.constant 0 : index
    %194 = vector.load %arg8[%c0_72, %c0_73] : memref<2x128xf32, #tpu.memory_space<vmem>>, vector<1x128xf32>
    %195 = vector.broadcast %194 : vector<1x128xf32> to vector<8x128xf32>
    %196 = arith.addf %193, %195 : vector<8x128xf32>
    %cst_74 = arith.constant 5.000000e-01 : f32
    %197 = vector.broadcast %cst_74 : f32 to vector<8x128xf32>
    %198 = arith.mulf %197, %196 : vector<8x128xf32>
    %cst_75 = arith.constant 4.471500e-02 : f32
    %199 = vector.broadcast %cst_75 : f32 to vector<8x128xf32>
    %200 = arith.mulf %199, %196 : vector<8x128xf32>
    %201 = arith.mulf %200, %196 : vector<8x128xf32>
    %202 = arith.mulf %201, %196 : vector<8x128xf32>
    %203 = arith.addf %196, %202 : vector<8x128xf32>
    %cst_76 = arith.constant 0.797884583 : f32
    %204 = vector.broadcast %cst_76 : f32 to vector<8x128xf32>
    %205 = arith.mulf %204, %203 : vector<8x128xf32>
    %206 = math.tanh %205 : vector<8x128xf32>
    %cst_77 = arith.constant 1.000000e+00 : f32
    %207 = vector.broadcast %cst_77 : f32 to vector<8x128xf32>
    %208 = arith.addf %207, %206 : vector<8x128xf32>
    %209 = arith.mulf %198, %208 : vector<8x128xf32>
    %210 = arith.truncf %209 : vector<8x128xf32> to vector<8x128xbf16>
    %c0_78 = arith.constant 0 : index
    %c0_79 = arith.constant 0 : index
    %c0_80 = arith.constant 0 : index
    %211 = vector.load %arg9[%c0_78, %c0_79, %c0_80] : memref<2x128x32xbf16, #tpu.memory_space<vmem>>, vector<1x128x32xbf16>
    %212 = vector.shape_cast %211 : vector<1x128x32xbf16> to vector<128x32xbf16>
    %cst_81 = arith.constant dense<0.000000e+00> : vector<8x32xf32>
    %213 = tpu.matmul %210, %212, %cst_81 {dimension_numbers = #tpu.dot_dimension_numbers<[1], [0], [0], [1], [0, 0, 1, 1], [], []>} : vector<8x128xbf16>, vector<128x32xbf16>, vector<8x32xf32> -> vector<8x32xf32>
    %214 = arith.addf %167, %213 : vector<8x32xf32>
    %215 = vector.broadcast %26 : vector<1x32xf32> to vector<8x32xf32>
    %216 = arith.addf %214, %215 : vector<8x32xf32>
    %c6 = arith.constant 6 : index
    %c0_82 = arith.constant 0 : index
    %217 = vector.load %arg10[%c6, %c0_82] : memref<12x32xf32, #tpu.memory_space<vmem>>, vector<1x32xf32>
    %c7 = arith.constant 7 : index
    %c0_83 = arith.constant 0 : index
    %218 = vector.load %arg10[%c7, %c0_83] : memref<12x32xf32, #tpu.memory_space<vmem>>, vector<1x32xf32>
    %c8 = arith.constant 8 : index
    %c0_84 = arith.constant 0 : index
    %219 = vector.load %arg10[%c8, %c0_84] : memref<12x32xf32, #tpu.memory_space<vmem>>, vector<1x32xf32>
    %c9 = arith.constant 9 : index
    %c0_85 = arith.constant 0 : index
    %220 = vector.load %arg10[%c9, %c0_85] : memref<12x32xf32, #tpu.memory_space<vmem>>, vector<1x32xf32>
    %c10 = arith.constant 10 : index
    %c0_86 = arith.constant 0 : index
    %221 = vector.load %arg10[%c10, %c0_86] : memref<12x32xf32, #tpu.memory_space<vmem>>, vector<1x32xf32>
    %c11 = arith.constant 11 : index
    %c0_87 = arith.constant 0 : index
    %222 = vector.load %arg10[%c11, %c0_87] : memref<12x32xf32, #tpu.memory_space<vmem>>, vector<1x32xf32>
    %cst_88 = arith.constant dense<0.000000e+00> : vector<8xf32>
    %223 = vector.multi_reduction <add>, %216, %cst_88 [1] : vector<8x32xf32> to vector<8xf32>
    %224 = vector.shape_cast %223 : vector<8xf32> to vector<8x1xf32>
    %cst_89 = arith.constant 3.200000e+01 : f32
    %225 = vector.broadcast %cst_89 : f32 to vector<8x1xf32>
    %226 = arith.divf %224, %225 : vector<8x1xf32>
    %227 = vector.broadcast %226 : vector<8x1xf32> to vector<8x32xf32>
    %228 = arith.subf %216, %227 : vector<8x32xf32>
    %229 = arith.mulf %228, %228 : vector<8x32xf32>
    %cst_90 = arith.constant dense<0.000000e+00> : vector<8xf32>
    %230 = vector.multi_reduction <add>, %229, %cst_90 [1] : vector<8x32xf32> to vector<8xf32>
    %231 = vector.shape_cast %230 : vector<8xf32> to vector<8x1xf32>
    %cst_91 = arith.constant 3.200000e+01 : f32
    %232 = vector.broadcast %cst_91 : f32 to vector<8x1xf32>
    %233 = arith.divf %231, %232 : vector<8x1xf32>
    %234 = vector.broadcast %226 : vector<8x1xf32> to vector<8x32xf32>
    %235 = arith.subf %216, %234 : vector<8x32xf32>
    %cst_92 = arith.constant 9.99999997E-7 : f32
    %236 = vector.broadcast %cst_92 : f32 to vector<8x1xf32>
    %237 = arith.addf %233, %236 : vector<8x1xf32>
    %238 = math.rsqrt %237 : vector<8x1xf32>
    %239 = vector.broadcast %238 : vector<8x1xf32> to vector<8x32xf32>
    %240 = arith.mulf %235, %239 : vector<8x32xf32>
    %241 = vector.broadcast %217 : vector<1x32xf32> to vector<8x32xf32>
    %242 = arith.mulf %240, %241 : vector<8x32xf32>
    %243 = vector.broadcast %218 : vector<1x32xf32> to vector<8x32xf32>
    %244 = arith.addf %242, %243 : vector<8x32xf32>
    %245 = arith.truncf %244 : vector<8x32xf32> to vector<8x32xbf16>
    %c1_93 = arith.constant 1 : index
    %c0_94 = arith.constant 0 : index
    %c0_95 = arith.constant 0 : index
    %246 = vector.load %arg4[%c1_93, %c0_94, %c0_95] : memref<2x32x96xbf16, #tpu.memory_space<vmem>>, vector<1x32x96xbf16>
    %247 = vector.shape_cast %246 : vector<1x32x96xbf16> to vector<32x96xbf16>
    %cst_96 = arith.constant dense<0.000000e+00> : vector<8x96xf32>
    %248 = tpu.matmul %245, %247, %cst_96 {dimension_numbers = #tpu.dot_dimension_numbers<[1], [0], [0], [1], [0, 0, 1, 1], [], []>} : vector<8x32xbf16>, vector<32x96xbf16>, vector<8x96xf32> -> vector<8x96xf32>
    %c1_97 = arith.constant 1 : index
    %c0_98 = arith.constant 0 : index
    %249 = vector.load %arg5[%c1_97, %c0_98] : memref<2x96xf32, #tpu.memory_space<vmem>>, vector<1x96xf32>
    %250 = vector.broadcast %249 : vector<1x96xf32> to vector<8x96xf32>
    %251 = arith.addf %248, %250 : vector<8x96xf32>
    %cst_99 = arith.constant 0.000000e+00 : f32
    %252 = vector.broadcast %cst_99 : f32 to vector<8x32xf32>
    %253 = vector.extract_strided_slice %251 {offsets = [0, 0], sizes = [8, 8], strides = [1, 1]} : vector<8x96xf32> to vector<8x8xf32>
    %254 = vector.extract_strided_slice %251 {offsets = [0, 32], sizes = [8, 8], strides = [1, 1]} : vector<8x96xf32> to vector<8x8xf32>
    %255 = vector.extract_strided_slice %251 {offsets = [0, 64], sizes = [8, 8], strides = [1, 1]} : vector<8x96xf32> to vector<8x8xf32>
    %256 = arith.truncf %253 : vector<8x8xf32> to vector<8x8xbf16>
    %257 = arith.truncf %254 : vector<8x8xf32> to vector<8x8xbf16>
    %cst_100 = arith.constant dense<0.000000e+00> : vector<8x8xf32>
    %258 = tpu.matmul %256, %257, %cst_100 {dimension_numbers = #tpu.dot_dimension_numbers<[1], [1], [0], [0], [0, 0, 1, 0], [], []>} : vector<8x8xbf16>, vector<8x8xbf16>, vector<8x8xf32> -> vector<8x8xf32>
    %cst_101 = arith.constant 0.353553385 : f32
    %259 = vector.broadcast %cst_101 : f32 to vector<8x8xf32>
    %260 = arith.mulf %258, %259 : vector<8x8xf32>
    %261 = arith.addf %260, %14 : vector<8x8xf32>
    %cst_102 = arith.constant dense<0xFF800000> : vector<8xf32>
    %262 = vector.multi_reduction <maximumf>, %261, %cst_102 [1] : vector<8x8xf32> to vector<8xf32>
    %263 = vector.shape_cast %262 : vector<8xf32> to vector<8x1xf32>
    %264 = vector.broadcast %263 : vector<8x1xf32> to vector<8x8xf32>
    %265 = arith.subf %261, %264 : vector<8x8xf32>
    %266 = math.exp %265 : vector<8x8xf32>
    %cst_103 = arith.constant dense<0.000000e+00> : vector<8xf32>
    %267 = vector.multi_reduction <add>, %266, %cst_103 [1] : vector<8x8xf32> to vector<8xf32>
    %268 = vector.shape_cast %267 : vector<8xf32> to vector<8x1xf32>
    %269 = tpu.reciprocal %268 {approx = true} : vector<8x1xf32> -> vector<8x1xf32>
    %270 = vector.broadcast %269 : vector<8x1xf32> to vector<8x8xf32>
    %271 = arith.mulf %266, %270 : vector<8x8xf32>
    %272 = arith.truncf %271 : vector<8x8xf32> to vector<8x8xbf16>
    %273 = arith.truncf %255 : vector<8x8xf32> to vector<8x8xbf16>
    %cst_104 = arith.constant dense<0.000000e+00> : vector<8x8xf32>
    %274 = tpu.matmul %272, %273, %cst_104 {dimension_numbers = #tpu.dot_dimension_numbers<[1], [0], [0], [1], [0, 0, 1, 1], [], []>} : vector<8x8xbf16>, vector<8x8xbf16>, vector<8x8xf32> -> vector<8x8xf32>
    %275 = arith.truncf %274 : vector<8x8xf32> to vector<8x8xbf16>
    %c4_105 = arith.constant 4 : index
    %c0_106 = arith.constant 0 : index
    %c0_107 = arith.constant 0 : index
    %276 = vector.load %arg6[%c4_105, %c0_106, %c0_107] : memref<8x8x32xbf16, #tpu.memory_space<vmem>>, vector<1x8x32xbf16>
    %277 = vector.shape_cast %276 : vector<1x8x32xbf16> to vector<8x32xbf16>
    %cst_108 = arith.constant dense<0.000000e+00> : vector<8x32xf32>
    %278 = tpu.matmul %275, %277, %cst_108 {dimension_numbers = #tpu.dot_dimension_numbers<[1], [0], [0], [1], [0, 0, 1, 1], [], []>} : vector<8x8xbf16>, vector<8x32xbf16>, vector<8x32xf32> -> vector<8x32xf32>
    %279 = arith.addf %252, %278 : vector<8x32xf32>
    %280 = vector.extract_strided_slice %251 {offsets = [0, 8], sizes = [8, 8], strides = [1, 1]} : vector<8x96xf32> to vector<8x8xf32>
    %281 = vector.extract_strided_slice %251 {offsets = [0, 40], sizes = [8, 8], strides = [1, 1]} : vector<8x96xf32> to vector<8x8xf32>
    %282 = vector.extract_strided_slice %251 {offsets = [0, 72], sizes = [8, 8], strides = [1, 1]} : vector<8x96xf32> to vector<8x8xf32>
    %283 = arith.truncf %280 : vector<8x8xf32> to vector<8x8xbf16>
    %284 = arith.truncf %281 : vector<8x8xf32> to vector<8x8xbf16>
    %cst_109 = arith.constant dense<0.000000e+00> : vector<8x8xf32>
    %285 = tpu.matmul %283, %284, %cst_109 {dimension_numbers = #tpu.dot_dimension_numbers<[1], [1], [0], [0], [0, 0, 1, 0], [], []>} : vector<8x8xbf16>, vector<8x8xbf16>, vector<8x8xf32> -> vector<8x8xf32>
    %cst_110 = arith.constant 0.353553385 : f32
    %286 = vector.broadcast %cst_110 : f32 to vector<8x8xf32>
    %287 = arith.mulf %285, %286 : vector<8x8xf32>
    %288 = arith.addf %287, %14 : vector<8x8xf32>
    %cst_111 = arith.constant dense<0xFF800000> : vector<8xf32>
    %289 = vector.multi_reduction <maximumf>, %288, %cst_111 [1] : vector<8x8xf32> to vector<8xf32>
    %290 = vector.shape_cast %289 : vector<8xf32> to vector<8x1xf32>
    %291 = vector.broadcast %290 : vector<8x1xf32> to vector<8x8xf32>
    %292 = arith.subf %288, %291 : vector<8x8xf32>
    %293 = math.exp %292 : vector<8x8xf32>
    %cst_112 = arith.constant dense<0.000000e+00> : vector<8xf32>
    %294 = vector.multi_reduction <add>, %293, %cst_112 [1] : vector<8x8xf32> to vector<8xf32>
    %295 = vector.shape_cast %294 : vector<8xf32> to vector<8x1xf32>
    %296 = tpu.reciprocal %295 {approx = true} : vector<8x1xf32> -> vector<8x1xf32>
    %297 = vector.broadcast %296 : vector<8x1xf32> to vector<8x8xf32>
    %298 = arith.mulf %293, %297 : vector<8x8xf32>
    %299 = arith.truncf %298 : vector<8x8xf32> to vector<8x8xbf16>
    %300 = arith.truncf %282 : vector<8x8xf32> to vector<8x8xbf16>
    %cst_113 = arith.constant dense<0.000000e+00> : vector<8x8xf32>
    %301 = tpu.matmul %299, %300, %cst_113 {dimension_numbers = #tpu.dot_dimension_numbers<[1], [0], [0], [1], [0, 0, 1, 1], [], []>} : vector<8x8xbf16>, vector<8x8xbf16>, vector<8x8xf32> -> vector<8x8xf32>
    %302 = arith.truncf %301 : vector<8x8xf32> to vector<8x8xbf16>
    %c5_114 = arith.constant 5 : index
    %c0_115 = arith.constant 0 : index
    %c0_116 = arith.constant 0 : index
    %303 = vector.load %arg6[%c5_114, %c0_115, %c0_116] : memref<8x8x32xbf16, #tpu.memory_space<vmem>>, vector<1x8x32xbf16>
    %304 = vector.shape_cast %303 : vector<1x8x32xbf16> to vector<8x32xbf16>
    %cst_117 = arith.constant dense<0.000000e+00> : vector<8x32xf32>
    %305 = tpu.matmul %302, %304, %cst_117 {dimension_numbers = #tpu.dot_dimension_numbers<[1], [0], [0], [1], [0, 0, 1, 1], [], []>} : vector<8x8xbf16>, vector<8x32xbf16>, vector<8x32xf32> -> vector<8x32xf32>
    %306 = arith.addf %279, %305 : vector<8x32xf32>
    %307 = vector.extract_strided_slice %251 {offsets = [0, 16], sizes = [8, 8], strides = [1, 1]} : vector<8x96xf32> to vector<8x8xf32>
    %308 = vector.extract_strided_slice %251 {offsets = [0, 48], sizes = [8, 8], strides = [1, 1]} : vector<8x96xf32> to vector<8x8xf32>
    %309 = vector.extract_strided_slice %251 {offsets = [0, 80], sizes = [8, 8], strides = [1, 1]} : vector<8x96xf32> to vector<8x8xf32>
    %310 = arith.truncf %307 : vector<8x8xf32> to vector<8x8xbf16>
    %311 = arith.truncf %308 : vector<8x8xf32> to vector<8x8xbf16>
    %cst_118 = arith.constant dense<0.000000e+00> : vector<8x8xf32>
    %312 = tpu.matmul %310, %311, %cst_118 {dimension_numbers = #tpu.dot_dimension_numbers<[1], [1], [0], [0], [0, 0, 1, 0], [], []>} : vector<8x8xbf16>, vector<8x8xbf16>, vector<8x8xf32> -> vector<8x8xf32>
    %cst_119 = arith.constant 0.353553385 : f32
    %313 = vector.broadcast %cst_119 : f32 to vector<8x8xf32>
    %314 = arith.mulf %312, %313 : vector<8x8xf32>
    %315 = arith.addf %314, %14 : vector<8x8xf32>
    %cst_120 = arith.constant dense<0xFF800000> : vector<8xf32>
    %316 = vector.multi_reduction <maximumf>, %315, %cst_120 [1] : vector<8x8xf32> to vector<8xf32>
    %317 = vector.shape_cast %316 : vector<8xf32> to vector<8x1xf32>
    %318 = vector.broadcast %317 : vector<8x1xf32> to vector<8x8xf32>
    %319 = arith.subf %315, %318 : vector<8x8xf32>
    %320 = math.exp %319 : vector<8x8xf32>
    %cst_121 = arith.constant dense<0.000000e+00> : vector<8xf32>
    %321 = vector.multi_reduction <add>, %320, %cst_121 [1] : vector<8x8xf32> to vector<8xf32>
    %322 = vector.shape_cast %321 : vector<8xf32> to vector<8x1xf32>
    %323 = tpu.reciprocal %322 {approx = true} : vector<8x1xf32> -> vector<8x1xf32>
    %324 = vector.broadcast %323 : vector<8x1xf32> to vector<8x8xf32>
    %325 = arith.mulf %320, %324 : vector<8x8xf32>
    %326 = arith.truncf %325 : vector<8x8xf32> to vector<8x8xbf16>
    %327 = arith.truncf %309 : vector<8x8xf32> to vector<8x8xbf16>
    %cst_122 = arith.constant dense<0.000000e+00> : vector<8x8xf32>
    %328 = tpu.matmul %326, %327, %cst_122 {dimension_numbers = #tpu.dot_dimension_numbers<[1], [0], [0], [1], [0, 0, 1, 1], [], []>} : vector<8x8xbf16>, vector<8x8xbf16>, vector<8x8xf32> -> vector<8x8xf32>
    %329 = arith.truncf %328 : vector<8x8xf32> to vector<8x8xbf16>
    %c6_123 = arith.constant 6 : index
    %c0_124 = arith.constant 0 : index
    %c0_125 = arith.constant 0 : index
    %330 = vector.load %arg6[%c6_123, %c0_124, %c0_125] : memref<8x8x32xbf16, #tpu.memory_space<vmem>>, vector<1x8x32xbf16>
    %331 = vector.shape_cast %330 : vector<1x8x32xbf16> to vector<8x32xbf16>
    %cst_126 = arith.constant dense<0.000000e+00> : vector<8x32xf32>
    %332 = tpu.matmul %329, %331, %cst_126 {dimension_numbers = #tpu.dot_dimension_numbers<[1], [0], [0], [1], [0, 0, 1, 1], [], []>} : vector<8x8xbf16>, vector<8x32xbf16>, vector<8x32xf32> -> vector<8x32xf32>
    %333 = arith.addf %306, %332 : vector<8x32xf32>
    %334 = vector.extract_strided_slice %251 {offsets = [0, 24], sizes = [8, 8], strides = [1, 1]} : vector<8x96xf32> to vector<8x8xf32>
    %335 = vector.extract_strided_slice %251 {offsets = [0, 56], sizes = [8, 8], strides = [1, 1]} : vector<8x96xf32> to vector<8x8xf32>
    %336 = vector.extract_strided_slice %251 {offsets = [0, 88], sizes = [8, 8], strides = [1, 1]} : vector<8x96xf32> to vector<8x8xf32>
    %337 = arith.truncf %334 : vector<8x8xf32> to vector<8x8xbf16>
    %338 = arith.truncf %335 : vector<8x8xf32> to vector<8x8xbf16>
    %cst_127 = arith.constant dense<0.000000e+00> : vector<8x8xf32>
    %339 = tpu.matmul %337, %338, %cst_127 {dimension_numbers = #tpu.dot_dimension_numbers<[1], [1], [0], [0], [0, 0, 1, 0], [], []>} : vector<8x8xbf16>, vector<8x8xbf16>, vector<8x8xf32> -> vector<8x8xf32>
    %cst_128 = arith.constant 0.353553385 : f32
    %340 = vector.broadcast %cst_128 : f32 to vector<8x8xf32>
    %341 = arith.mulf %339, %340 : vector<8x8xf32>
    %342 = arith.addf %341, %14 : vector<8x8xf32>
    %cst_129 = arith.constant dense<0xFF800000> : vector<8xf32>
    %343 = vector.multi_reduction <maximumf>, %342, %cst_129 [1] : vector<8x8xf32> to vector<8xf32>
    %344 = vector.shape_cast %343 : vector<8xf32> to vector<8x1xf32>
    %345 = vector.broadcast %344 : vector<8x1xf32> to vector<8x8xf32>
    %346 = arith.subf %342, %345 : vector<8x8xf32>
    %347 = math.exp %346 : vector<8x8xf32>
    %cst_130 = arith.constant dense<0.000000e+00> : vector<8xf32>
    %348 = vector.multi_reduction <add>, %347, %cst_130 [1] : vector<8x8xf32> to vector<8xf32>
    %349 = vector.shape_cast %348 : vector<8xf32> to vector<8x1xf32>
    %350 = tpu.reciprocal %349 {approx = true} : vector<8x1xf32> -> vector<8x1xf32>
    %351 = vector.broadcast %350 : vector<8x1xf32> to vector<8x8xf32>
    %352 = arith.mulf %347, %351 : vector<8x8xf32>
    %353 = arith.truncf %352 : vector<8x8xf32> to vector<8x8xbf16>
    %354 = arith.truncf %336 : vector<8x8xf32> to vector<8x8xbf16>
    %cst_131 = arith.constant dense<0.000000e+00> : vector<8x8xf32>
    %355 = tpu.matmul %353, %354, %cst_131 {dimension_numbers = #tpu.dot_dimension_numbers<[1], [0], [0], [1], [0, 0, 1, 1], [], []>} : vector<8x8xbf16>, vector<8x8xbf16>, vector<8x8xf32> -> vector<8x8xf32>
    %356 = arith.truncf %355 : vector<8x8xf32> to vector<8x8xbf16>
    %c7_132 = arith.constant 7 : index
    %c0_133 = arith.constant 0 : index
    %c0_134 = arith.constant 0 : index
    %357 = vector.load %arg6[%c7_132, %c0_133, %c0_134] : memref<8x8x32xbf16, #tpu.memory_space<vmem>>, vector<1x8x32xbf16>
    %358 = vector.shape_cast %357 : vector<1x8x32xbf16> to vector<8x32xbf16>
    %cst_135 = arith.constant dense<0.000000e+00> : vector<8x32xf32>
    %359 = tpu.matmul %356, %358, %cst_135 {dimension_numbers = #tpu.dot_dimension_numbers<[1], [0], [0], [1], [0, 0, 1, 1], [], []>} : vector<8x8xbf16>, vector<8x32xbf16>, vector<8x32xf32> -> vector<8x32xf32>
    %360 = arith.addf %333, %359 : vector<8x32xf32>
    %361 = arith.addf %216, %360 : vector<8x32xf32>
    %362 = vector.broadcast %219 : vector<1x32xf32> to vector<8x32xf32>
    %363 = arith.addf %361, %362 : vector<8x32xf32>
    %cst_136 = arith.constant dense<0.000000e+00> : vector<8xf32>
    %364 = vector.multi_reduction <add>, %363, %cst_136 [1] : vector<8x32xf32> to vector<8xf32>
    %365 = vector.shape_cast %364 : vector<8xf32> to vector<8x1xf32>
    %cst_137 = arith.constant 3.200000e+01 : f32
    %366 = vector.broadcast %cst_137 : f32 to vector<8x1xf32>
    %367 = arith.divf %365, %366 : vector<8x1xf32>
    %368 = vector.broadcast %367 : vector<8x1xf32> to vector<8x32xf32>
    %369 = arith.subf %363, %368 : vector<8x32xf32>
    %370 = arith.mulf %369, %369 : vector<8x32xf32>
    %cst_138 = arith.constant dense<0.000000e+00> : vector<8xf32>
    %371 = vector.multi_reduction <add>, %370, %cst_138 [1] : vector<8x32xf32> to vector<8xf32>
    %372 = vector.shape_cast %371 : vector<8xf32> to vector<8x1xf32>
    %cst_139 = arith.constant 3.200000e+01 : f32
    %373 = vector.broadcast %cst_139 : f32 to vector<8x1xf32>
    %374 = arith.divf %372, %373 : vector<8x1xf32>
    %375 = vector.broadcast %367 : vector<8x1xf32> to vector<8x32xf32>
    %376 = arith.subf %363, %375 : vector<8x32xf32>
    %cst_140 = arith.constant 9.99999997E-7 : f32
    %377 = vector.broadcast %cst_140 : f32 to vector<8x1xf32>
    %378 = arith.addf %374, %377 : vector<8x1xf32>
    %379 = math.rsqrt %378 : vector<8x1xf32>
    %380 = vector.broadcast %379 : vector<8x1xf32> to vector<8x32xf32>
    %381 = arith.mulf %376, %380 : vector<8x32xf32>
    %382 = vector.broadcast %220 : vector<1x32xf32> to vector<8x32xf32>
    %383 = arith.mulf %381, %382 : vector<8x32xf32>
    %384 = vector.broadcast %221 : vector<1x32xf32> to vector<8x32xf32>
    %385 = arith.addf %383, %384 : vector<8x32xf32>
    %386 = arith.truncf %385 : vector<8x32xf32> to vector<8x32xbf16>
    %c1_141 = arith.constant 1 : index
    %c0_142 = arith.constant 0 : index
    %c0_143 = arith.constant 0 : index
    %387 = vector.load %arg7[%c1_141, %c0_142, %c0_143] : memref<2x32x128xbf16, #tpu.memory_space<vmem>>, vector<1x32x128xbf16>
    %388 = vector.shape_cast %387 : vector<1x32x128xbf16> to vector<32x128xbf16>
    %cst_144 = arith.constant dense<0.000000e+00> : vector<8x128xf32>
    %389 = tpu.matmul %386, %388, %cst_144 {dimension_numbers = #tpu.dot_dimension_numbers<[1], [0], [0], [1], [0, 0, 1, 1], [], []>} : vector<8x32xbf16>, vector<32x128xbf16>, vector<8x128xf32> -> vector<8x128xf32>
    %c1_145 = arith.constant 1 : index
    %c0_146 = arith.constant 0 : index
    %390 = vector.load %arg8[%c1_145, %c0_146] : memref<2x128xf32, #tpu.memory_space<vmem>>, vector<1x128xf32>
    %391 = vector.broadcast %390 : vector<1x128xf32> to vector<8x128xf32>
    %392 = arith.addf %389, %391 : vector<8x128xf32>
    %cst_147 = arith.constant 5.000000e-01 : f32
    %393 = vector.broadcast %cst_147 : f32 to vector<8x128xf32>
    %394 = arith.mulf %393, %392 : vector<8x128xf32>
    %cst_148 = arith.constant 4.471500e-02 : f32
    %395 = vector.broadcast %cst_148 : f32 to vector<8x128xf32>
    %396 = arith.mulf %395, %392 : vector<8x128xf32>
    %397 = arith.mulf %396, %392 : vector<8x128xf32>
    %398 = arith.mulf %397, %392 : vector<8x128xf32>
    %399 = arith.addf %392, %398 : vector<8x128xf32>
    %cst_149 = arith.constant 0.797884583 : f32
    %400 = vector.broadcast %cst_149 : f32 to vector<8x128xf32>
    %401 = arith.mulf %400, %399 : vector<8x128xf32>
    %402 = math.tanh %401 : vector<8x128xf32>
    %cst_150 = arith.constant 1.000000e+00 : f32
    %403 = vector.broadcast %cst_150 : f32 to vector<8x128xf32>
    %404 = arith.addf %403, %402 : vector<8x128xf32>
    %405 = arith.mulf %394, %404 : vector<8x128xf32>
    %406 = arith.truncf %405 : vector<8x128xf32> to vector<8x128xbf16>
    %c1_151 = arith.constant 1 : index
    %c0_152 = arith.constant 0 : index
    %c0_153 = arith.constant 0 : index
    %407 = vector.load %arg9[%c1_151, %c0_152, %c0_153] : memref<2x128x32xbf16, #tpu.memory_space<vmem>>, vector<1x128x32xbf16>
    %408 = vector.shape_cast %407 : vector<1x128x32xbf16> to vector<128x32xbf16>
    %cst_154 = arith.constant dense<0.000000e+00> : vector<8x32xf32>
    %409 = tpu.matmul %406, %408, %cst_154 {dimension_numbers = #tpu.dot_dimension_numbers<[1], [0], [0], [1], [0, 0, 1, 1], [], []>} : vector<8x128xbf16>, vector<128x32xbf16>, vector<8x32xf32> -> vector<8x32xf32>
    %410 = arith.addf %363, %409 : vector<8x32xf32>
    %411 = vector.broadcast %222 : vector<1x32xf32> to vector<8x32xf32>
    %412 = arith.addf %410, %411 : vector<8x32xf32>
    %c0_155 = arith.constant 0 : index
    %c0_156 = arith.constant 0 : index
    %413 = vector.load %arg11[%c0_155, %c0_156] : memref<2x32xf32, #tpu.memory_space<vmem>>, vector<1x32xf32>
    %c1_157 = arith.constant 1 : index
    %c0_158 = arith.constant 0 : index
    %414 = vector.load %arg11[%c1_157, %c0_158] : memref<2x32xf32, #tpu.memory_space<vmem>>, vector<1x32xf32>
    %cst_159 = arith.constant dense<0.000000e+00> : vector<8xf32>
    %415 = vector.multi_reduction <add>, %412, %cst_159 [1] : vector<8x32xf32> to vector<8xf32>
    %416 = vector.shape_cast %415 : vector<8xf32> to vector<8x1xf32>
    %cst_160 = arith.constant 3.200000e+01 : f32
    %417 = vector.broadcast %cst_160 : f32 to vector<8x1xf32>
    %418 = arith.divf %416, %417 : vector<8x1xf32>
    %419 = vector.broadcast %418 : vector<8x1xf32> to vector<8x32xf32>
    %420 = arith.subf %412, %419 : vector<8x32xf32>
    %421 = arith.mulf %420, %420 : vector<8x32xf32>
    %cst_161 = arith.constant dense<0.000000e+00> : vector<8xf32>
    %422 = vector.multi_reduction <add>, %421, %cst_161 [1] : vector<8x32xf32> to vector<8xf32>
    %423 = vector.shape_cast %422 : vector<8xf32> to vector<8x1xf32>
    %cst_162 = arith.constant 3.200000e+01 : f32
    %424 = vector.broadcast %cst_162 : f32 to vector<8x1xf32>
    %425 = arith.divf %423, %424 : vector<8x1xf32>
    %426 = vector.broadcast %418 : vector<8x1xf32> to vector<8x32xf32>
    %427 = arith.subf %412, %426 : vector<8x32xf32>
    %cst_163 = arith.constant 9.99999997E-7 : f32
    %428 = vector.broadcast %cst_163 : f32 to vector<8x1xf32>
    %429 = arith.addf %425, %428 : vector<8x1xf32>
    %430 = math.rsqrt %429 : vector<8x1xf32>
    %431 = vector.broadcast %430 : vector<8x1xf32> to vector<8x32xf32>
    %432 = arith.mulf %427, %431 : vector<8x32xf32>
    %433 = vector.broadcast %413 : vector<1x32xf32> to vector<8x32xf32>
    %434 = arith.mulf %432, %433 : vector<8x32xf32>
    %435 = vector.broadcast %414 : vector<1x32xf32> to vector<8x32xf32>
    %436 = arith.addf %434, %435 : vector<8x32xf32>
    %437 = arith.truncf %436 : vector<8x32xf32> to vector<8x32xbf16>
    %c0_164 = arith.constant 0 : index
    %c0_165 = arith.constant 0 : index
    %438 = vector.load %arg12[%c0_164, %c0_165] : memref<32x128xbf16, #tpu.memory_space<vmem>>, vector<32x128xbf16>
    %cst_166 = arith.constant dense<0.000000e+00> : vector<8x128xf32>
    %439 = tpu.matmul %437, %438, %cst_166 {dimension_numbers = #tpu.dot_dimension_numbers<[1], [0], [0], [1], [0, 0, 1, 1], [], []>} : vector<8x32xbf16>, vector<32x128xbf16>, vector<8x128xf32> -> vector<8x128xf32>
    %c0_167 = arith.constant 0 : index
    %c0_168 = arith.constant 0 : index
    %440 = vector.load %arg13[%c0_167, %c0_168] : memref<1x128xf32, #tpu.memory_space<vmem>>, vector<1x128xf32>
    %441 = vector.broadcast %440 : vector<1x128xf32> to vector<8x128xf32>
    %442 = arith.addf %439, %441 : vector<8x128xf32>
    %c0_169 = arith.constant 0 : index
    %c0_170 = arith.constant 0 : index
    %443 = vector.load %arg14[%c0_169, %c0_170] : memref<8x128xf32, #tpu.memory_space<vmem>>, vector<8x128xf32>
    tpu.vector_store %arg14[%c0_169, %c0_170], %442 {strides = array<i32>} : memref<8x128xf32, #tpu.memory_space<vmem>>, vector<8x128xf32>,
    return
  }
  func.func @transform_0(%arg0: i32) -> (i32, i32) {
    %c0_i32 = arith.constant 0 : i32
    %c0_i32_0 = arith.constant 0 : i32
    return %arg0, %c0_i32 : i32, i32
  }
  func.func @transform_1(%arg0: i32) -> (i32, i32) {
    %c0_i32 = arith.constant 0 : i32
    %c0_i32_0 = arith.constant 0 : i32
    %c0_i32_1 = arith.constant 0 : i32
    return %c0_i32, %c0_i32_0 : i32, i32
  }
  func.func @transform_2(%arg0: i32) -> (i32, i32) {
    %c0_i32 = arith.constant 0 : i32
    %c0_i32_0 = arith.constant 0 : i32
    return %arg0, %c0_i32 : i32, i32
  }
  func.func @transform_3(%arg0: i32) -> (i32, i32, i32) {
    %c0_i32 = arith.constant 0 : i32
    %c0_i32_0 = arith.constant 0 : i32
    %c0_i32_1 = arith.constant 0 : i32
    %c0_i32_2 = arith.constant 0 : i32
    return %c0_i32, %c0_i32_0, %c0_i32_1 : i32, i32, i32
  }
  func.func @transform_4(%arg0: i32) -> (i32, i32) {
    %c0_i32 = arith.constant 0 : i32
    %c0_i32_0 = arith.constant 0 : i32
    %c0_i32_1 = arith.constant 0 : i32
    return %c0_i32, %c0_i32_0 : i32, i32
  }
  func.func @transform_5(%arg0: i32) -> (i32, i32, i32) {
    %c0_i32 = arith.constant 0 : i32
    %c0_i32_0 = arith.constant 0 : i32
    %c0_i32_1 = arith.constant 0 : i32
    %c0_i32_2 = arith.constant 0 : i32
    return %c0_i32, %c0_i32_0, %c0_i32_1 : i32, i32, i32
  }
  func.func @transform_6(%arg0: i32) -> (i32, i32, i32) {
    %c0_i32 = arith.constant 0 : i32
    %c0_i32_0 = arith.constant 0 : i32
    %c0_i32_1 = arith.constant 0 : i32
    %c0_i32_2 = arith.constant 0 : i32
    return %c0_i32, %c0_i32_0, %c0_i32_1 : i32, i32, i32
  }
  func.func @transform_7(%arg0: i32) -> (i32, i32) {
    %c0_i32 = arith.constant 0 : i32
    %c0_i32_0 = arith.constant 0 : i32
    %c0_i32_1 = arith.constant 0 : i32
    return %c0_i32, %c0_i32_0 : i32, i32
  }
  func.func @transform_8(%arg0: i32) -> (i32, i32, i32) {
    %c0_i32 = arith.constant 0 : i32
    %c0_i32_0 = arith.constant 0 : i32
    %c0_i32_1 = arith.constant 0 : i32
    %c0_i32_2 = arith.constant 0 : i32
    return %c0_i32, %c0_i32_0, %c0_i32_1 : i32, i32, i32
  }
  func.func @transform_9(%arg0: i32) -> (i32, i32) {
    %c0_i32 = arith.constant 0 : i32
    %c0_i32_0 = arith.constant 0 : i32
    %c0_i32_1 = arith.constant 0 : i32
    return %c0_i32, %c0_i32_0 : i32, i32
  }
  func.func @transform_10(%arg0: i32) -> (i32, i32) {
    %c0_i32 = arith.constant 0 : i32
    %c0_i32_0 = arith.constant 0 : i32
    %c0_i32_1 = arith.constant 0 : i32
    return %c0_i32, %c0_i32_0 : i32, i32
  }
  func.func @transform_11(%arg0: i32) -> (i32, i32) {
    %c0_i32 = arith.constant 0 : i32
    %c0_i32_0 = arith.constant 0 : i32
    %c0_i32_1 = arith.constant 0 : i32
    return %c0_i32, %c0_i32_0 : i32, i32
  }
  func.func @transform_12(%arg0: i32) -> (i32, i32) {
    %c0_i32 = arith.constant 0 : i32
    %c0_i32_0 = arith.constant 0 : i32
    %c0_i32_1 = arith.constant 0 : i32
    return %c0_i32, %c0_i32_0 : i32, i32
  }
  func.func @transform_13(%arg0: i32) -> (i32, i32) {
    %c0_i32 = arith.constant 0 : i32
    %c0_i32_0 = arith.constant 0 : i32
    return %arg0, %c0_i32 : i32, i32
  }
}

</mosaic_0001>

<llo_original>
// kernel: vit_forward.1
$region0: #{vit_forward.1}
  #allocation0 [shape = 'u32[]', space=smem, size = 0x4, offset = 0x4, fixed_abs, tag = 'smem constant byte address 0x4 - core index']
  #allocation1 [shape = 'u32[144,128]{1,0:T(1,128)}', space=vmem, size = 0x12000, scoped, tag = 'internal scratch']
  %s0 = inlined_call_operand.vmem [shape: f32[16,256], index: 0, kind: input, shape index: {}]
  %s1 = inlined_call_operand.vmem [shape: bf16[256,32], index: 1, kind: input, shape index: {}]
  %s2 = inlined_call_operand.vmem [shape: f32[16,32], index: 2, kind: input, shape index: {}]
  %s3 = inlined_call_operand.vmem [shape: bf16[2,32,96], index: 3, kind: input, shape index: {}]
  %s4 = inlined_call_operand.vmem [shape: f32[2,96], index: 4, kind: input, shape index: {}]
  %s5 = inlined_call_operand.vmem [shape: bf16[8,8,32], index: 5, kind: input, shape index: {}]
  %s6 = inlined_call_operand.vmem [shape: bf16[2,32,128], index: 6, kind: input, shape index: {}]
  %s7 = inlined_call_operand.vmem [shape: f32[2,128], index: 7, kind: input, shape index: {}]
  %s8 = inlined_call_operand.vmem [shape: bf16[2,128,32], index: 8, kind: input, shape index: {}]
  %s9 = inlined_call_operand.vmem [shape: f32[12,32], index: 9, kind: input, shape index: {}]
  %s10 = inlined_call_operand.vmem [shape: f32[2,32], index: 10, kind: input, shape index: {}]
  %s11 = inlined_call_operand.vmem [shape: bf16[32,128], index: 11, kind: input, shape index: {}]
  %s12 = inlined_call_operand.vmem [shape: f32[1,128], index: 12, kind: input, shape index: {}]
  %s13 = inlined_call_operand.vmem [shape: f32[16,128], index: 13, kind: output, shape index: {}]
  %s14 = sld [smem:[#allocation0]]
  $region85: #{vit_forward.1} parent=0
    _
  %s16 = ssub.s32 1, %s14
  %s17 = scalar_select 0, %s16, %s14
  loop: start=0, step=1, limit=4
  $region2: #{vit_forward.1} parent=0 // loop_pre_header
    _
  $region3: #{vit_forward.1} parent=0 // loop_header
    %s19 = sphi 0, %s23
    %p20 = scmp.ge.s32.totalorder %s19, 4
    %s29 = sphi 0, %s31
    %s32 = sphi 0, %s29
    %s33 = sphi 0, %s32
    %s49 = sphi 0, %s33
    %s53 = sphi 0, %s53
    %s55 = sphi 0, %s53
    %s56 = sphi 0, %s55
    %s70 = sphi 0, %s56
    %s76 = sphi 0, %s78
    %s79 = sphi 0, %s76
    %s80 = sphi 0, %s79
    %s96 = sphi 0, %s80
    %s100 = sphi 0, %s100
    %s102 = sphi 0, %s100
    %s103 = sphi 0, %s102
    %s117 = sphi 0, %s103
    %s121 = sphi 0, %s121
    %s123 = sphi 0, %s121
    %s124 = sphi 0, %s123
    %s138 = sphi 0, %s124
    %s142 = sphi 0, %s142
    %s144 = sphi 0, %s142
    %s145 = sphi 0, %s144
    %s159 = sphi 0, %s145
    %s163 = sphi 0, %s163
    %s165 = sphi 0, %s163
    %s166 = sphi 0, %s165
    %s180 = sphi 0, %s166
    %s184 = sphi 0, %s184
    %s186 = sphi 0, %s184
    %s187 = sphi 0, %s186
    %s201 = sphi 0, %s187
    %s205 = sphi 0, %s205
    %s207 = sphi 0, %s205
    %s208 = sphi 0, %s207
    %s222 = sphi 0, %s208
    %s226 = sphi 0, %s226
    %s228 = sphi 0, %s226
    %s229 = sphi 0, %s228
    %s243 = sphi 0, %s229
    %s247 = sphi 0, %s247
    %s249 = sphi 0, %s247
    %s250 = sphi 0, %s249
    %s264 = sphi 0, %s250
    %s268 = sphi 0, %s268
    %s270 = sphi 0, %s268
    %s271 = sphi 0, %s270
    %s285 = sphi 0, %s271
    %s289 = sphi 0, %s289
    %s291 = sphi 0, %s289
    %s292 = sphi 0, %s291
    %s306 = sphi 0, %s292
    %s312 = sphi 0, %s314
    %s315 = sphi 0, %s312
    %s316 = sphi 0, %s315
    %s332 = sphi 0, %s316
  $region4: #{vit_forward.1} parent=0 // loop_header_branch
    %22 = sbr.rel (%p20) target = $region8
  $region5: #{vit_forward.1} parent=0 // loop_body
    %s24 = ssub.s32 %s19, 1
    %s25 = ssub.s32 %s19, 2
    %s26 = sadd.s32 %s19, 1
    %s27 = ssub.s32 %s19, %s26
    %p28 = scmp.eq.s32.totalorder %s27, 0
    %s30 = sadd.s32 %s29, 1
    %s31 = scalar_select %p28, %s29, %s30
    %p34 = pneg %p28
    %p35 = scmp.eq.s32.totalorder %s19, 1
    %p36 = por %p34, %p35
    %p37 = scmp.ne.s32.totalorder %s29, %s32
    %p38 = scmp.eq.s32.totalorder %s19, 0
    %p39 = por %p37, %p38
    %p40 = scmp.ne.s32.totalorder %s29, %s32
    %p41 = scmp.eq.s32.totalorder %s24, 1
    %p42 = por %p40, %p41
    %p43 = scmp.ne.s32.totalorder %s32, %s33
    %p44 = scmp.eq.s32.totalorder %s24, 0
    %p45 = por %p43, %p44
    %p46 = scmp.ne.s32.totalorder %s32, %s33
    %p47 = scmp.eq.s32.totalorder %s25, 1
    %p48 = por %p46, %p47
    %p50 = scmp.ne.s32.totalorder %s33, %s49
    %p51 = scmp.eq.s32.totalorder %s25, 0
    %p52 = por %p50, %p51
    %s54 = sadd.s32 %s53, 1
    %p57 = scmp.eq.s32.totalorder %s19, 1
    %p58 = scmp.ne.s32.totalorder %s53, %s55
    %p59 = scmp.eq.s32.totalorder %s19, 0
    %p60 = por %p58, %p59
    %p61 = scmp.ne.s32.totalorder %s53, %s55
    %p62 = scmp.eq.s32.totalorder %s24, 1
    %p63 = por %p61, %p62
    %p64 = scmp.ne.s32.totalorder %s55, %s56
    %p65 = scmp.eq.s32.totalorder %s24, 0
    %p66 = por %p64, %p65
    %p67 = scmp.ne.s32.totalorder %s55, %s56
    %p68 = scmp.eq.s32.totalorder %s25, 1
    %p69 = por %p67, %p68
    %p71 = scmp.ne.s32.totalorder %s56, %s70
    %p72 = scmp.eq.s32.totalorder %s25, 0
    %p73 = por %p71, %p72
    %s74 = ssub.s32 %s19, %s26
    %p75 = scmp.eq.s32.totalorder %s74, 0
    %s77 = sadd.s32 %s76, 1
    %s78 = scalar_select %p75, %s76, %s77
    %p81 = pneg %p75
    %p82 = scmp.eq.s32.totalorder %s19, 1
    %p83 = por %p81, %p82
    %p84 = scmp.ne.s32.totalorder %s76, %s79
    %p85 = scmp.eq.s32.totalorder %s19, 0
    %p86 = por %p84, %p85
    %p87 = scmp.ne.s32.totalorder %s76, %s79
    %p88 = scmp.eq.s32.totalorder %s24, 1
    %p89 = por %p87, %p88
    %p90 = scmp.ne.s32.totalorder %s79, %s80
    %p91 = scmp.eq.s32.totalorder %s24, 0
    %p92 = por %p90, %p91
    %p93 = scmp.ne.s32.totalorder %s79, %s80
    %p94 = scmp.eq.s32.totalorder %s25, 1
    %p95 = por %p93, %p94
    %p97 = scmp.ne.s32.totalorder %s80, %s96
    %p98 = scmp.eq.s32.totalorder %s25, 0
    %p99 = por %p97, %p98
    %s101 = sadd.s32 %s100, 1
    %p104 = scmp.eq.s32.totalorder %s19, 1
    %p105 = scmp.ne.s32.totalorder %s100, %s102
    %p106 = scmp.eq.s32.totalorder %s19, 0
    %p107 = por %p105, %p106
    %p108 = scmp.ne.s32.totalorder %s100, %s102
    %p109 = scmp.eq.s32.totalorder %s24, 1
    %p110 = por %p108, %p109
    %p111 = scmp.ne.s32.totalorder %s102, %s103
    %p112 = scmp.eq.s32.totalorder %s24, 0
    %p113 = por %p111, %p112
    %p114 = scmp.ne.s32.totalorder %s102, %s103
    %p115 = scmp.eq.s32.totalorder %s25, 1
    %p116 = por %p114, %p115
    %p118 = scmp.ne.s32.totalorder %s103, %s117
    %p119 = scmp.eq.s32.totalorder %s25, 0
    %p120 = por %p118, %p119
    %s122 = sadd.s32 %s121, 1
    %p125 = scmp.eq.s32.totalorder %s19, 1
    %p126 = scmp.ne.s32.totalorder %s121, %s123
    %p127 = scmp.eq.s32.totalorder %s19, 0
    %p128 = por %p126, %p127
    %p129 = scmp.ne.s32.totalorder %s121, %s123
    %p130 = scmp.eq.s32.totalorder %s24, 1
    %p131 = por %p129, %p130
    %p132 = scmp.ne.s32.totalorder %s123, %s124
    %p133 = scmp.eq.s32.totalorder %s24, 0
    %p134 = por %p132, %p133
    %p135 = scmp.ne.s32.totalorder %s123, %s124
    %p136 = scmp.eq.s32.totalorder %s25, 1
    %p137 = por %p135, %p136
    %p139 = scmp.ne.s32.totalorder %s124, %s138
    %p140 = scmp.eq.s32.totalorder %s25, 0
    %p141 = por %p139, %p140
    %s143 = sadd.s32 %s142, 1
    %p146 = scmp.eq.s32.totalorder %s19, 1
    %p147 = scmp.ne.s32.totalorder %s142, %s144
    %p148 = scmp.eq.s32.totalorder %s19, 0
    %p149 = por %p147, %p148
    %p150 = scmp.ne.s32.totalorder %s142, %s144
    %p151 = scmp.eq.s32.totalorder %s24, 1
    %p152 = por %p150, %p151
    %p153 = scmp.ne.s32.totalorder %s144, %s145
    %p154 = scmp.eq.s32.totalorder %s24, 0
    %p155 = por %p153, %p154
    %p156 = scmp.ne.s32.totalorder %s144, %s145
    %p157 = scmp.eq.s32.totalorder %s25, 1
    %p158 = por %p156, %p157
    %p160 = scmp.ne.s32.totalorder %s145, %s159
    %p161 = scmp.eq.s32.totalorder %s25, 0
    %p162 = por %p160, %p161
    %s164 = sadd.s32 %s163, 1
    %p167 = scmp.eq.s32.totalorder %s19, 1
    %p168 = scmp.ne.s32.totalorder %s163, %s165
    %p169 = scmp.eq.s32.totalorder %s19, 0
    %p170 = por %p168, %p169
    %p171 = scmp.ne.s32.totalorder %s163, %s165
    %p172 = scmp.eq.s32.totalorder %s24, 1
    %p173 = por %p171, %p172
    %p174 = scmp.ne.s32.totalorder %s165, %s166
    %p175 = scmp.eq.s32.totalorder %s24, 0
    %p176 = por %p174, %p175
    %p177 = scmp.ne.s32.totalorder %s165, %s166
    %p178 = scmp.eq.s32.totalorder %s25, 1
    %p179 = por %p177, %p178
    %p181 = scmp.ne.s32.totalorder %s166, %s180
    %p182 = scmp.eq.s32.totalorder %s25, 0
    %p183 = por %p181, %p182
    %s185 = sadd.s32 %s184, 1
    %p188 = scmp.eq.s32.totalorder %s19, 1
    %p189 = scmp.ne.s32.totalorder %s184, %s186
    %p190 = scmp.eq.s32.totalorder %s19, 0
    %p191 = por %p189, %p190
    %p192 = scmp.ne.s32.totalorder %s184, %s186
    %p193 = scmp.eq.s32.totalorder %s24, 1
    %p194 = por %p192, %p193
    %p195 = scmp.ne.s32.totalorder %s186, %s187
    %p196 = scmp.eq.s32.totalorder %s24, 0
    %p197 = por %p195, %p196
    %p198 = scmp.ne.s32.totalorder %s186, %s187
    %p199 = scmp.eq.s32.totalorder %s25, 1
    %p200 = por %p198, %p199
    %p202 = scmp.ne.s32.totalorder %s187, %s201
    %p203 = scmp.eq.s32.totalorder %s25, 0
    %p204 = por %p202, %p203
    %s206 = sadd.s32 %s205, 1
    %p209 = scmp.eq.s32.totalorder %s19, 1
    %p210 = scmp.ne.s32.totalorder %s205, %s207
    %p211 = scmp.eq.s32.totalorder %s19, 0
    %p212 = por %p210, %p211
    %p213 = scmp.ne.s32.totalorder %s205, %s207
    %p214 = scmp.eq.s32.totalorder %s24, 1
    %p215 = por %p213, %p214
    %p216 = scmp.ne.s32.totalorder %s207, %s208
    %p217 = scmp.eq.s32.totalorder %s24, 0
    %p218 = por %p216, %p217
    %p219 = scmp.ne.s32.totalorder %s207, %s208
    %p220 = scmp.eq.s32.totalorder %s25, 1
    %p221 = por %p219, %p220
    %p223 = scmp.ne.s32.totalorder %s208, %s222
    %p224 = scmp.eq.s32.totalorder %s25, 0
    %p225 = por %p223, %p224
    %s227 = sadd.s32 %s226, 1
    %p230 = scmp.eq.s32.totalorder %s19, 1
    %p231 = scmp.ne.s32.totalorder %s226, %s228
    %p232 = scmp.eq.s32.totalorder %s19, 0
    %p233 = por %p231, %p232
    %p234 = scmp.ne.s32.totalorder %s226, %s228
    %p235 = scmp.eq.s32.totalorder %s24, 1
    %p236 = por %p234, %p235
    %p237 = scmp.ne.s32.totalorder %s228, %s229
    %p238 = scmp.eq.s32.totalorder %s24, 0
    %p239 = por %p237, %p238
    %p240 = scmp.ne.s32.totalorder %s228, %s229
    %p241 = scmp.eq.s32.totalorder %s25, 1
    %p242 = por %p240, %p241
    %p244 = scmp.ne.s32.totalorder %s229, %s243
    %p245 = scmp.eq.s32.totalorder %s25, 0
    %p246 = por %p244, %p245
    %s248 = sadd.s32 %s247, 1
    %p251 = scmp.eq.s32.totalorder %s19, 1
    %p252 = scmp.ne.s32.totalorder %s247, %s249
    %p253 = scmp.eq.s32.totalorder %s19, 0
    %p254 = por %p252, %p253
    %p255 = scmp.ne.s32.totalorder %s247, %s249
    %p256 = scmp.eq.s32.totalorder %s24, 1
    %p257 = por %p255, %p256
    %p258 = scmp.ne.s32.totalorder %s249, %s250
    %p259 = scmp.eq.s32.totalorder %s24, 0
    %p260 = por %p258, %p259
    %p261 = scmp.ne.s32.totalorder %s249, %s250
    %p262 = scmp.eq.s32.totalorder %s25, 1
    %p263 = por %p261, %p262
    %p265 = scmp.ne.s32.totalorder %s250, %s264
    %p266 = scmp.eq.s32.totalorder %s25, 0
    %p267 = por %p265, %p266
    %s269 = sadd.s32 %s268, 1
    %p272 = scmp.eq.s32.totalorder %s19, 1
    %p273 = scmp.ne.s32.totalorder %s268, %s270
    %p274 = scmp.eq.s32.totalorder %s19, 0
    %p275 = por %p273, %p274
    %p276 = scmp.ne.s32.totalorder %s268, %s270
    %p277 = scmp.eq.s32.totalorder %s24, 1
    %p278 = por %p276, %p277
    %p279 = scmp.ne.s32.totalorder %s270, %s271
    %p280 = scmp.eq.s32.totalorder %s24, 0
    %p281 = por %p279, %p280
    %p282 = scmp.ne.s32.totalorder %s270, %s271
    %p283 = scmp.eq.s32.totalorder %s25, 1
    %p284 = por %p282, %p283
    %p286 = scmp.ne.s32.totalorder %s271, %s285
    %p287 = scmp.eq.s32.totalorder %s25, 0
    %p288 = por %p286, %p287
    %s290 = sadd.s32 %s289, 1
    %p293 = scmp.eq.s32.totalorder %s19, 1
    %p294 = scmp.ne.s32.totalorder %s289, %s291
    %p295 = scmp.eq.s32.totalorder %s19, 0
    %p296 = por %p294, %p295
    %p297 = scmp.ne.s32.totalorder %s289, %s291
    %p298 = scmp.eq.s32.totalorder %s24, 1
    %p299 = por %p297, %p298
    %p300 = scmp.ne.s32.totalorder %s291, %s292
    %p301 = scmp.eq.s32.totalorder %s24, 0
    %p302 = por %p300, %p301
    %p303 = scmp.ne.s32.totalorder %s291, %s292
    %p304 = scmp.eq.s32.totalorder %s25, 1
    %p305 = por %p303, %p304
    %p307 = scmp.ne.s32.totalorder %s292, %s306
    %p308 = scmp.eq.s32.totalorder %s25, 0
    %p309 = por %p307, %p308
    %s310 = ssub.s32 %s19, %s26
    %p311 = scmp.eq.s32.totalorder %s310, 0
    %s313 = sadd.s32 %s312, 1
    %s314 = scalar_select %p311, %s312, %s313
    %p317 = pneg %p311
    %p318 = scmp.eq.s32.totalorder %s19, 1
    %p319 = por %p317, %p318
    %p320 = scmp.ne.s32.totalorder %s312, %s315
    %p321 = scmp.eq.s32.totalorder %s19, 0
    %p322 = por %p320, %p321
    %p323 = scmp.ne.s32.totalorder %s312, %s315
    %p324 = scmp.eq.s32.totalorder %s24, 1
    %p325 = por %p323, %p324
    %p326 = scmp.ne.s32.totalorder %s315, %s316
    %p327 = scmp.eq.s32.totalorder %s24, 0
    %p328 = por %p326, %p327
    %p329 = scmp.ne.s32.totalorder %s315, %s316
    %p330 = scmp.eq.s32.totalorder %s25, 1
    %p331 = por %p329, %p330
    %p333 = scmp.ne.s32.totalorder %s316, %s332
    %p334 = scmp.eq.s32.totalorder %s25, 0
    %p335 = por %p333, %p334
    %p336 = scmp.le.s32.totalorder 1, %s19
    %p337 = scmp.lt.s32.totalorder %s19, 3
    %p338 = pnand %p336, %p337
    %p339 = pneg %p338
    // Predicated region
    $region9: #{vit_forward.1} parent=5 // pred_check
      _
    $region10: #{vit_forward.1} parent=5 // pred_check_branch
      %341 = sbr.rel (%p338) target = $region12
    $region11: #{vit_forward.1} parent=5 // pred_region
      %s342 = ssub.s32 %s19, 1
      // Predicated region
      $region13: #{vit_forward.1} parent=11 // pred_check
        %p343 = pneg %p66
      $region14: #{vit_forward.1} parent=11 // pred_check_branch
        %345 = sbr.rel (%p343) target = $region16
      $region15: #{vit_forward.1} parent=11 // pred_region
        _
      $region16: #{vit_forward.1} parent=11 // pred_fallthru
        _
      // Predicated region
      $region17: #{vit_forward.1} parent=11 // pred_check
        %p346 = pneg %p113
      $region18: #{vit_forward.1} parent=11 // pred_check_branch
        %348 = sbr.rel (%p346) target = $region20
      $region19: #{vit_forward.1} parent=11 // pred_region
        _
      $region20: #{vit_forward.1} parent=11 // pred_fallthru
        _
      // Predicated region
      $region21: #{vit_forward.1} parent=11 // pred_check
        %p349 = pneg %p134
      $region22: #{vit_forward.1} parent=11 // pred_check_branch
        %351 = sbr.rel (%p349) target = $region24
      $region23: #{vit_forward.1} parent=11 // pred_region
        _
      $region24: #{vit_forward.1} parent=11 // pred_fallthru
        _
      // Predicated region
      $region25: #{vit_forward.1} parent=11 // pred_check
        %p352 = pneg %p155
      $region26: #{vit_forward.1} parent=11 // pred_check_branch
        %354 = sbr.rel (%p352) target = $region28
      $region27: #{vit_forward.1} parent=11 // pred_region
        _
      $region28: #{vit_forward.1} parent=11 // pred_fallthru
        _
      // Predicated region
      $region29: #{vit_forward.1} parent=11 // pred_check
        %p355 = pneg %p176
      $region30: #{vit_forward.1} parent=11 // pred_check_branch
        %357 = sbr.rel (%p355) target = $region32
      $region31: #{vit_forward.1} parent=11 // pred_region
        _
      $region32: #{vit_forward.1} parent=11 // pred_fallthru
        _
      // Predicated region
      $region33: #{vit_forward.1} parent=11 // pred_check
        %p358 = pneg %p197
      $region34: #{vit_forward.1} parent=11 // pred_check_branch
        %360 = sbr.rel (%p358) target = $region36
      $region35: #{vit_forward.1} parent=11 // pred_region
        _
      $region36: #{vit_forward.1} parent=11 // pred_fallthru
        _
      // Predicated region
      $region37: #{vit_forward.1} parent=11 // pred_check
        %p361 = pneg %p218
      $region38: #{vit_forward.1} parent=11 // pred_check_branch
        %363 = sbr.rel (%p361) target = $region40
      $region39: #{vit_forward.1} parent=11 // pred_region
        _
      $region40: #{vit_forward.1} parent=11 // pred_fallthru
        _
      // Predicated region
      $region41: #{vit_forward.1} parent=11 // pred_check
        %p364 = pneg %p239
      $region42: #{vit_forward.1} parent=11 // pred_check_branch
        %366 = sbr.rel (%p364) target = $region44
      $region43: #{vit_forward.1} parent=11 // pred_region
        _
      $region44: #{vit_forward.1} parent=11 // pred_fallthru
        _
      // Predicated region
      $region45: #{vit_forward.1} parent=11 // pred_check
        %p367 = pneg %p260
      $region46: #{vit_forward.1} parent=11 // pred_check_branch
        %369 = sbr.rel (%p367) target = $region48
      $region47: #{vit_forward.1} parent=11 // pred_region
        _
      $region48: #{vit_forward.1} parent=11 // pred_fallthru
        _
      // Predicated region
      $region49: #{vit_forward.1} parent=11 // pred_check
        %p370 = pneg %p281
      $region50: #{vit_forward.1} parent=11 // pred_check_branch
        %372 = sbr.rel (%p370) target = $region52
      $region51: #{vit_forward.1} parent=11 // pred_region
        _
      $region52: #{vit_forward.1} parent=11 // pred_fallthru
        _
      // Predicated region
      $region53: #{vit_forward.1} parent=11 // pred_check
        %p373 = pneg %p302
      $region54: #{vit_forward.1} parent=11 // pred_check_branch
        %375 = sbr.rel (%p373) target = $region56
      $region55: #{vit_forward.1} parent=11 // pred_region
        _
      $region56: #{vit_forward.1} parent=11 // pred_fallthru
        _
    $region12: #{vit_forward.1} parent=5 // pred_fallthru
      _
    %p376 = scmp.lt.s32.totalorder %s19, 2
    // Predicated region
    $region57: #{vit_forward.1} parent=5 // pred_check
      %p377 = pneg %p376
    $region58: #{vit_forward.1} parent=5 // pred_check_branch
      %379 = sbr.rel (%p377) target = $region60
    $region59: #{vit_forward.1} parent=5 // pred_region
      // Predicated region
      $region61: #{vit_forward.1} parent=59 // pred_check
        %p380 = pneg %p39
      $region62: #{vit_forward.1} parent=59 // pred_check_branch
        %382 = sbr.rel (%p380) target = $region64
      $region63: #{vit_forward.1} parent=59 // pred_region
        %p383 = scmp.lt.s32.totalorder %s19, 1
        %s384 = scalar_select %p383, %s19, 1
        %s385 = smul.addr %s384, 2
        %s386 = smul.addr %s385, 8
        %s387 = scalar_lea.vmem %s0, %s386
      $region64: #{vit_forward.1} parent=59 // pred_fallthru
        _
      // Predicated region
      $region65: #{vit_forward.1} parent=59 // pred_check
        %p388 = pneg %p86
      $region66: #{vit_forward.1} parent=59 // pred_check_branch
        %390 = sbr.rel (%p388) target = $region68
      $region67: #{vit_forward.1} parent=59 // pred_region
        %p391 = scmp.lt.s32.totalorder %s19, 1
        %s392 = scalar_select %p391, %s19, 1
        %s393 = smul.addr %s392, 8
        %s394 = scalar_lea.vmem %s2, %s393
      $region68: #{vit_forward.1} parent=59 // pred_fallthru
        _
    $region60: #{vit_forward.1} parent=5 // pred_fallthru
      _
    %p395 = scmp.le.s32.totalorder 1, %s19
    %p396 = scmp.lt.s32.totalorder %s19, 3
    %p397 = pnand %p395, %p396
    %p398 = pneg %p397
    // Predicated region
    $region69: #{vit_forward.1} parent=5 // pred_check
      _
    $region70: #{vit_forward.1} parent=5 // pred_check_branch
      %400 = sbr.rel (%p397) target = $region72
    $region71: #{vit_forward.1} parent=5 // pred_region
      %s401 = ssub.s32 %s19, 1
      %p402 = scmp.lt.s32.totalorder %s24, 1
      %s403 = scalar_select %p402, %s24, 1
      %s404 = smul.addr %s403, 2
      %s405 = smul.addr %s404, 8
      %s406 = scalar_lea.vmem %s0, %s405
      %p407 = pneg %p45
      %p408 = pneg %p42
      %p409 = pneg %p66
      %p410 = pneg %p63
      %p411 = scmp.lt.s32.totalorder %s24, 1
      %s412 = scalar_select %p411, %s24, 1
      %s413 = smul.addr %s412, 8
      %s414 = scalar_lea.vmem %s2, %s413
      %p415 = pneg %p92
      %p416 = pneg %p89
      %p417 = pneg %p113
      %p418 = pneg %p110
      %p419 = pneg %p134
      %p420 = pneg %p131
      %p421 = pneg %p155
      %p422 = pneg %p152
      %p423 = pneg %p176
      %p424 = pneg %p173
      %p425 = pneg %p197
      %p426 = pneg %p194
      %p427 = pneg %p218
      %p428 = pneg %p215
      %p429 = pneg %p239
      %p430 = pneg %p236
      %p431 = pneg %p260
      %p432 = pneg %p257
      %p433 = pneg %p281
      %p434 = pneg %p278
      %p435 = pneg %p302
      %p436 = pneg %p299
      %p437 = pneg %p328
      %p438 = pneg %p325
      %p439 = scmp.lt.s32.totalorder %s24, 1
      %s440 = scalar_select %p439, %s24, 1
      %s441 = smul.addr %s440, 8
      %s442 = scalar_lea.vmem %s13, %s441
      %p443 = scmp.lt.s32.totalorder %s24, 1
      %s444 = scalar_select %p443, %s24, 1
      %s445 = smul.addr %s444, 2
      %s446 = smul.addr %s445, 8
      %s447 = scalar_lea.vmem %s0, %s446
      %p448 = scmp.lt.s32.totalorder %s24, 1
      %s449 = scalar_select %p448, %s24, 1
      %s450 = smul.addr %s449, 8
      %s451 = scalar_lea.vmem %s2, %s450
      %p452 = scmp.lt.s32.totalorder %s24, 1
      %s453 = scalar_select %p452, %s24, 1
      %s454 = smul.addr %s453, 8
      %s455 = scalar_lea.vmem %s13, %s454
      %v457 = vlaneseq
      %v458 = vshrl.u32 %v457, 7
      %v459 = vlaneseq
      %v460 = vand.u32 %v459, 127
      %v461 = vshra.s32 %v458, 3
      %v462 = vshra.s32 %v460, 3
      %vm463 = vcmp.eq.s32.totalorder %v461, %v462
      %v464 = vand.u32 %v460, 7
      %vm465 = vcmp.lt.s32.totalorder %v464, 5
      %vm466 = vmand %vm463, %vm465
      %v467 = vsel %vm466, 0.0, -1e+30
      %v468 = vld [vmem:[%s447] sm:$0xff]
      %v469 = vld [vmem:[%s447 + $0x8] sm:$0xff]
      %v470 = vpack.c.bf16 %v468, %v468
      %v471 = vpack.c.bf16 %v469, %v469
      %v472 = vld [vmem:[%s1] sm:$0xf]
      %v473 = vld [vmem:[%s1 + $0x4] sm:$0xf]
      %v474 = vld [vmem:[%s1 + $0x8] sm:$0xf]
      %v475 = vld [vmem:[%s1 + $0xc] sm:$0xf]
      %v476 = vld [vmem:[%s1 + $0x10] sm:$0xf]
      %v477 = vld [vmem:[%s1 + $0x14] sm:$0xf]
      %v478 = vld [vmem:[%s1 + $0x18] sm:$0xf]
      %v479 = vld [vmem:[%s1 + $0x1c] sm:$0xf]
      %v480 = vld [vmem:[%s1 + $0x20] sm:$0xf]
      %v481 = vld [vmem:[%s1 + $0x24] sm:$0xf]
      %v482 = vld [vmem:[%s1 + $0x28] sm:$0xf]
      %v483 = vld [vmem:[%s1 + $0x2c] sm:$0xf]
      %v484 = vld [vmem:[%s1 + $0x30] sm:$0xf]
      %v485 = vld [vmem:[%s1 + $0x34] sm:$0xf]
      %v486 = vld [vmem:[%s1 + $0x38] sm:$0xf]
      %v487 = vld [vmem:[%s1 + $0x3c] sm:$0xf]
      %v488 = vld [vmem:[%s1 + $0x40] sm:$0xf]
      %v489 = vld [vmem:[%s1 + $0x44] sm:$0xf]
      %v490 = vld [vmem:[%s1 + $0x48] sm:$0xf]
      %v491 = vld [vmem:[%s1 + $0x4c] sm:$0xf]
      %v492 = vld [vmem:[%s1 + $0x50] sm:$0xf]
      %v493 = vld [vmem:[%s1 + $0x54] sm:$0xf]
      %v494 = vld [vmem:[%s1 + $0x58] sm:$0xf]
      %v495 = vld [vmem:[%s1 + $0x5c] sm:$0xf]
      %v496 = vld [vmem:[%s1 + $0x60] sm:$0xf]
      %v497 = vld [vmem:[%s1 + $0x64] sm:$0xf]
      %v498 = vld [vmem:[%s1 + $0x68] sm:$0xf]
      %v499 = vld [vmem:[%s1 + $0x6c] sm:$0xf]
      %v500 = vld [vmem:[%s1 + $0x70] sm:$0xf]
      %v501 = vld [vmem:[%s1 + $0x74] sm:$0xf]
      %v502 = vld [vmem:[%s1 + $0x78] sm:$0xf]
      %v503 = vld [vmem:[%s1 + $0x7c] sm:$0xf]
      %v504 = vld [vmem:[%s451] sm:$0xff]
      %v537 = vunpack.c.l.b16 %v472
      %v538 = vunpack.c.l.b16 %v473
      %v539 = vunpack.c.l.b16 %v474
      %v540 = vunpack.c.l.b16 %v475
      %v541 = vunpack.c.l.b16 %v476
      %v542 = vunpack.c.l.b16 %v477
      %v543 = vunpack.c.l.b16 %v478
      %v544 = vunpack.c.l.b16 %v479
      %v545 = vunpack.c.l.b16 %v480
      %v546 = vunpack.c.l.b16 %v481
      %v547 = vunpack.c.l.b16 %v482
      %v548 = vunpack.c.l.b16 %v483
      %v549 = vunpack.c.l.b16 %v484
      %v550 = vunpack.c.l.b16 %v485
      %v551 = vunpack.c.l.b16 %v486
      %v552 = vunpack.c.l.b16 %v487
      %v553 = vunpack.c.l.b16 %v488
      %v554 = vunpack.c.l.b16 %v489
      %v555 = vunpack.c.l.b16 %v490
      %v556 = vunpack.c.l.b16 %v491
      %v557 = vunpack.c.l.b16 %v492
      %v558 = vunpack.c.l.b16 %v493
      %v559 = vunpack.c.l.b16 %v494
      %v560 = vunpack.c.l.b16 %v495
      %v561 = vunpack.c.l.b16 %v496
      %v562 = vunpack.c.l.b16 %v497
      %v563 = vunpack.c.l.b16 %v498
      %v564 = vunpack.c.l.b16 %v499
      %v565 = vunpack.c.l.b16 %v500
      %v566 = vunpack.c.l.b16 %v501
      %v567 = vunpack.c.l.b16 %v502
      %v568 = vunpack.c.l.b16 %v503
      %v569 = vpack.c.b16 %v538, %v537
      %v570 = vpack.c.b16 %v540, %v539
      %v571 = vpack.c.b16 %v542, %v541
      %v572 = vpack.c.b16 %v544, %v543
      %v573 = vpack.c.b16 %v546, %v545
      %v574 = vpack.c.b16 %v548, %v547
      %v575 = vpack.c.b16 %v550, %v549
      %v576 = vpack.c.b16 %v552, %v551
      %v577 = vpack.c.b16 %v554, %v553
      %v578 = vpack.c.b16 %v556, %v555
      %v579 = vpack.c.b16 %v558, %v557
      %v580 = vpack.c.b16 %v560, %v559
      %v581 = vpack.c.b16 %v562, %v561
      %v582 = vpack.c.b16 %v564, %v563
      %v583 = vpack.c.b16 %v566, %v565
      %v584 = vpack.c.b16 %v568, %v567
      %601 = vmatprep.subr.bf16.mxu0 0
      %602 = vmatpush1.bf16.msra.mxu0 %v576
      %603 = vmatprep.subr.bf16.mxu0 0
      %604 = vmatpush1.bf16.msra.mxu0 %v575
      %605 = vmatprep.subr.bf16.mxu0 0
      %606 = vmatpush1.bf16.msra.mxu0 %v574
      %607 = vmatprep.subr.bf16.mxu0 0
      %608 = vmatpush1.bf16.msra.mxu0 %v573
      %609 = vmatprep.subr.bf16.mxu0 0
      %610 = vmatpush1.bf16.msra.mxu0 %v572
      %611 = vmatprep.subr.bf16.mxu0 0
      %612 = vmatpush1.bf16.msra.mxu0 %v571
      %613 = vmatprep.subr.bf16.mxu0 0
      %614 = vmatpush1.bf16.msra.mxu0 %v570
      %615 = vmatprep.subr.bf16.mxu0 0
      %616 = vmatpush1.bf16.msra.mxu0 %v569
      %617 = vmatprep.subr.bf16.mxu0 0
      %618 = vmatpush2.bf16.msra.mxu0 %v584
      %619 = vmatprep.subr.bf16.mxu0 0
      %620 = vmatpush2.bf16.msra.mxu0 %v583
      %621 = vmatprep.subr.bf16.mxu0 0
      %622 = vmatpush2.bf16.msra.mxu0 %v582
      %623 = vmatprep.subr.bf16.mxu0 0
      %624 = vmatpush2.bf16.msra.mxu0 %v581
      %625 = vmatprep.subr.bf16.mxu0 0
      %626 = vmatpush2.bf16.msra.mxu0 %v580
      %627 = vmatprep.subr.bf16.mxu0 0
      %628 = vmatpush2.bf16.msra.mxu0 %v579
      %629 = vmatprep.subr.bf16.mxu0 0
      %630 = vmatpush2.bf16.msra.mxu0 %v578
      %631 = vmatprep.subr.bf16.mxu0 0
      %632 = vmatpush2.bf16.msra.mxu0 %v577
      %633 = vmatprep.mubr.bf16.mxu0 %v471
      %634 = vmatmul.mubr.bf16.gmra.mxu0 %v470
      %v635 = vpop.f32.mrf.mxu0
      %v636 = vadd.f32 %v504, %v635
      %v637 = vpop.f32.mrf.mxu0
      %v638 = vpop.f32.mrf.mxu0
      %v639 = vpop.f32.mrf.mxu0
      %640 = vdwg.mxu0
      %v641 = vld [vmem:[%s9] sm:$0x1]
      %v642 = vld [vmem:[%s9 + $0x1] sm:$0x1]
      %v643 = vld [vmem:[%s9 + $0x2] sm:$0x1]
      %v644 = vld [vmem:[%s9 + $0x3] sm:$0x1]
      %v645 = vld [vmem:[%s9 + $0x4] sm:$0x1]
      %v646 = vld [vmem:[%s9 + $0x5] sm:$0x1]
      %vm647 = vcmask 261120
      %v648 = vsel %vm647, %v636, 0.0
      %649 = vadd.xlane.f32.xlu0 %v648
      %v650 = vpop.xlane.xlu0 %649
      %v651 = vrcp.pop 32.0
      %v652 = vmul.f32 %v650, %v651
      %v653 = vsub.f32 %v636, %v652
      %v654 = vmul.f32 %v653, %v653
      %v655 = vsel %vm647, %v654, 0.0
      %656 = vadd.xlane.f32.xlu0 %v655
      %v657 = vpop.xlane.xlu0 %656
      %v658 = vmul.f32 %v657, %v651
      %v659 = vadd.f32 %v658, 1e-06
      %v660 = vrsqrt.pop %v659
      %v661 = vmul.f32 %v653, %v660
      %v662 = vlaneseq
      %v663 = vshrl.u32 %v662, 7
      %v664 = vsub.s32 0, %v663
      %v665 = vrot.slane %v641, %v664
      %v666 = vmul.f32 %v661, %v665
      %v667 = vlaneseq
      %v668 = vshrl.u32 %v667, 7
      %v669 = vsub.s32 0, %v668
      %v670 = vrot.slane %v642, %v669
      %v671 = vadd.f32 %v666, %v670
      %v672 = vpack.c.bf16 %v671, %v671
      %v673 = vld [vmem:[%s3] sm:$0xf]
      %v674 = vld [vmem:[%s3 + $0x4] sm:$0xf]
      %v675 = vld [vmem:[%s3 + $0x8] sm:$0xf]
      %v676 = vld [vmem:[%s3 + $0xc] sm:$0xf]
      %v677 = vld [vmem:[%s4] sm:$0x1]
      %v678 = vlaneseq
      %v679 = vshrl.u32 %v678, 7
      %v680 = vsub.s32 0, %v679
      %v681 = vrot.slane %v677, %v680
      %v686 = vunpack.c.l.b16 %v673
      %v687 = vunpack.c.l.b16 %v674
      %v688 = vunpack.c.l.b16 %v675
      %v689 = vunpack.c.l.b16 %v676
      %v690 = vpack.c.b16 %v687, %v686
      %v691 = vpack.c.b16 %v689, %v688
      %v695 = vsel %vm647, %v672, 0
      %697 = vmatprep.subr.bf16.mxu0 0
      %698 = vmatpush1.bf16.msra.mxu0 0
      %699 = vmatprep.subr.bf16.mxu0 0
      %700 = vmatpush1.bf16.msra.mxu0 0
      %701 = vmatprep.subr.bf16.mxu0 0
      %702 = vmatpush1.bf16.msra.mxu0 0
      %703 = vmatprep.subr.bf16.mxu0 0
      %704 = vmatpush1.bf16.msra.mxu0 0
      %705 = vmatprep.subr.bf16.mxu0 0
      %706 = vmatpush1.bf16.msra.mxu0 0
      %707 = vmatprep.subr.bf16.mxu0 0
      %708 = vmatpush1.bf16.msra.mxu0 0
      %709 = vmatprep.subr.bf16.mxu0 0
      %710 = vmatpush1.bf16.msra.mxu0 %v691
      %711 = vmatprep.subr.bf16.mxu0 0
      %712 = vmatpush1.bf16.msra.mxu0 %v690
      %713 = vmatprep.subr.bf16.mxu0 0
      %714 = vmatpush2.bf16.msra.mxu0 0
      %715 = vmatprep.subr.bf16.mxu0 0
      %716 = vmatpush2.bf16.msra.mxu0 0
      %717 = vmatprep.subr.bf16.mxu0 0
      %718 = vmatpush2.bf16.msra.mxu0 0
      %719 = vmatprep.subr.bf16.mxu0 0
      %720 = vmatpush2.bf16.msra.mxu0 0
      %721 = vmatprep.subr.bf16.mxu0 0
      %722 = vmatpush2.bf16.msra.mxu0 0
      %723 = vmatprep.subr.bf16.mxu0 0
      %724 = vmatpush2.bf16.msra.mxu0 0
      %725 = vmatprep.subr.bf16.mxu0 0
      %726 = vmatpush2.bf16.msra.mxu0 0
      %727 = vmatprep.subr.bf16.mxu0 0
      %728 = vmatpush2.bf16.msra.mxu0 0
      %729 = vmatprep.mubr.bf16.mxu0 0
      %730 = vmatmul.mubr.bf16.gmra.mxu0 %v695
      %v731 = vpop.f32.mrf.mxu0
      %v732 = vadd.f32 %v681, %v731
      %v733 = vpop.f32.mrf.mxu0
      %v734 = vpop.f32.mrf.mxu0
      %v735 = vpop.f32.mrf.mxu0
      %736 = vdwg.mxu0
      %v737 = vpack.c.bf16 %v732, %v732
      %739 = vrot.lane.b32.xlu0 %v737, 96
      %v740 = vpop.permute.xlu0 %739
      %vm741 = vcmask 64512
      %v743 = vsel %vm741, %v737, 0
      %v746 = vsel %vm741, %v740, 0
      %748 = vmatprep.subr.bf16.mxu0 0
      %749 = vmatpush1.bf16.xpose.msra.mxu0 0
      %750 = vmatprep.subr.bf16.mxu0 0
      %751 = vmatpush1.bf16.xpose.msra.mxu0 0
      %752 = vmatprep.subr.bf16.mxu0 0
      %753 = vmatpush1.bf16.xpose.msra.mxu0 0
      %754 = vmatprep.subr.bf16.mxu0 0
      %755 = vmatpush1.bf16.xpose.msra.mxu0 0
      %756 = vmatprep.subr.bf16.mxu0 0
      %757 = vmatpush1.bf16.xpose.msra.mxu0 0
      %758 = vmatprep.subr.bf16.mxu0 0
      %759 = vmatpush1.bf16.xpose.msra.mxu0 0
      %760 = vmatprep.subr.bf16.mxu0 0
      %761 = vmatpush1.bf16.xpose.msra.mxu0 0
      %762 = vmatprep.subr.bf16.mxu0 0
      %763 = vmatpush1.bf16.xpose.msra.mxu0 %v746
      %764 = vmatprep.subr.bf16.mxu0 0
      %765 = vmatpush2.bf16.xpose.msra.mxu0 0
      %766 = vmatprep.subr.bf16.mxu0 0
      %767 = vmatpush2.bf16.xpose.msra.mxu0 0
      %768 = vmatprep.subr.bf16.mxu0 0
      %769 = vmatpush2.bf16.xpose.msra.mxu0 0
      %770 = vmatprep.subr.bf16.mxu0 0
      %771 = vmatpush2.bf16.xpose.msra.mxu0 0
      %772 = vmatprep.subr.bf16.mxu0 0
      %773 = vmatpush2.bf16.xpose.msra.mxu0 0
      %774 = vmatprep.subr.bf16.mxu0 0
      %775 = vmatpush2.bf16.xpose.msra.mxu0 0
      %776 = vmatprep.subr.bf16.mxu0 0
      %777 = vmatpush2.bf16.xpose.msra.mxu0 0
      %778 = vmatprep.subr.bf16.mxu0 0
      %779 = vmatpush2.bf16.xpose.msra.mxu0 0
      %780 = vmatprep.mubr.bf16.mxu0 0
      %781 = vmatmul.mubr.bf16.gmra.mxu0 %v743
      %v782 = vpop.f32.mrf.mxu0
      %v783 = vadd.f32 0.0, %v782
      %v784 = vpop.f32.mrf.mxu0
      %v785 = vpop.f32.mrf.mxu0
      %v786 = vpop.f32.mrf.mxu0
      %787 = vdwg.mxu0
      %v788 = vmul.f32 %v783, 0.35355338
      %v789 = vadd.f32 %v788, %v467
      %v790 = vsel %vm741, %v789, -inf
      %791 = vmax.xlane.f32.xlu0 %v790
      %v792 = vpop.xlane.xlu0 %791
      %v793 = vsub.f32 %v789, %v792
      %v794 = vmul.f32 %v793, 1.442695
      %v795 = vpow.pop %v794
      %v796 = vsel %vm741, %v795, 0.0
      %797 = vadd.xlane.f32.xlu0 %v796
      %v798 = vpop.xlane.xlu0 %797
      %v799 = vrcp.pop %v798
      %v800 = vmul.f32 %v795, %v799
      %v801 = vpack.c.bf16 %v800, %v800
      %802 = vrot.lane.b32.xlu0 %v737, 64
      %v803 = vpop.permute.xlu0 %802
      %v805 = vsel %vm741, %v801, 0
      %vm807 = vcmask 1043456
      %v809 = vsel %vm807, %v803, 0
      %811 = vmatprep.subr.bf16.mxu0 0
      %812 = vmatpush1.bf16.msra.mxu0 0
      %813 = vmatprep.subr.bf16.mxu0 0
      %814 = vmatpush1.bf16.msra.mxu0 0
      %815 = vmatprep.subr.bf16.mxu0 0
      %816 = vmatpush1.bf16.msra.mxu0 0
      %817 = vmatprep.subr.bf16.mxu0 0
      %818 = vmatpush1.bf16.msra.mxu0 0
      %819 = vmatprep.subr.bf16.mxu0 0
      %820 = vmatpush1.bf16.msra.mxu0 0
      %821 = vmatprep.subr.bf16.mxu0 0
      %822 = vmatpush1.bf16.msra.mxu0 0
      %823 = vmatprep.subr.bf16.mxu0 0
      %824 = vmatpush1.bf16.msra.mxu0 0
      %825 = vmatprep.subr.bf16.mxu0 0
      %826 = vmatpush1.bf16.msra.mxu0 %v809
      %827 = vmatprep.subr.bf16.mxu0 0
      %828 = vmatpush2.bf16.msra.mxu0 0
      %829 = vmatprep.subr.bf16.mxu0 0
      %830 = vmatpush2.bf16.msra.mxu0 0
      %831 = vmatprep.subr.bf16.mxu0 0
      %832 = vmatpush2.bf16.msra.mxu0 0
      %833 = vmatprep.subr.bf16.mxu0 0
      %834 = vmatpush2.bf16.msra.mxu0 0
      %835 = vmatprep.subr.bf16.mxu0 0
      %836 = vmatpush2.bf16.msra.mxu0 0
      %837 = vmatprep.subr.bf16.mxu0 0
      %838 = vmatpush2.bf16.msra.mxu0 0
      %839 = vmatprep.subr.bf16.mxu0 0
      %840 = vmatpush2.bf16.msra.mxu0 0
      %841 = vmatprep.subr.bf16.mxu0 0
      %842 = vmatpush2.bf16.msra.mxu0 0
      %843 = vmatprep.mubr.bf16.mxu0 0
      %844 = vmatmul.mubr.bf16.gmra.mxu0 %v805
      %v845 = vpop.f32.mrf.mxu0
      %v846 = vadd.f32 0.0, %v845
      %v847 = vpop.f32.mrf.mxu0
      %v848 = vpop.f32.mrf.mxu0
      %v849 = vpop.f32.mrf.mxu0
      %850 = vdwg.mxu0
      %v851 = vpack.c.bf16 %v846, %v846
      %v852 = vld [vmem:[%s5] sm:$0xf]
      %853 = vrot.lane.b32.xlu0 %v737, 120
      %v854 = vpop.permute.xlu0 %853
      %855 = vrot.lane.b32.xlu0 %v737, 88
      %v856 = vpop.permute.xlu0 %855
      %v858 = vsel %vm741, %v854, 0
      %v861 = vsel %vm741, %v856, 0
      %863 = vmatprep.subr.bf16.mxu0 0
      %864 = vmatpush1.bf16.xpose.msra.mxu0 0
      %865 = vmatprep.subr.bf16.mxu0 0
      %866 = vmatpush1.bf16.xpose.msra.mxu0 0
      %867 = vmatprep.subr.bf16.mxu0 0
      %868 = vmatpush1.bf16.xpose.msra.mxu0 0
      %869 = vmatprep.subr.bf16.mxu0 0
      %870 = vmatpush1.bf16.xpose.msra.mxu0 0
      %871 = vmatprep.subr.bf16.mxu0 0
      %872 = vmatpush1.bf16.xpose.msra.mxu0 0
      %873 = vmatprep.subr.bf16.mxu0 0
      %874 = vmatpush1.bf16.xpose.msra.mxu0 0
      %875 = vmatprep.subr.bf16.mxu0 0
      %876 = vmatpush1.bf16.xpose.msra.mxu0 0
      %877 = vmatprep.subr.bf16.mxu0 0
      %878 = vmatpush1.bf16.xpose.msra.mxu0 %v861
      %879 = vmatprep.subr.bf16.mxu0 0
      %880 = vmatpush2.bf16.xpose.msra.mxu0 0
      %881 = vmatprep.subr.bf16.mxu0 0
      %882 = vmatpush2.bf16.xpose.msra.mxu0 0
      %883 = vmatprep.subr.bf16.mxu0 0
      %884 = vmatpush2.bf16.xpose.msra.mxu0 0
      %885 = vmatprep.subr.bf16.mxu0 0
      %886 = vmatpush2.bf16.xpose.msra.mxu0 0
      %887 = vmatprep.subr.bf16.mxu0 0
      %888 = vmatpush2.bf16.xpose.msra.mxu0 0
      %889 = vmatprep.subr.bf16.mxu0 0
      %890 = vmatpush2.bf16.xpose.msra.mxu0 0
      %891 = vmatprep.subr.bf16.mxu0 0
      %892 = vmatpush2.bf16.xpose.msra.mxu0 0
      %893 = vmatprep.subr.bf16.mxu0 0
      %894 = vmatpush2.bf16.xpose.msra.mxu0 0
      %895 = vmatprep.mubr.bf16.mxu0 0
      %896 = vmatmul.mubr.bf16.gmra.mxu0 %v858
      %v897 = vpop.f32.mrf.mxu0
      %v898 = vadd.f32 0.0, %v897
      %v899 = vpop.f32.mrf.mxu0
      %v900 = vpop.f32.mrf.mxu0
      %v901 = vpop.f32.mrf.mxu0
      %902 = vdwg.mxu0
      %v903 = vmul.f32 %v898, 0.35355338
      %v904 = vadd.f32 %v903, %v467
      %v905 = vsel %vm741, %v904, -inf
      %906 = vmax.xlane.f32.xlu0 %v905
      %v907 = vpop.xlane.xlu0 %906
      %v908 = vsub.f32 %v904, %v907
      %v909 = vmul.f32 %v908, 1.442695
      %v910 = vpow.pop %v909
      %v911 = vsel %vm741, %v910, 0.0
      %912 = vadd.xlane.f32.xlu0 %v911
      %v913 = vpop.xlane.xlu0 %912
      %v914 = vrcp.pop %v913
      %v915 = vmul.f32 %v910, %v914
      %v916 = vpack.c.bf16 %v915, %v915
      %917 = vrot.lane.b32.xlu0 %v737, 56
      %v918 = vpop.permute.xlu0 %917
      %v920 = vsel %vm741, %v916, 0
      %v923 = vsel %vm807, %v918, 0
      %925 = vmatprep.subr.bf16.mxu0 0
      %926 = vmatpush1.bf16.msra.mxu0 0
      %927 = vmatprep.subr.bf16.mxu0 0
      %928 = vmatpush1.bf16.msra.mxu0 0
      %929 = vmatprep.subr.bf16.mxu0 0
      %930 = vmatpush1.bf16.msra.mxu0 0
      %931 = vmatprep.subr.bf16.mxu0 0
      %932 = vmatpush1.bf16.msra.mxu0 0
      %933 = vmatprep.subr.bf16.mxu0 0
      %934 = vmatpush1.bf16.msra.mxu0 0
      %935 = vmatprep.subr.bf16.mxu0 0
      %936 = vmatpush1.bf16.msra.mxu0 0
      %937 = vmatprep.subr.bf16.mxu0 0
      %938 = vmatpush1.bf16.msra.mxu0 0
      %939 = vmatprep.subr.bf16.mxu0 0
      %940 = vmatpush1.bf16.msra.mxu0 %v923
      %941 = vmatprep.subr.bf16.mxu0 0
      %942 = vmatpush2.bf16.msra.mxu0 0
      %943 = vmatprep.subr.bf16.mxu0 0
      %944 = vmatpush2.bf16.msra.mxu0 0
      %945 = vmatprep.subr.bf16.mxu0 0
      %946 = vmatpush2.bf16.msra.mxu0 0
      %947 = vmatprep.subr.bf16.mxu0 0
      %948 = vmatpush2.bf16.msra.mxu0 0
      %949 = vmatprep.subr.bf16.mxu0 0
      %950 = vmatpush2.bf16.msra.mxu0 0
      %951 = vmatprep.subr.bf16.mxu0 0
      %952 = vmatpush2.bf16.msra.mxu0 0
      %953 = vmatprep.subr.bf16.mxu0 0
      %954 = vmatpush2.bf16.msra.mxu0 0
      %955 = vmatprep.subr.bf16.mxu0 0
      %956 = vmatpush2.bf16.msra.mxu0 0
      %957 = vmatprep.mubr.bf16.mxu0 0
      %958 = vmatmul.mubr.bf16.gmra.mxu0 %v920
      %v959 = vpop.f32.mrf.mxu0
      %v960 = vadd.f32 0.0, %v959
      %v961 = vpop.f32.mrf.mxu0
      %v962 = vpop.f32.mrf.mxu0
      %v963 = vpop.f32.mrf.mxu0
      %964 = vdwg.mxu0
      %v965 = vpack.c.bf16 %v960, %v960
      %s966 = scalar_lea.vmem %s5, 4
      %v967 = vld [vmem:[%s966] sm:$0xf]
      %v969 = vsel %vm741, %v965, 0
      %v972 = vsel %vm807, %v967, 0
      %974 = vmatprep.subr.bf16.mxu0 0
      %975 = vmatpush1.bf16.msra.mxu0 0
      %976 = vmatprep.subr.bf16.mxu0 0
      %977 = vmatpush1.bf16.msra.mxu0 0
      %978 = vmatprep.subr.bf16.mxu0 0
      %979 = vmatpush1.bf16.msra.mxu0 0
      %980 = vmatprep.subr.bf16.mxu0 0
      %981 = vmatpush1.bf16.msra.mxu0 0
      %982 = vmatprep.subr.bf16.mxu0 0
      %983 = vmatpush1.bf16.msra.mxu0 0
      %984 = vmatprep.subr.bf16.mxu0 0
      %985 = vmatpush1.bf16.msra.mxu0 0
      %986 = vmatprep.subr.bf16.mxu0 0
      %987 = vmatpush1.bf16.msra.mxu0 0
      %988 = vmatprep.subr.bf16.mxu0 0
      %989 = vmatpush1.bf16.msra.mxu0 %v972
      %990 = vmatprep.subr.bf16.mxu0 0
      %991 = vmatpush2.bf16.msra.mxu0 0
      %992 = vmatprep.subr.bf16.mxu0 0
      %993 = vmatpush2.bf16.msra.mxu0 0
      %994 = vmatprep.subr.bf16.mxu0 0
      %995 = vmatpush2.bf16.msra.mxu0 0
      %996 = vmatprep.subr.bf16.mxu0 0
      %997 = vmatpush2.bf16.msra.mxu0 0
      %998 = vmatprep.subr.bf16.mxu0 0
      %999 = vmatpush2.bf16.msra.mxu0 0
      %1000 = vmatprep.subr.bf16.mxu0 0
      %1001 = vmatpush2.bf16.msra.mxu0 0
      %1002 = vmatprep.subr.bf16.mxu0 0
      %1003 = vmatpush2.bf16.msra.mxu0 0
      %1004 = vmatprep.subr.bf16.mxu0 0
      %1005 = vmatpush2.bf16.msra.mxu0 0
      %1006 = vmatprep.mubr.bf16.mxu0 0
      %1007 = vmatmul.mubr.bf16.gmra.mxu0 %v969
      %v1008 = vpop.f32.mrf.mxu0
      %v1009 = vadd.f32 0.0, %v1008
      %v1010 = vpop.f32.mrf.mxu0
      %v1011 = vpop.f32.mrf.mxu0
      %v1012 = vpop.f32.mrf.mxu0
      %1013 = vdwg.mxu0
      %v1015 = vsel %vm741, %v851, 0
      %v1018 = vsel %vm807, %v852, 0
      %1020 = vmatprep.subr.bf16.mxu0 0
      %1021 = vmatpush1.bf16.msra.mxu0 0
      %1022 = vmatprep.subr.bf16.mxu0 0
      %1023 = vmatpush1.bf16.msra.mxu0 0
      %1024 = vmatprep.subr.bf16.mxu0 0
      %1025 = vmatpush1.bf16.msra.mxu0 0
      %1026 = vmatprep.subr.bf16.mxu0 0
      %1027 = vmatpush1.bf16.msra.mxu0 0
      %1028 = vmatprep.subr.bf16.mxu0 0
      %1029 = vmatpush1.bf16.msra.mxu0 0
      %1030 = vmatprep.subr.bf16.mxu0 0
      %1031 = vmatpush1.bf16.msra.mxu0 0
      %1032 = vmatprep.subr.bf16.mxu0 0
      %1033 = vmatpush1.bf16.msra.mxu0 0
      %1034 = vmatprep.subr.bf16.mxu0 0
      %1035 = vmatpush1.bf16.msra.mxu0 %v1018
      %1036 = vmatprep.subr.bf16.mxu0 0
      %1037 = vmatpush2.bf16.msra.mxu0 0
      %1038 = vmatprep.subr.bf16.mxu0 0
      %1039 = vmatpush2.bf16.msra.mxu0 0
      %1040 = vmatprep.subr.bf16.mxu0 0
      %1041 = vmatpush2.bf16.msra.mxu0 0
      %1042 = vmatprep.subr.bf16.mxu0 0
      %1043 = vmatpush2.bf16.msra.mxu0 0
      %1044 = vmatprep.subr.bf16.mxu0 0
      %1045 = vmatpush2.bf16.msra.mxu0 0
      %1046 = vmatprep.subr.bf16.mxu0 0
      %1047 = vmatpush2.bf16.msra.mxu0 0
      %1048 = vmatprep.subr.bf16.mxu0 0
      %1049 = vmatpush2.bf16.msra.mxu0 0
      %1050 = vmatprep.subr.bf16.mxu0 0
      %1051 = vmatpush2.bf16.msra.mxu0 0
      %1052 = vmatprep.mubr.bf16.mxu0 0
      %1053 = vmatmul.mubr.bf16.gmra.mxu0 %v1015
      %v1054 = vpop.f32.mrf.mxu0
      %v1055 = vadd.f32 %v1009, %v1054
      %v1056 = vpop.f32.mrf.mxu0
      %v1057 = vpop.f32.mrf.mxu0
      %v1058 = vpop.f32.mrf.mxu0
      %1059 = vdwg.mxu0
      %1060 = vrot.lane.b32.xlu0 %v737, 112
      %v1061 = vpop.permute.xlu0 %1060
      %1062 = vrot.lane.b32.xlu0 %v737, 80
      %v1063 = vpop.permute.xlu0 %1062
      %v1065 = vsel %vm741, %v1061, 0
      %v1068 = vsel %vm741, %v1063, 0
      %1070 = vmatprep.subr.bf16.mxu0 0
      %1071 = vmatpush1.bf16.xpose.msra.mxu0 0
      %1072 = vmatprep.subr.bf16.mxu0 0
      %1073 = vmatpush1.bf16.xpose.msra.mxu0 0
      %1074 = vmatprep.subr.bf16.mxu0 0
      %1075 = vmatpush1.bf16.xpose.msra.mxu0 0
      %1076 = vmatprep.subr.bf16.mxu0 0
      %1077 = vmatpush1.bf16.xpose.msra.mxu0 0
      %1078 = vmatprep.subr.bf16.mxu0 0
      %1079 = vmatpush1.bf16.xpose.msra.mxu0 0
      %1080 = vmatprep.subr.bf16.mxu0 0
      %1081 = vmatpush1.bf16.xpose.msra.mxu0 0
      %1082 = vmatprep.subr.bf16.mxu0 0
      %1083 = vmatpush1.bf16.xpose.msra.mxu0 0
      %1084 = vmatprep.subr.bf16.mxu0 0
      %1085 = vmatpush1.bf16.xpose.msra.mxu0 %v1068
      %1086 = vmatprep.subr.bf16.mxu0 0
      %1087 = vmatpush2.bf16.xpose.msra.mxu0 0
      %1088 = vmatprep.subr.bf16.mxu0 0
      %1089 = vmatpush2.bf16.xpose.msra.mxu0 0
      %1090 = vmatprep.subr.bf16.mxu0 0
      %1091 = vmatpush2.bf16.xpose.msra.mxu0 0
      %1092 = vmatprep.subr.bf16.mxu0 0
      %1093 = vmatpush2.bf16.xpose.msra.mxu0 0
      %1094 = vmatprep.subr.bf16.mxu0 0
      %1095 = vmatpush2.bf16.xpose.msra.mxu0 0
      %1096 = vmatprep.subr.bf16.mxu0 0
      %1097 = vmatpush2.bf16.xpose.msra.mxu0 0
      %1098 = vmatprep.subr.bf16.mxu0 0
      %1099 = vmatpush2.bf16.xpose.msra.mxu0 0
      %1100 = vmatprep.subr.bf16.mxu0 0
      %1101 = vmatpush2.bf16.xpose.msra.mxu0 0
      %1102 = vmatprep.mubr.bf16.mxu0 0
      %1103 = vmatmul.mubr.bf16.gmra.mxu0 %v1065
      %v1104 = vpop.f32.mrf.mxu0
      %v1105 = vadd.f32 0.0, %v1104
      %v1106 = vpop.f32.mrf.mxu0
      %v1107 = vpop.f32.mrf.mxu0
      %v1108 = vpop.f32.mrf.mxu0
      %1109 = vdwg.mxu0
      %v1110 = vmul.f32 %v1105, 0.35355338
      %v1111 = vadd.f32 %v1110, %v467
      %v1112 = vsel %vm741, %v1111, -inf
      %1113 = vmax.xlane.f32.xlu0 %v1112
      %v1114 = vpop.xlane.xlu0 %1113
      %v1115 = vsub.f32 %v1111, %v1114
      %v1116 = vmul.f32 %v1115, 1.442695
      %v1117 = vpow.pop %v1116
      %v1118 = vsel %vm741, %v1117, 0.0
      %1119 = vadd.xlane.f32.xlu0 %v1118
      %v1120 = vpop.xlane.xlu0 %1119
      %v1121 = vrcp.pop %v1120
      %v1122 = vmul.f32 %v1117, %v1121
      %v1123 = vpack.c.bf16 %v1122, %v1122
      %1124 = vrot.lane.b32.xlu0 %v737, 48
      %v1125 = vpop.permute.xlu0 %1124
      %v1127 = vsel %vm741, %v1123, 0
      %v1130 = vsel %vm807, %v1125, 0
      %1132 = vmatprep.subr.bf16.mxu0 0
      %1133 = vmatpush1.bf16.msra.mxu0 0
      %1134 = vmatprep.subr.bf16.mxu0 0
      %1135 = vmatpush1.bf16.msra.mxu0 0
      %1136 = vmatprep.subr.bf16.mxu0 0
      %1137 = vmatpush1.bf16.msra.mxu0 0
      %1138 = vmatprep.subr.bf16.mxu0 0
      %1139 = vmatpush1.bf16.msra.mxu0 0
      %1140 = vmatprep.subr.bf16.mxu0 0
      %1141 = vmatpush1.bf16.msra.mxu0 0
      %1142 = vmatprep.subr.bf16.mxu0 0
      %1143 = vmatpush1.bf16.msra.mxu0 0
      %1144 = vmatprep.subr.bf16.mxu0 0
      %1145 = vmatpush1.bf16.msra.mxu0 0
      %1146 = vmatprep.subr.bf16.mxu0 0
      %1147 = vmatpush1.bf16.msra.mxu0 %v1130
      %1148 = vmatprep.subr.bf16.mxu0 0
      %1149 = vmatpush2.bf16.msra.mxu0 0
      %1150 = vmatprep.subr.bf16.mxu0 0
      %1151 = vmatpush2.bf16.msra.mxu0 0
      %1152 = vmatprep.subr.bf16.mxu0 0
      %1153 = vmatpush2.bf16.msra.mxu0 0
      %1154 = vmatprep.subr.bf16.mxu0 0
      %1155 = vmatpush2.bf16.msra.mxu0 0
      %1156 = vmatprep.subr.bf16.mxu0 0
      %1157 = vmatpush2.bf16.msra.mxu0 0
      %1158 = vmatprep.subr.bf16.mxu0 0
      %1159 = vmatpush2.bf16.msra.mxu0 0
      %1160 = vmatprep.subr.bf16.mxu0 0
      %1161 = vmatpush2.bf16.msra.mxu0 0
      %1162 = vmatprep.subr.bf16.mxu0 0
      %1163 = vmatpush2.bf16.msra.mxu0 0
      %1164 = vmatprep.mubr.bf16.mxu0 0
      %1165 = vmatmul.mubr.bf16.gmra.mxu0 %v1127
      %v1166 = vpop.f32.mrf.mxu0
      %v1167 = vadd.f32 0.0, %v1166
      %v1168 = vpop.f32.mrf.mxu0
      %v1169 = vpop.f32.mrf.mxu0
      %v1170 = vpop.f32.mrf.mxu0
      %1171 = vdwg.mxu0
      %v1172 = vpack.c.bf16 %v1167, %v1167
      %s1173 = scalar_lea.vmem %s5, 8
      %v1174 = vld [vmem:[%s1173] sm:$0xf]
      %v1176 = vsel %vm741, %v1172, 0
      %v1179 = vsel %vm807, %v1174, 0
      %1181 = vmatprep.subr.bf16.mxu0 0
      %1182 = vmatpush1.bf16.msra.mxu0 0
      %1183 = vmatprep.subr.bf16.mxu0 0
      %1184 = vmatpush1.bf16.msra.mxu0 0
      %1185 = vmatprep.subr.bf16.mxu0 0
      %1186 = vmatpush1.bf16.msra.mxu0 0
      %1187 = vmatprep.subr.bf16.mxu0 0
      %1188 = vmatpush1.bf16.msra.mxu0 0
      %1189 = vmatprep.subr.bf16.mxu0 0
      %1190 = vmatpush1.bf16.msra.mxu0 0
      %1191 = vmatprep.subr.bf16.mxu0 0
      %1192 = vmatpush1.bf16.msra.mxu0 0
      %1193 = vmatprep.subr.bf16.mxu0 0
      %1194 = vmatpush1.bf16.msra.mxu0 0
      %1195 = vmatprep.subr.bf16.mxu0 0
      %1196 = vmatpush1.bf16.msra.mxu0 %v1179
      %1197 = vmatprep.subr.bf16.mxu0 0
      %1198 = vmatpush2.bf16.msra.mxu0 0
      %1199 = vmatprep.subr.bf16.mxu0 0
      %1200 = vmatpush2.bf16.msra.mxu0 0
      %1201 = vmatprep.subr.bf16.mxu0 0
      %1202 = vmatpush2.bf16.msra.mxu0 0
      %1203 = vmatprep.subr.bf16.mxu0 0
      %1204 = vmatpush2.bf16.msra.mxu0 0
      %1205 = vmatprep.subr.bf16.mxu0 0
      %1206 = vmatpush2.bf16.msra.mxu0 0
      %1207 = vmatprep.subr.bf16.mxu0 0
      %1208 = vmatpush2.bf16.msra.mxu0 0
      %1209 = vmatprep.subr.bf16.mxu0 0
      %1210 = vmatpush2.bf16.msra.mxu0 0
      %1211 = vmatprep.subr.bf16.mxu0 0
      %1212 = vmatpush2.bf16.msra.mxu0 0
      %1213 = vmatprep.mubr.bf16.mxu0 0
      %1214 = vmatmul.mubr.bf16.gmra.mxu0 %v1176
      %v1215 = vpop.f32.mrf.mxu0
      %v1216 = vadd.f32 0.0, %v1215
      %v1217 = vpop.f32.mrf.mxu0
      %v1218 = vpop.f32.mrf.mxu0
      %v1219 = vpop.f32.mrf.mxu0
      %1220 = vdwg.mxu0
      %v1221 = vadd.f32 %v1055, %v1216
      %1222 = vrot.lane.b32.xlu0 %v737, 104
      %v1223 = vpop.permute.xlu0 %1222
      %1224 = vrot.lane.b32.xlu0 %v737, 72
      %v1225 = vpop.permute.xlu0 %1224
      %v1227 = vsel %vm741, %v1223, 0
      %v1230 = vsel %vm741, %v1225, 0
      %1232 = vmatprep.subr.bf16.mxu0 0
      %1233 = vmatpush1.bf16.xpose.msra.mxu0 0
      %1234 = vmatprep.subr.bf16.mxu0 0
      %1235 = vmatpush1.bf16.xpose.msra.mxu0 0
      %1236 = vmatprep.subr.bf16.mxu0 0
      %1237 = vmatpush1.bf16.xpose.msra.mxu0 0
      %1238 = vmatprep.subr.bf16.mxu0 0
      %1239 = vmatpush1.bf16.xpose.msra.mxu0 0
      %1240 = vmatprep.subr.bf16.mxu0 0
      %1241 = vmatpush1.bf16.xpose.msra.mxu0 0
      %1242 = vmatprep.subr.bf16.mxu0 0
      %1243 = vmatpush1.bf16.xpose.msra.mxu0 0
      %1244 = vmatprep.subr.bf16.mxu0 0
      %1245 = vmatpush1.bf16.xpose.msra.mxu0 0
      %1246 = vmatprep.subr.bf16.mxu0 0
      %1247 = vmatpush1.bf16.xpose.msra.mxu0 %v1230
      %1248 = vmatprep.subr.bf16.mxu0 0
      %1249 = vmatpush2.bf16.xpose.msra.mxu0 0
      %1250 = vmatprep.subr.bf16.mxu0 0
      %1251 = vmatpush2.bf16.xpose.msra.mxu0 0
      %1252 = vmatprep.subr.bf16.mxu0 0
      %1253 = vmatpush2.bf16.xpose.msra.mxu0 0
      %1254 = vmatprep.subr.bf16.mxu0 0
      %1255 = vmatpush2.bf16.xpose.msra.mxu0 0
      %1256 = vmatprep.subr.bf16.mxu0 0
      %1257 = vmatpush2.bf16.xpose.msra.mxu0 0
      %1258 = vmatprep.subr.bf16.mxu0 0
      %1259 = vmatpush2.bf16.xpose.msra.mxu0 0
      %1260 = vmatprep.subr.bf16.mxu0 0
      %1261 = vmatpush2.bf16.xpose.msra.mxu0 0
      %1262 = vmatprep.subr.bf16.mxu0 0
      %1263 = vmatpush2.bf16.xpose.msra.mxu0 0
      %1264 = vmatprep.mubr.bf16.mxu0 0
      %1265 = vmatmul.mubr.bf16.gmra.mxu0 %v1227
      %v1266 = vpop.f32.mrf.mxu0
      %v1267 = vadd.f32 0.0, %v1266
      %v1268 = vpop.f32.mrf.mxu0
      %v1269 = vpop.f32.mrf.mxu0
      %v1270 = vpop.f32.mrf.mxu0
      %1271 = vdwg.mxu0
      %v1272 = vmul.f32 %v1267, 0.35355338
      %v1273 = vadd.f32 %v1272, %v467
      %v1274 = vsel %vm741, %v1273, -inf
      %1275 = vmax.xlane.f32.xlu0 %v1274
      %v1276 = vpop.xlane.xlu0 %1275
      %v1277 = vsub.f32 %v1273, %v1276
      %v1278 = vmul.f32 %v1277, 1.442695
      %v1279 = vpow.pop %v1278
      %v1280 = vsel %vm741, %v1279, 0.0
      %1281 = vadd.xlane.f32.xlu0 %v1280
      %v1282 = vpop.xlane.xlu0 %1281
      %v1283 = vrcp.pop %v1282
      %v1284 = vmul.f32 %v1279, %v1283
      %v1285 = vpack.c.bf16 %v1284, %v1284
      %1286 = vrot.lane.b32.xlu0 %v737, 40
      %v1287 = vpop.permute.xlu0 %1286
      %v1289 = vsel %vm741, %v1285, 0
      %v1292 = vsel %vm807, %v1287, 0
      %1294 = vmatprep.subr.bf16.mxu0 0
      %1295 = vmatpush1.bf16.msra.mxu0 0
      %1296 = vmatprep.subr.bf16.mxu0 0
      %1297 = vmatpush1.bf16.msra.mxu0 0
      %1298 = vmatprep.subr.bf16.mxu0 0
      %1299 = vmatpush1.bf16.msra.mxu0 0
      %1300 = vmatprep.subr.bf16.mxu0 0
      %1301 = vmatpush1.bf16.msra.mxu0 0
      %1302 = vmatprep.subr.bf16.mxu0 0
      %1303 = vmatpush1.bf16.msra.mxu0 0
      %1304 = vmatprep.subr.bf16.mxu0 0
      %1305 = vmatpush1.bf16.msra.mxu0 0
      %1306 = vmatprep.subr.bf16.mxu0 0
      %1307 = vmatpush1.bf16.msra.mxu0 0
      %1308 = vmatprep.subr.bf16.mxu0 0
      %1309 = vmatpush1.bf16.msra.mxu0 %v1292
      %1310 = vmatprep.subr.bf16.mxu0 0
      %1311 = vmatpush2.bf16.msra.mxu0 0
      %1312 = vmatprep.subr.bf16.mxu0 0
      %1313 = vmatpush2.bf16.msra.mxu0 0
      %1314 = vmatprep.subr.bf16.mxu0 0
      %1315 = vmatpush2.bf16.msra.mxu0 0
      %1316 = vmatprep.subr.bf16.mxu0 0
      %1317 = vmatpush2.bf16.msra.mxu0 0
      %1318 = vmatprep.subr.bf16.mxu0 0
      %1319 = vmatpush2.bf16.msra.mxu0 0
      %1320 = vmatprep.subr.bf16.mxu0 0
      %1321 = vmatpush2.bf16.msra.mxu0 0
      %1322 = vmatprep.subr.bf16.mxu0 0
      %1323 = vmatpush2.bf16.msra.mxu0 0
      %1324 = vmatprep.subr.bf16.mxu0 0
      %1325 = vmatpush2.bf16.msra.mxu0 0
      %1326 = vmatprep.mubr.bf16.mxu0 0
      %1327 = vmatmul.mubr.bf16.gmra.mxu0 %v1289
      %v1328 = vpop.f32.mrf.mxu0
      %v1329 = vadd.f32 0.0, %v1328
      %v1330 = vpop.f32.mrf.mxu0
      %v1331 = vpop.f32.mrf.mxu0
      %v1332 = vpop.f32.mrf.mxu0
      %1333 = vdwg.mxu0
      %v1334 = vpack.c.bf16 %v1329, %v1329
      %s1335 = scalar_lea.vmem %s5, 12
      %v1336 = vld [vmem:[%s1335] sm:$0xf]
      %v1338 = vsel %vm741, %v1334, 0
      %v1341 = vsel %vm807, %v1336, 0
      %1343 = vmatprep.subr.bf16.mxu0 0
      %1344 = vmatpush1.bf16.msra.mxu0 0
      %1345 = vmatprep.subr.bf16.mxu0 0
      %1346 = vmatpush1.bf16.msra.mxu0 0
      %1347 = vmatprep.subr.bf16.mxu0 0
      %1348 = vmatpush1.bf16.msra.mxu0 0
      %1349 = vmatprep.subr.bf16.mxu0 0
      %1350 = vmatpush1.bf16.msra.mxu0 0
      %1351 = vmatprep.subr.bf16.mxu0 0
      %1352 = vmatpush1.bf16.msra.mxu0 0
      %1353 = vmatprep.subr.bf16.mxu0 0
      %1354 = vmatpush1.bf16.msra.mxu0 0
      %1355 = vmatprep.subr.bf16.mxu0 0
      %1356 = vmatpush1.bf16.msra.mxu0 0
      %1357 = vmatprep.subr.bf16.mxu0 0
      %1358 = vmatpush1.bf16.msra.mxu0 %v1341
      %1359 = vmatprep.subr.bf16.mxu0 0
      %1360 = vmatpush2.bf16.msra.mxu0 0
      %1361 = vmatprep.subr.bf16.mxu0 0
      %1362 = vmatpush2.bf16.msra.mxu0 0
      %1363 = vmatprep.subr.bf16.mxu0 0
      %1364 = vmatpush2.bf16.msra.mxu0 0
      %1365 = vmatprep.subr.bf16.mxu0 0
      %1366 = vmatpush2.bf16.msra.mxu0 0
      %1367 = vmatprep.subr.bf16.mxu0 0
      %1368 = vmatpush2.bf16.msra.mxu0 0
      %1369 = vmatprep.subr.bf16.mxu0 0
      %1370 = vmatpush2.bf16.msra.mxu0 0
      %1371 = vmatprep.subr.bf16.mxu0 0
      %1372 = vmatpush2.bf16.msra.mxu0 0
      %1373 = vmatprep.subr.bf16.mxu0 0
      %1374 = vmatpush2.bf16.msra.mxu0 0
      %1375 = vmatprep.mubr.bf16.mxu0 0
      %1376 = vmatmul.mubr.bf16.gmra.mxu0 %v1338
      %v1377 = vpop.f32.mrf.mxu0
      %v1378 = vadd.f32 0.0, %v1377
      %v1379 = vpop.f32.mrf.mxu0
      %v1380 = vpop.f32.mrf.mxu0
      %v1381 = vpop.f32.mrf.mxu0
      %1382 = vdwg.mxu0
      %v1383 = vadd.f32 %v1221, %v1378
      %v1384 = vadd.f32 %v636, %v1383
      %v1385 = vlaneseq
      %v1386 = vshrl.u32 %v1385, 7
      %v1387 = vsub.s32 0, %v1386
      %v1388 = vrot.slane %v643, %v1387
      %v1389 = vadd.f32 %v1384, %v1388
      %v1390 = vsel %vm647, %v1389, 0.0
      %1391 = vadd.xlane.f32.xlu0 %v1390
      %v1392 = vpop.xlane.xlu0 %1391
      %v1393 = vmul.f32 %v1392, %v651
      %v1394 = vsub.f32 %v1389, %v1393
      %v1395 = vmul.f32 %v1394, %v1394
      %v1396 = vsel %vm647, %v1395, 0.0
      %1397 = vadd.xlane.f32.xlu0 %v1396
      %v1398 = vpop.xlane.xlu0 %1397
      %v1399 = vmul.f32 %v1398, %v651
      %v1400 = vadd.f32 %v1399, 1e-06
      %v1401 = vrsqrt.pop %v1400
      %v1402 = vmul.f32 %v1394, %v1401
      %v1403 = vlaneseq
      %v1404 = vshrl.u32 %v1403, 7
      %v1405 = vsub.s32 0, %v1404
      %v1406 = vrot.slane %v644, %v1405
      %v1407 = vmul.f32 %v1402, %v1406
      %v1408 = vlaneseq
      %v1409 = vshrl.u32 %v1408, 7
      %v1410 = vsub.s32 0, %v1409
      %v1411 = vrot.slane %v645, %v1410
      %v1412 = vadd.f32 %v1407, %v1411
      %v1413 = vpack.c.bf16 %v1412, %v1412
      %v1414 = vld [vmem:[%s6] sm:$0xf]
      %v1415 = vld [vmem:[%s6 + $0x4] sm:$0xf]
      %v1416 = vld [vmem:[%s6 + $0x8] sm:$0xf]
      %v1417 = vld [vmem:[%s6 + $0xc] sm:$0xf]
      %v1418 = vld [vmem:[%s7] sm:$0x1]
      %v1419 = vlaneseq
      %v1420 = vshrl.u32 %v1419, 7
      %v1421 = vsub.s32 0, %v1420
      %v1422 = vrot.slane %v1418, %v1421
      %v1427 = vunpack.c.l.b16 %v1414
      %v1428 = vunpack.c.l.b16 %v1415
      %v1429 = vunpack.c.l.b16 %v1416
      %v1430 = vunpack.c.l.b16 %v1417
      %v1431 = vpack.c.b16 %v1428, %v1427
      %v1432 = vpack.c.b16 %v1430, %v1429
      %v1436 = vsel %vm647, %v1413, 0
      %1438 = vmatprep.subr.bf16.mxu0 0
      %1439 = vmatpush1.bf16.msra.mxu0 0
      %1440 = vmatprep.subr.bf16.mxu0 0
      %1441 = vmatpush1.bf16.msra.mxu0 0
      %1442 = vmatprep.subr.bf16.mxu0 0
      %1443 = vmatpush1.bf16.msra.mxu0 0
      %1444 = vmatprep.subr.bf16.mxu0 0
      %1445 = vmatpush1.bf16.msra.mxu0 0
      %1446 = vmatprep.subr.bf16.mxu0 0
      %1447 = vmatpush1.bf16.msra.mxu0 0
      %1448 = vmatprep.subr.bf16.mxu0 0
      %1449 = vmatpush1.bf16.msra.mxu0 0
      %1450 = vmatprep.subr.bf16.mxu0 0
      %1451 = vmatpush1.bf16.msra.mxu0 %v1432
      %1452 = vmatprep.subr.bf16.mxu0 0
      %1453 = vmatpush1.bf16.msra.mxu0 %v1431
      %1454 = vmatprep.subr.bf16.mxu0 0
      %1455 = vmatpush2.bf16.msra.mxu0 0
      %1456 = vmatprep.subr.bf16.mxu0 0
      %1457 = vmatpush2.bf16.msra.mxu0 0
      %1458 = vmatprep.subr.bf16.mxu0 0
      %1459 = vmatpush2.bf16.msra.mxu0 0
      %1460 = vmatprep.subr.bf16.mxu0 0
      %1461 = vmatpush2.bf16.msra.mxu0 0
      %1462 = vmatprep.subr.bf16.mxu0 0
      %1463 = vmatpush2.bf16.msra.mxu0 0
      %1464 = vmatprep.subr.bf16.mxu0 0
      %1465 = vmatpush2.bf16.msra.mxu0 0
      %1466 = vmatprep.subr.bf16.mxu0 0
      %1467 = vmatpush2.bf16.msra.mxu0 0
      %1468 = vmatprep.subr.bf16.mxu0 0
      %1469 = vmatpush2.bf16.msra.mxu0 0
      %1470 = vmatprep.mubr.bf16.mxu0 0
      %1471 = vmatmul.mubr.bf16.gmra.mxu0 %v1436
      %v1472 = vpop.f32.mrf.mxu0
      %v1473 = vadd.f32 %v1422, %v1472
      %v1474 = vpop.f32.mrf.mxu0
      %v1475 = vpop.f32.mrf.mxu0
      %v1476 = vpop.f32.mrf.mxu0
      %1477 = vdwg.mxu0
      %v1478 = vmul.f32 %v1473, 0.5
      %v1479 = vmul.f32 %v1473, 0.044715
      %v1480 = vmul.f32 %v1479, %v1473
      %v1481 = vmul.f32 %v1480, %v1473
      %v1482 = vadd.f32 %v1473, %v1481
      %v1483 = vmul.f32 %v1482, 0.7978846
      %v1484 = vtanh.pop %v1483
      %v1485 = vadd.f32 %v1484, 1.0
      %v1486 = vmul.f32 %v1478, %v1485
      %v1487 = vpack.c.bf16 %v1486, %v1486
      %v1488 = vld [vmem:[%s8] sm:$0xf]
      %v1489 = vld [vmem:[%s8 + $0x4] sm:$0xf]
      %v1490 = vld [vmem:[%s8 + $0x8] sm:$0xf]
      %v1491 = vld [vmem:[%s8 + $0xc] sm:$0xf]
      %v1492 = vld [vmem:[%s8 + $0x10] sm:$0xf]
      %v1493 = vld [vmem:[%s8 + $0x14] sm:$0xf]
      %v1494 = vld [vmem:[%s8 + $0x18] sm:$0xf]
      %v1495 = vld [vmem:[%s8 + $0x1c] sm:$0xf]
      %v1496 = vld [vmem:[%s8 + $0x20] sm:$0xf]
      %v1497 = vld [vmem:[%s8 + $0x24] sm:$0xf]
      %v1498 = vld [vmem:[%s8 + $0x28] sm:$0xf]
      %v1499 = vld [vmem:[%s8 + $0x2c] sm:$0xf]
      %v1500 = vld [vmem:[%s8 + $0x30] sm:$0xf]
      %v1501 = vld [vmem:[%s8 + $0x34] sm:$0xf]
      %v1502 = vld [vmem:[%s8 + $0x38] sm:$0xf]
      %v1503 = vld [vmem:[%s8 + $0x3c] sm:$0xf]
      %v1520 = vunpack.c.l.b16 %v1488
      %v1521 = vunpack.c.l.b16 %v1489
      %v1522 = vunpack.c.l.b16 %v1490
      %v1523 = vunpack.c.l.b16 %v1491
      %v1524 = vunpack.c.l.b16 %v1492
      %v1525 = vunpack.c.l.b16 %v1493
      %v1526 = vunpack.c.l.b16 %v1494
      %v1527 = vunpack.c.l.b16 %v1495
      %v1528 = vunpack.c.l.b16 %v1496
      %v1529 = vunpack.c.l.b16 %v1497
      %v1530 = vunpack.c.l.b16 %v1498
      %v1531 = vunpack.c.l.b16 %v1499
      %v1532 = vunpack.c.l.b16 %v1500
      %v1533 = vunpack.c.l.b16 %v1501
      %v1534 = vunpack.c.l.b16 %v1502
      %v1535 = vunpack.c.l.b16 %v1503
      %v1536 = vpack.c.b16 %v1521, %v1520
      %v1537 = vpack.c.b16 %v1523, %v1522
      %v1538 = vpack.c.b16 %v1525, %v1524
      %v1539 = vpack.c.b16 %v1527, %v1526
      %v1540 = vpack.c.b16 %v1529, %v1528
      %v1541 = vpack.c.b16 %v1531, %v1530
      %v1542 = vpack.c.b16 %v1533, %v1532
      %v1543 = vpack.c.b16 %v1535, %v1534
      %1552 = vmatprep.subr.bf16.mxu0 0
      %1553 = vmatpush1.bf16.msra.mxu0 %v1543
      %1554 = vmatprep.subr.bf16.mxu0 0
      %1555 = vmatpush1.bf16.msra.mxu0 %v1542
      %1556 = vmatprep.subr.bf16.mxu0 0
      %1557 = vmatpush1.bf16.msra.mxu0 %v1541
      %1558 = vmatprep.subr.bf16.mxu0 0
      %1559 = vmatpush1.bf16.msra.mxu0 %v1540
      %1560 = vmatprep.subr.bf16.mxu0 0
      %1561 = vmatpush1.bf16.msra.mxu0 %v1539
      %1562 = vmatprep.subr.bf16.mxu0 0
      %1563 = vmatpush1.bf16.msra.mxu0 %v1538
      %1564 = vmatprep.subr.bf16.mxu0 0
      %1565 = vmatpush1.bf16.msra.mxu0 %v1537
      %1566 = vmatprep.subr.bf16.mxu0 0
      %1567 = vmatpush1.bf16.msra.mxu0 %v1536
      %1568 = vmatprep.subr.bf16.mxu0 0
      %1569 = vmatpush2.bf16.msra.mxu0 0
      %1570 = vmatprep.subr.bf16.mxu0 0
      %1571 = vmatpush2.bf16.msra.mxu0 0
      %1572 = vmatprep.subr.bf16.mxu0 0
      %1573 = vmatpush2.bf16.msra.mxu0 0
      %1574 = vmatprep.subr.bf16.mxu0 0
      %1575 = vmatpush2.bf16.msra.mxu0 0
      %1576 = vmatprep.subr.bf16.mxu0 0
      %1577 = vmatpush2.bf16.msra.mxu0 0
      %1578 = vmatprep.subr.bf16.mxu0 0
      %1579 = vmatpush2.bf16.msra.mxu0 0
      %1580 = vmatprep.subr.bf16.mxu0 0
      %1581 = vmatpush2.bf16.msra.mxu0 0
      %1582 = vmatprep.subr.bf16.mxu0 0
      %1583 = vmatpush2.bf16.msra.mxu0 0
      %1584 = vmatprep.mubr.bf16.mxu0 0
      %1585 = vmatmul.mubr.bf16.gmra.mxu0 %v1487
      %v1586 = vpop.f32.mrf.mxu0
      %v1587 = vadd.f32 0.0, %v1586
      %v1588 = vpop.f32.mrf.mxu0
      %v1589 = vpop.f32.mrf.mxu0
      %v1590 = vpop.f32.mrf.mxu0
      %1591 = vdwg.mxu0
      %v1592 = vadd.f32 %v1389, %v1587
      %v1593 = vlaneseq
      %v1594 = vshrl.u32 %v1593, 7
      %v1595 = vsub.s32 0, %v1594
      %v1596 = vrot.slane %v646, %v1595
      %v1597 = vadd.f32 %v1592, %v1596
      %v1598 = vld [vmem:[%s9 + $0x6] sm:$0x1]
      %v1599 = vld [vmem:[%s9 + $0x7] sm:$0x1]
      %v1600 = vld [vmem:[%s9 + $0x8] sm:$0x1]
      %v1601 = vld [vmem:[%s9 + $0x9] sm:$0x1]
      %v1602 = vld [vmem:[%s9 + $0xa] sm:$0x1]
      %v1603 = vld [vmem:[%s9 + $0xb] sm:$0x1]
      %v1604 = vsel %vm647, %v1597, 0.0
      %1605 = vadd.xlane.f32.xlu0 %v1604
      %v1606 = vpop.xlane.xlu0 %1605
      %v1607 = vmul.f32 %v1606, %v651
      %v1608 = vsub.f32 %v1597, %v1607
      %v1609 = vmul.f32 %v1608, %v1608
      %v1610 = vsel %vm647, %v1609, 0.0
      %1611 = vadd.xlane.f32.xlu0 %v1610
      %v1612 = vpop.xlane.xlu0 %1611
      %v1613 = vmul.f32 %v1612, %v651
      %v1614 = vadd.f32 %v1613, 1e-06
      %v1615 = vrsqrt.pop %v1614
      %v1616 = vmul.f32 %v1608, %v1615
      %v1617 = vlaneseq
      %v1618 = vshrl.u32 %v1617, 7
      %v1619 = vsub.s32 0, %v1618
      %v1620 = vrot.slane %v1598, %v1619
      %v1621 = vmul.f32 %v1616, %v1620
      %v1622 = vlaneseq
      %v1623 = vshrl.u32 %v1622, 7
      %v1624 = vsub.s32 0, %v1623
      %v1625 = vrot.slane %v1599, %v1624
      %v1626 = vadd.f32 %v1621, %v1625
      %v1627 = vpack.c.bf16 %v1626, %v1626
      %s1628 = scalar_lea.vmem %s3, 16
      %v1629 = vld [vmem:[%s1628] sm:$0xf]
      %v1630 = vld [vmem:[%s1628 + $0x4] sm:$0xf]
      %v1631 = vld [vmem:[%s1628 + $0x8] sm:$0xf]
      %v1632 = vld [vmem:[%s1628 + $0xc] sm:$0xf]
      %v1633 = vld [vmem:[%s4 + $0x1] sm:$0x1]
      %v1634 = vlaneseq
      %v1635 = vshrl.u32 %v1634, 7
      %v1636 = vsub.s32 0, %v1635
      %v1637 = vrot.slane %v1633, %v1636
      %v1642 = vunpack.c.l.b16 %v1629
      %v1643 = vunpack.c.l.b16 %v1630
      %v1644 = vunpack.c.l.b16 %v1631
      %v1645 = vunpack.c.l.b16 %v1632
      %v1646 = vpack.c.b16 %v1643, %v1642
      %v1647 = vpack.c.b16 %v1645, %v1644
      %v1651 = vsel %vm647, %v1627, 0
      %1653 = vmatprep.subr.bf16.mxu0 0
      %1654 = vmatpush1.bf16.msra.mxu0 0
      %1655 = vmatprep.subr.bf16.mxu0 0
      %1656 = vmatpush1.bf16.msra.mxu0 0
      %1657 = vmatprep.subr.bf16.mxu0 0
      %1658 = vmatpush1.bf16.msra.mxu0 0
      %1659 = vmatprep.subr.bf16.mxu0 0
      %1660 = vmatpush1.bf16.msra.mxu0 0
      %1661 = vmatprep.subr.bf16.mxu0 0
      %1662 = vmatpush1.bf16.msra.mxu0 0
      %1663 = vmatprep.subr.bf16.mxu0 0
      %1664 = vmatpush1.bf16.msra.mxu0 0
      %1665 = vmatprep.subr.bf16.mxu0 0
      %1666 = vmatpush1.bf16.msra.mxu0 %v1647
      %1667 = vmatprep.subr.bf16.mxu0 0
      %1668 = vmatpush1.bf16.msra.mxu0 %v1646
      %1669 = vmatprep.subr.bf16.mxu0 0
      %1670 = vmatpush2.bf16.msra.mxu0 0
      %1671 = vmatprep.subr.bf16.mxu0 0
      %1672 = vmatpush2.bf16.msra.mxu0 0
      %1673 = vmatprep.subr.bf16.mxu0 0
      %1674 = vmatpush2.bf16.msra.mxu0 0
      %1675 = vmatprep.subr.bf16.mxu0 0
      %1676 = vmatpush2.bf16.msra.mxu0 0
      %1677 = vmatprep.subr.bf16.mxu0 0
      %1678 = vmatpush2.bf16.msra.mxu0 0
      %1679 = vmatprep.subr.bf16.mxu0 0
      %1680 = vmatpush2.bf16.msra.mxu0 0
      %1681 = vmatprep.subr.bf16.mxu0 0
      %1682 = vmatpush2.bf16.msra.mxu0 0
      %1683 = vmatprep.subr.bf16.mxu0 0
      %1684 = vmatpush2.bf16.msra.mxu0 0
      %1685 = vmatprep.mubr.bf16.mxu0 0
      %1686 = vmatmul.mubr.bf16.gmra.mxu0 %v1651
      %v1687 = vpop.f32.mrf.mxu0
      %v1688 = vadd.f32 %v1637, %v1687
      %v1689 = vpop.f32.mrf.mxu0
      %v1690 = vpop.f32.mrf.mxu0
      %v1691 = vpop.f32.mrf.mxu0
      %1692 = vdwg.mxu0
      %v1693 = vpack.c.bf16 %v1688, %v1688
      %1695 = vrot.lane.b32.xlu0 %v1693, 96
      %v1696 = vpop.permute.xlu0 %1695
      %v1698 = vsel %vm741, %v1693, 0
      %v1701 = vsel %vm741, %v1696, 0
      %1703 = vmatprep.subr.bf16.mxu0 0
      %1704 = vmatpush1.bf16.xpose.msra.mxu0 0
      %1705 = vmatprep.subr.bf16.mxu0 0
      %1706 = vmatpush1.bf16.xpose.msra.mxu0 0
      %1707 = vmatprep.subr.bf16.mxu0 0
      %1708 = vmatpush1.bf16.xpose.msra.mxu0 0
      %1709 = vmatprep.subr.bf16.mxu0 0
      %1710 = vmatpush1.bf16.xpose.msra.mxu0 0
      %1711 = vmatprep.subr.bf16.mxu0 0
      %1712 = vmatpush1.bf16.xpose.msra.mxu0 0
      %1713 = vmatprep.subr.bf16.mxu0 0
      %1714 = vmatpush1.bf16.xpose.msra.mxu0 0
      %1715 = vmatprep.subr.bf16.mxu0 0
      %1716 = vmatpush1.bf16.xpose.msra.mxu0 0
      %1717 = vmatprep.subr.bf16.mxu0 0
      %1718 = vmatpush1.bf16.xpose.msra.mxu0 %v1701
      %1719 = vmatprep.subr.bf16.mxu0 0
      %1720 = vmatpush2.bf16.xpose.msra.mxu0 0
      %1721 = vmatprep.subr.bf16.mxu0 0
      %1722 = vmatpush2.bf16.xpose.msra.mxu0 0
      %1723 = vmatprep.subr.bf16.mxu0 0
      %1724 = vmatpush2.bf16.xpose.msra.mxu0 0
      %1725 = vmatprep.subr.bf16.mxu0 0
      %1726 = vmatpush2.bf16.xpose.msra.mxu0 0
      %1727 = vmatprep.subr.bf16.mxu0 0
      %1728 = vmatpush2.bf16.xpose.msra.mxu0 0
      %1729 = vmatprep.subr.bf16.mxu0 0
      %1730 = vmatpush2.bf16.xpose.msra.mxu0 0
      %1731 = vmatprep.subr.bf16.mxu0 0
      %1732 = vmatpush2.bf16.xpose.msra.mxu0 0
      %1733 = vmatprep.subr.bf16.mxu0 0
      %1734 = vmatpush2.bf16.xpose.msra.mxu0 0
      %1735 = vmatprep.mubr.bf16.mxu0 0
      %1736 = vmatmul.mubr.bf16.gmra.mxu0 %v1698
      %v1737 = vpop.f32.mrf.mxu0
      %v1738 = vadd.f32 0.0, %v1737
      %v1739 = vpop.f32.mrf.mxu0
      %v1740 = vpop.f32.mrf.mxu0
      %v1741 = vpop.f32.mrf.mxu0
      %1742 = vdwg.mxu0
      %v1743 = vmul.f32 %v1738, 0.35355338
      %v1744 = vadd.f32 %v1743, %v467
      %v1745 = vsel %vm741, %v1744, -inf
      %1746 = vmax.xlane.f32.xlu0 %v1745
      %v1747 = vpop.xlane.xlu0 %1746
      %v1748 = vsub.f32 %v1744, %v1747
      %v1749 = vmul.f32 %v1748, 1.442695
      %v1750 = vpow.pop %v1749
      %v1751 = vsel %vm741, %v1750, 0.0
      %1752 = vadd.xlane.f32.xlu0 %v1751
      %v1753 = vpop.xlane.xlu0 %1752
      %v1754 = vrcp.pop %v1753
      %v1755 = vmul.f32 %v1750, %v1754
      %v1756 = vpack.c.bf16 %v1755, %v1755
      %1757 = vrot.lane.b32.xlu0 %v1693, 64
      %v1758 = vpop.permute.xlu0 %1757
      %v1760 = vsel %vm741, %v1756, 0
      %v1763 = vsel %vm807, %v1758, 0
      %1765 = vmatprep.subr.bf16.mxu0 0
      %1766 = vmatpush1.bf16.msra.mxu0 0
      %1767 = vmatprep.subr.bf16.mxu0 0
      %1768 = vmatpush1.bf16.msra.mxu0 0
      %1769 = vmatprep.subr.bf16.mxu0 0
      %1770 = vmatpush1.bf16.msra.mxu0 0
      %1771 = vmatprep.subr.bf16.mxu0 0
      %1772 = vmatpush1.bf16.msra.mxu0 0
      %1773 = vmatprep.subr.bf16.mxu0 0
      %1774 = vmatpush1.bf16.msra.mxu0 0
      %1775 = vmatprep.subr.bf16.mxu0 0
      %1776 = vmatpush1.bf16.msra.mxu0 0
      %1777 = vmatprep.subr.bf16.mxu0 0
      %1778 = vmatpush1.bf16.msra.mxu0 0
      %1779 = vmatprep.subr.bf16.mxu0 0
      %1780 = vmatpush1.bf16.msra.mxu0 %v1763
      %1781 = vmatprep.subr.bf16.mxu0 0
      %1782 = vmatpush2.bf16.msra.mxu0 0
      %1783 = vmatprep.subr.bf16.mxu0 0
      %1784 = vmatpush2.bf16.msra.mxu0 0
      %1785 = vmatprep.subr.bf16.mxu0 0
      %1786 = vmatpush2.bf16.msra.mxu0 0
      %1787 = vmatprep.subr.bf16.mxu0 0
      %1788 = vmatpush2.bf16.msra.mxu0 0
      %1789 = vmatprep.subr.bf16.mxu0 0
      %1790 = vmatpush2.bf16.msra.mxu0 0
      %1791 = vmatprep.subr.bf16.mxu0 0
      %1792 = vmatpush2.bf16.msra.mxu0 0
      %1793 = vmatprep.subr.bf16.mxu0 0
      %1794 = vmatpush2.bf16.msra.mxu0 0
      %1795 = vmatprep.subr.bf16.mxu0 0
      %1796 = vmatpush2.bf16.msra.mxu0 0
      %1797 = vmatprep.mubr.bf16.mxu0 0
      %1798 = vmatmul.mubr.bf16.gmra.mxu0 %v1760
      %v1799 = vpop.f32.mrf.mxu0
      %v1800 = vadd.f32 0.0, %v1799
      %v1801 = vpop.f32.mrf.mxu0
      %v1802 = vpop.f32.mrf.mxu0
      %v1803 = vpop.f32.mrf.mxu0
      %1804 = vdwg.mxu0
      %v1805 = vpack.c.bf16 %v1800, %v1800
      %s1806 = scalar_lea.vmem %s5, 16
      %v1807 = vld [vmem:[%s1806] sm:$0xf]
      %1808 = vrot.lane.b32.xlu0 %v1693, 120
      %v1809 = vpop.permute.xlu0 %1808
      %1810 = vrot.lane.b32.xlu0 %v1693, 88
      %v1811 = vpop.permute.xlu0 %1810
      %v1813 = vsel %vm741, %v1809, 0
      %v1816 = vsel %vm741, %v1811, 0
      %1818 = vmatprep.subr.bf16.mxu0 0
      %1819 = vmatpush1.bf16.xpose.msra.mxu0 0
      %1820 = vmatprep.subr.bf16.mxu0 0
      %1821 = vmatpush1.bf16.xpose.msra.mxu0 0
      %1822 = vmatprep.subr.bf16.mxu0 0
      %1823 = vmatpush1.bf16.xpose.msra.mxu0 0
      %1824 = vmatprep.subr.bf16.mxu0 0
      %1825 = vmatpush1.bf16.xpose.msra.mxu0 0
      %1826 = vmatprep.subr.bf16.mxu0 0
      %1827 = vmatpush1.bf16.xpose.msra.mxu0 0
      %1828 = vmatprep.subr.bf16.mxu0 0
      %1829 = vmatpush1.bf16.xpose.msra.mxu0 0
      %1830 = vmatprep.subr.bf16.mxu0 0
      %1831 = vmatpush1.bf16.xpose.msra.mxu0 0
      %1832 = vmatprep.subr.bf16.mxu0 0
      %1833 = vmatpush1.bf16.xpose.msra.mxu0 %v1816
      %1834 = vmatprep.subr.bf16.mxu0 0
      %1835 = vmatpush2.bf16.xpose.msra.mxu0 0
      %1836 = vmatprep.subr.bf16.mxu0 0
      %1837 = vmatpush2.bf16.xpose.msra.mxu0 0
      %1838 = vmatprep.subr.bf16.mxu0 0
      %1839 = vmatpush2.bf16.xpose.msra.mxu0 0
      %1840 = vmatprep.subr.bf16.mxu0 0
      %1841 = vmatpush2.bf16.xpose.msra.mxu0 0
      %1842 = vmatprep.subr.bf16.mxu0 0
      %1843 = vmatpush2.bf16.xpose.msra.mxu0 0
      %1844 = vmatprep.subr.bf16.mxu0 0
      %1845 = vmatpush2.bf16.xpose.msra.mxu0 0
      %1846 = vmatprep.subr.bf16.mxu0 0
      %1847 = vmatpush2.bf16.xpose.msra.mxu0 0
      %1848 = vmatprep.subr.bf16.mxu0 0
      %1849 = vmatpush2.bf16.xpose.msra.mxu0 0
      %1850 = vmatprep.mubr.bf16.mxu0 0
      %1851 = vmatmul.mubr.bf16.gmra.mxu0 %v1813
      %v1852 = vpop.f32.mrf.mxu0
      %v1853 = vadd.f32 0.0, %v1852
      %v1854 = vpop.f32.mrf.mxu0
      %v1855 = vpop.f32.mrf.mxu0
      %v1856 = vpop.f32.mrf.mxu0
      %1857 = vdwg.mxu0
      %v1858 = vmul.f32 %v1853, 0.35355338
      %v1859 = vadd.f32 %v1858, %v467
      %v1860 = vsel %vm741, %v1859, -inf
      %1861 = vmax.xlane.f32.xlu0 %v1860
      %v1862 = vpop.xlane.xlu0 %1861
      %v1863 = vsub.f32 %v1859, %v1862
      %v1864 = vmul.f32 %v1863, 1.442695
      %v1865 = vpow.pop %v1864
      %v1866 = vsel %vm741, %v1865, 0.0
      %1867 = vadd.xlane.f32.xlu0 %v1866
      %v1868 = vpop.xlane.xlu0 %1867
      %v1869 = vrcp.pop %v1868
      %v1870 = vmul.f32 %v1865, %v1869
      %v1871 = vpack.c.bf16 %v1870, %v1870
      %1872 = vrot.lane.b32.xlu0 %v1693, 56
      %v1873 = vpop.permute.xlu0 %1872
      %v1875 = vsel %vm741, %v1871, 0
      %v1878 = vsel %vm807, %v1873, 0
      %1880 = vmatprep.subr.bf16.mxu0 0
      %1881 = vmatpush1.bf16.msra.mxu0 0
      %1882 = vmatprep.subr.bf16.mxu0 0
      %1883 = vmatpush1.bf16.msra.mxu0 0
      %1884 = vmatprep.subr.bf16.mxu0 0
      %1885 = vmatpush1.bf16.msra.mxu0 0
      %1886 = vmatprep.subr.bf16.mxu0 0
      %1887 = vmatpush1.bf16.msra.mxu0 0
      %1888 = vmatprep.subr.bf16.mxu0 0
      %1889 = vmatpush1.bf16.msra.mxu0 0
      %1890 = vmatprep.subr.bf16.mxu0 0
      %1891 = vmatpush1.bf16.msra.mxu0 0
      %1892 = vmatprep.subr.bf16.mxu0 0
      %1893 = vmatpush1.bf16.msra.mxu0 0
      %1894 = vmatprep.subr.bf16.mxu0 0
      %1895 = vmatpush1.bf16.msra.mxu0 %v1878
      %1896 = vmatprep.subr.bf16.mxu0 0
      %1897 = vmatpush2.bf16.msra.mxu0 0
      %1898 = vmatprep.subr.bf16.mxu0 0
      %1899 = vmatpush2.bf16.msra.mxu0 0
      %1900 = vmatprep.subr.bf16.mxu0 0
      %1901 = vmatpush2.bf16.msra.mxu0 0
      %1902 = vmatprep.subr.bf16.mxu0 0
      %1903 = vmatpush2.bf16.msra.mxu0 0
      %1904 = vmatprep.subr.bf16.mxu0 0
      %1905 = vmatpush2.bf16.msra.mxu0 0
      %1906 = vmatprep.subr.bf16.mxu0 0
      %1907 = vmatpush2.bf16.msra.mxu0 0
      %1908 = vmatprep.subr.bf16.mxu0 0
      %1909 = vmatpush2.bf16.msra.mxu0 0
      %1910 = vmatprep.subr.bf16.mxu0 0
      %1911 = vmatpush2.bf16.msra.mxu0 0
      %1912 = vmatprep.mubr.bf16.mxu0 0
      %1913 = vmatmul.mubr.bf16.gmra.mxu0 %v1875
      %v1914 = vpop.f32.mrf.mxu0
      %v1915 = vadd.f32 0.0, %v1914
      %v1916 = vpop.f32.mrf.mxu0
      %v1917 = vpop.f32.mrf.mxu0
      %v1918 = vpop.f32.mrf.mxu0
      %1919 = vdwg.mxu0
      %v1920 = vpack.c.bf16 %v1915, %v1915
      %s1921 = scalar_lea.vmem %s5, 20
      %v1922 = vld [vmem:[%s1921] sm:$0xf]
      %v1924 = vsel %vm741, %v1920, 0
      %v1927 = vsel %vm807, %v1922, 0
      %1929 = vmatprep.subr.bf16.mxu0 0
      %1930 = vmatpush1.bf16.msra.mxu0 0
      %1931 = vmatprep.subr.bf16.mxu0 0
      %1932 = vmatpush1.bf16.msra.mxu0 0
      %1933 = vmatprep.subr.bf16.mxu0 0
      %1934 = vmatpush1.bf16.msra.mxu0 0
      %1935 = vmatprep.subr.bf16.mxu0 0
      %1936 = vmatpush1.bf16.msra.mxu0 0
      %1937 = vmatprep.subr.bf16.mxu0 0
      %1938 = vmatpush1.bf16.msra.mxu0 0
      %1939 = vmatprep.subr.bf16.mxu0 0
      %1940 = vmatpush1.bf16.msra.mxu0 0
      %1941 = vmatprep.subr.bf16.mxu0 0
      %1942 = vmatpush1.bf16.msra.mxu0 0
      %1943 = vmatprep.subr.bf16.mxu0 0
      %1944 = vmatpush1.bf16.msra.mxu0 %v1927
      %1945 = vmatprep.subr.bf16.mxu0 0
      %1946 = vmatpush2.bf16.msra.mxu0 0
      %1947 = vmatprep.subr.bf16.mxu0 0
      %1948 = vmatpush2.bf16.msra.mxu0 0
      %1949 = vmatprep.subr.bf16.mxu0 0
      %1950 = vmatpush2.bf16.msra.mxu0 0
      %1951 = vmatprep.subr.bf16.mxu0 0
      %1952 = vmatpush2.bf16.msra.mxu0 0
      %1953 = vmatprep.subr.bf16.mxu0 0
      %1954 = vmatpush2.bf16.msra.mxu0 0
      %1955 = vmatprep.subr.bf16.mxu0 0
      %1956 = vmatpush2.bf16.msra.mxu0 0
      %1957 = vmatprep.subr.bf16.mxu0 0
      %1958 = vmatpush2.bf16.msra.mxu0 0
      %1959 = vmatprep.subr.bf16.mxu0 0
      %1960 = vmatpush2.bf16.msra.mxu0 0
      %1961 = vmatprep.mubr.bf16.mxu0 0
      %1962 = vmatmul.mubr.bf16.gmra.mxu0 %v1924
      %v1963 = vpop.f32.mrf.mxu0
      %v1964 = vadd.f32 0.0, %v1963
      %v1965 = vpop.f32.mrf.mxu0
      %v1966 = vpop.f32.mrf.mxu0
      %v1967 = vpop.f32.mrf.mxu0
      %1968 = vdwg.mxu0
      %v1970 = vsel %vm741, %v1805, 0
      %v1973 = vsel %vm807, %v1807, 0
      %1975 = vmatprep.subr.bf16.mxu0 0
      %1976 = vmatpush1.bf16.msra.mxu0 0
      %1977 = vmatprep.subr.bf16.mxu0 0
      %1978 = vmatpush1.bf16.msra.mxu0 0
      %1979 = vmatprep.subr.bf16.mxu0 0
      %1980 = vmatpush1.bf16.msra.mxu0 0
      %1981 = vmatprep.subr.bf16.mxu0 0
      %1982 = vmatpush1.bf16.msra.mxu0 0
      %1983 = vmatprep.subr.bf16.mxu0 0
      %1984 = vmatpush1.bf16.msra.mxu0 0
      %1985 = vmatprep.subr.bf16.mxu0 0
      %1986 = vmatpush1.bf16.msra.mxu0 0
      %1987 = vmatprep.subr.bf16.mxu0 0
      %1988 = vmatpush1.bf16.msra.mxu0 0
      %1989 = vmatprep.subr.bf16.mxu0 0
      %1990 = vmatpush1.bf16.msra.mxu0 %v1973
      %1991 = vmatprep.subr.bf16.mxu0 0
      %1992 = vmatpush2.bf16.msra.mxu0 0
      %1993 = vmatprep.subr.bf16.mxu0 0
      %1994 = vmatpush2.bf16.msra.mxu0 0
      %1995 = vmatprep.subr.bf16.mxu0 0
      %1996 = vmatpush2.bf16.msra.mxu0 0
      %1997 = vmatprep.subr.bf16.mxu0 0
      %1998 = vmatpush2.bf16.msra.mxu0 0
      %1999 = vmatprep.subr.bf16.mxu0 0
      %2000 = vmatpush2.bf16.msra.mxu0 0
      %2001 = vmatprep.subr.bf16.mxu0 0
      %2002 = vmatpush2.bf16.msra.mxu0 0
      %2003 = vmatprep.subr.bf16.mxu0 0
      %2004 = vmatpush2.bf16.msra.mxu0 0
      %2005 = vmatprep.subr.bf16.mxu0 0
      %2006 = vmatpush2.bf16.msra.mxu0 0
      %2007 = vmatprep.mubr.bf16.mxu0 0
      %2008 = vmatmul.mubr.bf16.gmra.mxu0 %v1970
      %v2009 = vpop.f32.mrf.mxu0
      %v2010 = vadd.f32 %v1964, %v2009
      %v2011 = vpop.f32.mrf.mxu0
      %v2012 = vpop.f32.mrf.mxu0
      %v2013 = vpop.f32.mrf.mxu0
      %2014 = vdwg.mxu0
      %2015 = vrot.lane.b32.xlu0 %v1693, 112
      %v2016 = vpop.permute.xlu0 %2015
      %2017 = vrot.lane.b32.xlu0 %v1693, 80
      %v2018 = vpop.permute.xlu0 %2017
      %v2020 = vsel %vm741, %v2016, 0
      %v2023 = vsel %vm741, %v2018, 0
      %2025 = vmatprep.subr.bf16.mxu0 0
      %2026 = vmatpush1.bf16.xpose.msra.mxu0 0
      %2027 = vmatprep.subr.bf16.mxu0 0
      %2028 = vmatpush1.bf16.xpose.msra.mxu0 0
      %2029 = vmatprep.subr.bf16.mxu0 0
      %2030 = vmatpush1.bf16.xpose.msra.mxu0 0
      %2031 = vmatprep.subr.bf16.mxu0 0
      %2032 = vmatpush1.bf16.xpose.msra.mxu0 0
      %2033 = vmatprep.subr.bf16.mxu0 0
      %2034 = vmatpush1.bf16.xpose.msra.mxu0 0
      %2035 = vmatprep.subr.bf16.mxu0 0
      %2036 = vmatpush1.bf16.xpose.msra.mxu0 0
      %2037 = vmatprep.subr.bf16.mxu0 0
      %2038 = vmatpush1.bf16.xpose.msra.mxu0 0
      %2039 = vmatprep.subr.bf16.mxu0 0
      %2040 = vmatpush1.bf16.xpose.msra.mxu0 %v2023
      %2041 = vmatprep.subr.bf16.mxu0 0
      %2042 = vmatpush2.bf16.xpose.msra.mxu0 0
      %2043 = vmatprep.subr.bf16.mxu0 0
      %2044 = vmatpush2.bf16.xpose.msra.mxu0 0
      %2045 = vmatprep.subr.bf16.mxu0 0
      %2046 = vmatpush2.bf16.xpose.msra.mxu0 0
      %2047 = vmatprep.subr.bf16.mxu0 0
      %2048 = vmatpush2.bf16.xpose.msra.mxu0 0
      %2049 = vmatprep.subr.bf16.mxu0 0
      %2050 = vmatpush2.bf16.xpose.msra.mxu0 0
      %2051 = vmatprep.subr.bf16.mxu0 0
      %2052 = vmatpush2.bf16.xpose.msra.mxu0 0
      %2053 = vmatprep.subr.bf16.mxu0 0
      %2054 = vmatpush2.bf16.xpose.msra.mxu0 0
      %2055 = vmatprep.subr.bf16.mxu0 0
      %2056 = vmatpush2.bf16.xpose.msra.mxu0 0
      %2057 = vmatprep.mubr.bf16.mxu0 0
      %2058 = vmatmul.mubr.bf16.gmra.mxu0 %v2020
      %v2059 = vpop.f32.mrf.mxu0
      %v2060 = vadd.f32 0.0, %v2059
      %v2061 = vpop.f32.mrf.mxu0
      %v2062 = vpop.f32.mrf.mxu0
      %v2063 = vpop.f32.mrf.mxu0
      %2064 = vdwg.mxu0
      %v2065 = vmul.f32 %v2060, 0.35355338
      %v2066 = vadd.f32 %v2065, %v467
      %v2067 = vsel %vm741, %v2066, -inf
      %2068 = vmax.xlane.f32.xlu0 %v2067
      %v2069 = vpop.xlane.xlu0 %2068
      %v2070 = vsub.f32 %v2066, %v2069
      %v2071 = vmul.f32 %v2070, 1.442695
      %v2072 = vpow.pop %v2071
      %v2073 = vsel %vm741, %v2072, 0.0
      %2074 = vadd.xlane.f32.xlu0 %v2073
      %v2075 = vpop.xlane.xlu0 %2074
      %v2076 = vrcp.pop %v2075
      %v2077 = vmul.f32 %v2072, %v2076
      %v2078 = vpack.c.bf16 %v2077, %v2077
      %2079 = vrot.lane.b32.xlu0 %v1693, 48
      %v2080 = vpop.permute.xlu0 %2079
      %v2082 = vsel %vm741, %v2078, 0
      %v2085 = vsel %vm807, %v2080, 0
      %2087 = vmatprep.subr.bf16.mxu0 0
      %2088 = vmatpush1.bf16.msra.mxu0 0
      %2089 = vmatprep.subr.bf16.mxu0 0
      %2090 = vmatpush1.bf16.msra.mxu0 0
      %2091 = vmatprep.subr.bf16.mxu0 0
      %2092 = vmatpush1.bf16.msra.mxu0 0
      %2093 = vmatprep.subr.bf16.mxu0 0
      %2094 = vmatpush1.bf16.msra.mxu0 0
      %2095 = vmatprep.subr.bf16.mxu0 0
      %2096 = vmatpush1.bf16.msra.mxu0 0
      %2097 = vmatprep.subr.bf16.mxu0 0
      %2098 = vmatpush1.bf16.msra.mxu0 0
      %2099 = vmatprep.subr.bf16.mxu0 0
      %2100 = vmatpush1.bf16.msra.mxu0 0
      %2101 = vmatprep.subr.bf16.mxu0 0
      %2102 = vmatpush1.bf16.msra.mxu0 %v2085
      %2103 = vmatprep.subr.bf16.mxu0 0
      %2104 = vmatpush2.bf16.msra.mxu0 0
      %2105 = vmatprep.subr.bf16.mxu0 0
      %2106 = vmatpush2.bf16.msra.mxu0 0
      %2107 = vmatprep.subr.bf16.mxu0 0
      %2108 = vmatpush2.bf16.msra.mxu0 0
      %2109 = vmatprep.subr.bf16.mxu0 0
      %2110 = vmatpush2.bf16.msra.mxu0 0
      %2111 = vmatprep.subr.bf16.mxu0 0
      %2112 = vmatpush2.bf16.msra.mxu0 0
      %2113 = vmatprep.subr.bf16.mxu0 0
      %2114 = vmatpush2.bf16.msra.mxu0 0
      %2115 = vmatprep.subr.bf16.mxu0 0
      %2116 = vmatpush2.bf16.msra.mxu0 0
      %2117 = vmatprep.subr.bf16.mxu0 0
      %2118 = vmatpush2.bf16.msra.mxu0 0
      %2119 = vmatprep.mubr.bf16.mxu0 0
      %2120 = vmatmul.mubr.bf16.gmra.mxu0 %v2082
      %v2121 = vpop.f32.mrf.mxu0
      %v2122 = vadd.f32 0.0, %v2121
      %v2123 = vpop.f32.mrf.mxu0
      %v2124 = vpop.f32.mrf.mxu0
      %v2125 = vpop.f32.mrf.mxu0
      %2126 = vdwg.mxu0
      %v2127 = vpack.c.bf16 %v2122, %v2122
      %s2128 = scalar_lea.vmem %s5, 24
      %v2129 = vld [vmem:[%s2128] sm:$0xf]
      %v2131 = vsel %vm741, %v2127, 0
      %v2134 = vsel %vm807, %v2129, 0
      %2136 = vmatprep.subr.bf16.mxu0 0
      %2137 = vmatpush1.bf16.msra.mxu0 0
      %2138 = vmatprep.subr.bf16.mxu0 0
      %2139 = vmatpush1.bf16.msra.mxu0 0
      %2140 = vmatprep.subr.bf16.mxu0 0
      %2141 = vmatpush1.bf16.msra.mxu0 0
      %2142 = vmatprep.subr.bf16.mxu0 0
      %2143 = vmatpush1.bf16.msra.mxu0 0
      %2144 = vmatprep.subr.bf16.mxu0 0
      %2145 = vmatpush1.bf16.msra.mxu0 0
      %2146 = vmatprep.subr.bf16.mxu0 0
      %2147 = vmatpush1.bf16.msra.mxu0 0
      %2148 = vmatprep.subr.bf16.mxu0 0
      %2149 = vmatpush1.bf16.msra.mxu0 0
      %2150 = vmatprep.subr.bf16.mxu0 0
      %2151 = vmatpush1.bf16.msra.mxu0 %v2134
      %2152 = vmatprep.subr.bf16.mxu0 0
      %2153 = vmatpush2.bf16.msra.mxu0 0
      %2154 = vmatprep.subr.bf16.mxu0 0
      %2155 = vmatpush2.bf16.msra.mxu0 0
      %2156 = vmatprep.subr.bf16.mxu0 0
      %2157 = vmatpush2.bf16.msra.mxu0 0
      %2158 = vmatprep.subr.bf16.mxu0 0
      %2159 = vmatpush2.bf16.msra.mxu0 0
      %2160 = vmatprep.subr.bf16.mxu0 0
      %2161 = vmatpush2.bf16.msra.mxu0 0
      %2162 = vmatprep.subr.bf16.mxu0 0
      %2163 = vmatpush2.bf16.msra.mxu0 0
      %2164 = vmatprep.subr.bf16.mxu0 0
      %2165 = vmatpush2.bf16.msra.mxu0 0
      %2166 = vmatprep.subr.bf16.mxu0 0
      %2167 = vmatpush2.bf16.msra.mxu0 0
      %2168 = vmatprep.mubr.bf16.mxu0 0
      %2169 = vmatmul.mubr.bf16.gmra.mxu0 %v2131
      %v2170 = vpop.f32.mrf.mxu0
      %v2171 = vadd.f32 0.0, %v2170
      %v2172 = vpop.f32.mrf.mxu0
      %v2173 = vpop.f32.mrf.mxu0
      %v2174 = vpop.f32.mrf.mxu0
      %2175 = vdwg.mxu0
      %v2176 = vadd.f32 %v2010, %v2171
      %2177 = vrot.lane.b32.xlu0 %v1693, 104
      %v2178 = vpop.permute.xlu0 %2177
      %2179 = vrot.lane.b32.xlu0 %v1693, 72
      %v2180 = vpop.permute.xlu0 %2179
      %v2182 = vsel %vm741, %v2178, 0
      %v2185 = vsel %vm741, %v2180, 0
      %2187 = vmatprep.subr.bf16.mxu0 0
      %2188 = vmatpush1.bf16.xpose.msra.mxu0 0
      %2189 = vmatprep.subr.bf16.mxu0 0
      %2190 = vmatpush1.bf16.xpose.msra.mxu0 0
      %2191 = vmatprep.subr.bf16.mxu0 0
      %2192 = vmatpush1.bf16.xpose.msra.mxu0 0
      %2193 = vmatprep.subr.bf16.mxu0 0
      %2194 = vmatpush1.bf16.xpose.msra.mxu0 0
      %2195 = vmatprep.subr.bf16.mxu0 0
      %2196 = vmatpush1.bf16.xpose.msra.mxu0 0
      %2197 = vmatprep.subr.bf16.mxu0 0
      %2198 = vmatpush1.bf16.xpose.msra.mxu0 0
      %2199 = vmatprep.subr.bf16.mxu0 0
      %2200 = vmatpush1.bf16.xpose.msra.mxu0 0
      %2201 = vmatprep.subr.bf16.mxu0 0
      %2202 = vmatpush1.bf16.xpose.msra.mxu0 %v2185
      %2203 = vmatprep.subr.bf16.mxu0 0
      %2204 = vmatpush2.bf16.xpose.msra.mxu0 0
      %2205 = vmatprep.subr.bf16.mxu0 0
      %2206 = vmatpush2.bf16.xpose.msra.mxu0 0
      %2207 = vmatprep.subr.bf16.mxu0 0
      %2208 = vmatpush2.bf16.xpose.msra.mxu0 0
      %2209 = vmatprep.subr.bf16.mxu0 0
      %2210 = vmatpush2.bf16.xpose.msra.mxu0 0
      %2211 = vmatprep.subr.bf16.mxu0 0
      %2212 = vmatpush2.bf16.xpose.msra.mxu0 0
      %2213 = vmatprep.subr.bf16.mxu0 0
      %2214 = vmatpush2.bf16.xpose.msra.mxu0 0
      %2215 = vmatprep.subr.bf16.mxu0 0
      %2216 = vmatpush2.bf16.xpose.msra.mxu0 0
      %2217 = vmatprep.subr.bf16.mxu0 0
      %2218 = vmatpush2.bf16.xpose.msra.mxu0 0
      %2219 = vmatprep.mubr.bf16.mxu0 0
      %2220 = vmatmul.mubr.bf16.gmra.mxu0 %v2182
      %v2221 = vpop.f32.mrf.mxu0
      %v2222 = vadd.f32 0.0, %v2221
      %v2223 = vpop.f32.mrf.mxu0
      %v2224 = vpop.f32.mrf.mxu0
      %v2225 = vpop.f32.mrf.mxu0
      %2226 = vdwg.mxu0
      %v2227 = vmul.f32 %v2222, 0.35355338
      %v2228 = vadd.f32 %v2227, %v467
      %v2229 = vsel %vm741, %v2228, -inf
      %2230 = vmax.xlane.f32.xlu0 %v2229
      %v2231 = vpop.xlane.xlu0 %2230
      %v2232 = vsub.f32 %v2228, %v2231
      %v2233 = vmul.f32 %v2232, 1.442695
      %v2234 = vpow.pop %v2233
      %v2235 = vsel %vm741, %v2234, 0.0
      %2236 = vadd.xlane.f32.xlu0 %v2235
      %v2237 = vpop.xlane.xlu0 %2236
      %v2238 = vrcp.pop %v2237
      %v2239 = vmul.f32 %v2234, %v2238
      %v2240 = vpack.c.bf16 %v2239, %v2239
      %2241 = vrot.lane.b32.xlu0 %v1693, 40
      %v2242 = vpop.permute.xlu0 %2241
      %v2244 = vsel %vm741, %v2240, 0
      %v2247 = vsel %vm807, %v2242, 0
      %2249 = vmatprep.subr.bf16.mxu0 0
      %2250 = vmatpush1.bf16.msra.mxu0 0
      %2251 = vmatprep.subr.bf16.mxu0 0
      %2252 = vmatpush1.bf16.msra.mxu0 0
      %2253 = vmatprep.subr.bf16.mxu0 0
      %2254 = vmatpush1.bf16.msra.mxu0 0
      %2255 = vmatprep.subr.bf16.mxu0 0
      %2256 = vmatpush1.bf16.msra.mxu0 0
      %2257 = vmatprep.subr.bf16.mxu0 0
      %2258 = vmatpush1.bf16.msra.mxu0 0
      %2259 = vmatprep.subr.bf16.mxu0 0
      %2260 = vmatpush1.bf16.msra.mxu0 0
      %2261 = vmatprep.subr.bf16.mxu0 0
      %2262 = vmatpush1.bf16.msra.mxu0 0
      %2263 = vmatprep.subr.bf16.mxu0 0
      %2264 = vmatpush1.bf16.msra.mxu0 %v2247
      %2265 = vmatprep.subr.bf16.mxu0 0
      %2266 = vmatpush2.bf16.msra.mxu0 0
      %2267 = vmatprep.subr.bf16.mxu0 0
      %2268 = vmatpush2.bf16.msra.mxu0 0
      %2269 = vmatprep.subr.bf16.mxu0 0
      %2270 = vmatpush2.bf16.msra.mxu0 0
      %2271 = vmatprep.subr.bf16.mxu0 0
      %2272 = vmatpush2.bf16.msra.mxu0 0
      %2273 = vmatprep.subr.bf16.mxu0 0
      %2274 = vmatpush2.bf16.msra.mxu0 0
      %2275 = vmatprep.subr.bf16.mxu0 0
      %2276 = vmatpush2.bf16.msra.mxu0 0
      %2277 = vmatprep.subr.bf16.mxu0 0
      %2278 = vmatpush2.bf16.msra.mxu0 0
      %2279 = vmatprep.subr.bf16.mxu0 0
      %2280 = vmatpush2.bf16.msra.mxu0 0
      %2281 = vmatprep.mubr.bf16.mxu0 0
      %2282 = vmatmul.mubr.bf16.gmra.mxu0 %v2244
      %v2283 = vpop.f32.mrf.mxu0
      %v2284 = vadd.f32 0.0, %v2283
      %v2285 = vpop.f32.mrf.mxu0
      %v2286 = vpop.f32.mrf.mxu0
      %v2287 = vpop.f32.mrf.mxu0
      %2288 = vdwg.mxu0
      %v2289 = vpack.c.bf16 %v2284, %v2284
      %s2290 = scalar_lea.vmem %s5, 28
      %v2291 = vld [vmem:[%s2290] sm:$0xf]
      %v2293 = vsel %vm741, %v2289, 0
      %v2296 = vsel %vm807, %v2291, 0
      %2298 = vmatprep.subr.bf16.mxu0 0
      %2299 = vmatpush1.bf16.msra.mxu0 0
      %2300 = vmatprep.subr.bf16.mxu0 0
      %2301 = vmatpush1.bf16.msra.mxu0 0
      %2302 = vmatprep.subr.bf16.mxu0 0
      %2303 = vmatpush1.bf16.msra.mxu0 0
      %2304 = vmatprep.subr.bf16.mxu0 0
      %2305 = vmatpush1.bf16.msra.mxu0 0
      %2306 = vmatprep.subr.bf16.mxu0 0
      %2307 = vmatpush1.bf16.msra.mxu0 0
      %2308 = vmatprep.subr.bf16.mxu0 0
      %2309 = vmatpush1.bf16.msra.mxu0 0
      %2310 = vmatprep.subr.bf16.mxu0 0
      %2311 = vmatpush1.bf16.msra.mxu0 0
      %2312 = vmatprep.subr.bf16.mxu0 0
      %2313 = vmatpush1.bf16.msra.mxu0 %v2296
      %2314 = vmatprep.subr.bf16.mxu0 0
      %2315 = vmatpush2.bf16.msra.mxu0 0
      %2316 = vmatprep.subr.bf16.mxu0 0
      %2317 = vmatpush2.bf16.msra.mxu0 0
      %2318 = vmatprep.subr.bf16.mxu0 0
      %2319 = vmatpush2.bf16.msra.mxu0 0
      %2320 = vmatprep.subr.bf16.mxu0 0
      %2321 = vmatpush2.bf16.msra.mxu0 0
      %2322 = vmatprep.subr.bf16.mxu0 0
      %2323 = vmatpush2.bf16.msra.mxu0 0
      %2324 = vmatprep.subr.bf16.mxu0 0
      %2325 = vmatpush2.bf16.msra.mxu0 0
      %2326 = vmatprep.subr.bf16.mxu0 0
      %2327 = vmatpush2.bf16.msra.mxu0 0
      %2328 = vmatprep.subr.bf16.mxu0 0
      %2329 = vmatpush2.bf16.msra.mxu0 0
      %2330 = vmatprep.mubr.bf16.mxu0 0
      %2331 = vmatmul.mubr.bf16.gmra.mxu0 %v2293
      %v2332 = vpop.f32.mrf.mxu0
      %v2333 = vadd.f32 0.0, %v2332
      %v2334 = vpop.f32.mrf.mxu0
      %v2335 = vpop.f32.mrf.mxu0
      %v2336 = vpop.f32.mrf.mxu0
      %2337 = vdwg.mxu0
      %v2338 = vadd.f32 %v2176, %v2333
      %v2339 = vadd.f32 %v1597, %v2338
      %v2340 = vlaneseq
      %v2341 = vshrl.u32 %v2340, 7
      %v2342 = vsub.s32 0, %v2341
      %v2343 = vrot.slane %v1600, %v2342
      %v2344 = vadd.f32 %v2339, %v2343
      %v2345 = vsel %vm647, %v2344, 0.0
      %2346 = vadd.xlane.f32.xlu0 %v2345
      %v2347 = vpop.xlane.xlu0 %2346
      %v2348 = vmul.f32 %v2347, %v651
      %v2349 = vsub.f32 %v2344, %v2348
      %v2350 = vmul.f32 %v2349, %v2349
      %v2351 = vsel %vm647, %v2350, 0.0
      %2352 = vadd.xlane.f32.xlu0 %v2351
      %v2353 = vpop.xlane.xlu0 %2352
      %v2354 = vmul.f32 %v2353, %v651
      %v2355 = vadd.f32 %v2354, 1e-06
      %v2356 = vrsqrt.pop %v2355
      %v2357 = vmul.f32 %v2349, %v2356
      %v2358 = vlaneseq
      %v2359 = vshrl.u32 %v2358, 7
      %v2360 = vsub.s32 0, %v2359
      %v2361 = vrot.slane %v1601, %v2360
      %v2362 = vmul.f32 %v2357, %v2361
      %v2363 = vlaneseq
      %v2364 = vshrl.u32 %v2363, 7
      %v2365 = vsub.s32 0, %v2364
      %v2366 = vrot.slane %v1602, %v2365
      %v2367 = vadd.f32 %v2362, %v2366
      %v2368 = vpack.c.bf16 %v2367, %v2367
      %s2369 = scalar_lea.vmem %s6, 16
      %v2370 = vld [vmem:[%s2369] sm:$0xf]
      %v2371 = vld [vmem:[%s2369 + $0x4] sm:$0xf]
      %v2372 = vld [vmem:[%s2369 + $0x8] sm:$0xf]
      %v2373 = vld [vmem:[%s2369 + $0xc] sm:$0xf]
      %v2374 = vld [vmem:[%s7 + $0x1] sm:$0x1]
      %v2375 = vlaneseq
      %v2376 = vshrl.u32 %v2375, 7
      %v2377 = vsub.s32 0, %v2376
      %v2378 = vrot.slane %v2374, %v2377
      %v2383 = vunpack.c.l.b16 %v2370
      %v2384 = vunpack.c.l.b16 %v2371
      %v2385 = vunpack.c.l.b16 %v2372
      %v2386 = vunpack.c.l.b16 %v2373
      %v2387 = vpack.c.b16 %v2384, %v2383
      %v2388 = vpack.c.b16 %v2386, %v2385
      %v2392 = vsel %vm647, %v2368, 0
      %2394 = vmatprep.subr.bf16.mxu0 0
      %2395 = vmatpush1.bf16.msra.mxu0 0
      %2396 = vmatprep.subr.bf16.mxu0 0
      %2397 = vmatpush1.bf16.msra.mxu0 0
      %2398 = vmatprep.subr.bf16.mxu0 0
      %2399 = vmatpush1.bf16.msra.mxu0 0
      %2400 = vmatprep.subr.bf16.mxu0 0
      %2401 = vmatpush1.bf16.msra.mxu0 0
      %2402 = vmatprep.subr.bf16.mxu0 0
      %2403 = vmatpush1.bf16.msra.mxu0 0
      %2404 = vmatprep.subr.bf16.mxu0 0
      %2405 = vmatpush1.bf16.msra.mxu0 0
      %2406 = vmatprep.subr.bf16.mxu0 0
      %2407 = vmatpush1.bf16.msra.mxu0 %v2388
      %2408 = vmatprep.subr.bf16.mxu0 0
      %2409 = vmatpush1.bf16.msra.mxu0 %v2387
      %2410 = vmatprep.subr.bf16.mxu0 0
      %2411 = vmatpush2.bf16.msra.mxu0 0
      %2412 = vmatprep.subr.bf16.mxu0 0
      %2413 = vmatpush2.bf16.msra.mxu0 0
      %2414 = vmatprep.subr.bf16.mxu0 0
      %2415 = vmatpush2.bf16.msra.mxu0 0
      %2416 = vmatprep.subr.bf16.mxu0 0
      %2417 = vmatpush2.bf16.msra.mxu0 0
      %2418 = vmatprep.subr.bf16.mxu0 0
      %2419 = vmatpush2.bf16.msra.mxu0 0
      %2420 = vmatprep.subr.bf16.mxu0 0
      %2421 = vmatpush2.bf16.msra.mxu0 0
      %2422 = vmatprep.subr.bf16.mxu0 0
      %2423 = vmatpush2.bf16.msra.mxu0 0
      %2424 = vmatprep.subr.bf16.mxu0 0
      %2425 = vmatpush2.bf16.msra.mxu0 0
      %2426 = vmatprep.mubr.bf16.mxu0 0
      %2427 = vmatmul.mubr.bf16.gmra.mxu0 %v2392
      %v2428 = vpop.f32.mrf.mxu0
      %v2429 = vadd.f32 %v2378, %v2428
      %v2430 = vpop.f32.mrf.mxu0
      %v2431 = vpop.f32.mrf.mxu0
      %v2432 = vpop.f32.mrf.mxu0
      %2433 = vdwg.mxu0
      %v2434 = vmul.f32 %v2429, 0.5
      %v2435 = vmul.f32 %v2429, 0.044715
      %v2436 = vmul.f32 %v2435, %v2429
      %v2437 = vmul.f32 %v2436, %v2429
      %v2438 = vadd.f32 %v2429, %v2437
      %v2439 = vmul.f32 %v2438, 0.7978846
      %v2440 = vtanh.pop %v2439
      %v2441 = vadd.f32 %v2440, 1.0
      %v2442 = vmul.f32 %v2434, %v2441
      %v2443 = vpack.c.bf16 %v2442, %v2442
      %s2444 = scalar_lea.vmem %s8, 64
      %v2445 = vld [vmem:[%s2444] sm:$0xf]
      %v2446 = vld [vmem:[%s2444 + $0x4] sm:$0xf]
      %v2447 = vld [vmem:[%s2444 + $0x8] sm:$0xf]
      %v2448 = vld [vmem:[%s2444 + $0xc] sm:$0xf]
      %v2449 = vld [vmem:[%s2444 + $0x10] sm:$0xf]
      %v2450 = vld [vmem:[%s2444 + $0x14] sm:$0xf]
      %v2451 = vld [vmem:[%s2444 + $0x18] sm:$0xf]
      %v2452 = vld [vmem:[%s2444 + $0x1c] sm:$0xf]
      %v2453 = vld [vmem:[%s2444 + $0x20] sm:$0xf]
      %v2454 = vld [vmem:[%s2444 + $0x24] sm:$0xf]
      %v2455 = vld [vmem:[%s2444 + $0x28] sm:$0xf]
      %v2456 = vld [vmem:[%s2444 + $0x2c] sm:$0xf]
      %v2457 = vld [vmem:[%s2444 + $0x30] sm:$0xf]
      %v2458 = vld [vmem:[%s2444 + $0x34] sm:$0xf]
      %v2459 = vld [vmem:[%s2444 + $0x38] sm:$0xf]
      %v2460 = vld [vmem:[%s2444 + $0x3c] sm:$0xf]
      %v2477 = vunpack.c.l.b16 %v2445
      %v2478 = vunpack.c.l.b16 %v2446
      %v2479 = vunpack.c.l.b16 %v2447
      %v2480 = vunpack.c.l.b16 %v2448
      %v2481 = vunpack.c.l.b16 %v2449
      %v2482 = vunpack.c.l.b16 %v2450
      %v2483 = vunpack.c.l.b16 %v2451
      %v2484 = vunpack.c.l.b16 %v2452
      %v2485 = vunpack.c.l.b16 %v2453
      %v2486 = vunpack.c.l.b16 %v2454
      %v2487 = vunpack.c.l.b16 %v2455
      %v2488 = vunpack.c.l.b16 %v2456
      %v2489 = vunpack.c.l.b16 %v2457
      %v2490 = vunpack.c.l.b16 %v2458
      %v2491 = vunpack.c.l.b16 %v2459
      %v2492 = vunpack.c.l.b16 %v2460
      %v2493 = vpack.c.b16 %v2478, %v2477
      %v2494 = vpack.c.b16 %v2480, %v2479
      %v2495 = vpack.c.b16 %v2482, %v2481
      %v2496 = vpack.c.b16 %v2484, %v2483
      %v2497 = vpack.c.b16 %v2486, %v2485
      %v2498 = vpack.c.b16 %v2488, %v2487
      %v2499 = vpack.c.b16 %v2490, %v2489
      %v2500 = vpack.c.b16 %v2492, %v2491
      %2509 = vmatprep.subr.bf16.mxu0 0
      %2510 = vmatpush1.bf16.msra.mxu0 %v2500
      %2511 = vmatprep.subr.bf16.mxu0 0
      %2512 = vmatpush1.bf16.msra.mxu0 %v2499
      %2513 = vmatprep.subr.bf16.mxu0 0
      %2514 = vmatpush1.bf16.msra.mxu0 %v2498
      %2515 = vmatprep.subr.bf16.mxu0 0
      %2516 = vmatpush1.bf16.msra.mxu0 %v2497
      %2517 = vmatprep.subr.bf16.mxu0 0
      %2518 = vmatpush1.bf16.msra.mxu0 %v2496
      %2519 = vmatprep.subr.bf16.mxu0 0
      %2520 = vmatpush1.bf16.msra.mxu0 %v2495
      %2521 = vmatprep.subr.bf16.mxu0 0
      %2522 = vmatpush1.bf16.msra.mxu0 %v2494
      %2523 = vmatprep.subr.bf16.mxu0 0
      %2524 = vmatpush1.bf16.msra.mxu0 %v2493
      %2525 = vmatprep.subr.bf16.mxu0 0
      %2526 = vmatpush2.bf16.msra.mxu0 0
      %2527 = vmatprep.subr.bf16.mxu0 0
      %2528 = vmatpush2.bf16.msra.mxu0 0
      %2529 = vmatprep.subr.bf16.mxu0 0
      %2530 = vmatpush2.bf16.msra.mxu0 0
      %2531 = vmatprep.subr.bf16.mxu0 0
      %2532 = vmatpush2.bf16.msra.mxu0 0
      %2533 = vmatprep.subr.bf16.mxu0 0
      %2534 = vmatpush2.bf16.msra.mxu0 0
      %2535 = vmatprep.subr.bf16.mxu0 0
      %2536 = vmatpush2.bf16.msra.mxu0 0
      %2537 = vmatprep.subr.bf16.mxu0 0
      %2538 = vmatpush2.bf16.msra.mxu0 0
      %2539 = vmatprep.subr.bf16.mxu0 0
      %2540 = vmatpush2.bf16.msra.mxu0 0
      %2541 = vmatprep.mubr.bf16.mxu0 0
      %2542 = vmatmul.mubr.bf16.gmra.mxu0 %v2443
      %v2543 = vpop.f32.mrf.mxu0
      %v2544 = vadd.f32 0.0, %v2543
      %v2545 = vpop.f32.mrf.mxu0
      %v2546 = vpop.f32.mrf.mxu0
      %v2547 = vpop.f32.mrf.mxu0
      %2548 = vdwg.mxu0
      %v2549 = vadd.f32 %v2344, %v2544
      %v2550 = vlaneseq
      %v2551 = vshrl.u32 %v2550, 7
      %v2552 = vsub.s32 0, %v2551
      %v2553 = vrot.slane %v1603, %v2552
      %v2554 = vadd.f32 %v2549, %v2553
      %v2555 = vld [vmem:[%s10] sm:$0x1]
      %v2556 = vld [vmem:[%s10 + $0x1] sm:$0x1]
      %v2557 = vsel %vm647, %v2554, 0.0
      %2558 = vadd.xlane.f32.xlu0 %v2557
      %v2559 = vpop.xlane.xlu0 %2558
      %v2560 = vmul.f32 %v2559, %v651
      %v2561 = vsub.f32 %v2554, %v2560
      %v2562 = vmul.f32 %v2561, %v2561
      %v2563 = vsel %vm647, %v2562, 0.0
      %2564 = vadd.xlane.f32.xlu0 %v2563
      %v2565 = vpop.xlane.xlu0 %2564
      %v2566 = vmul.f32 %v2565, %v651
      %v2567 = vadd.f32 %v2566, 1e-06
      %v2568 = vrsqrt.pop %v2567
      %v2569 = vmul.f32 %v2561, %v2568
      %v2570 = vlaneseq
      %v2571 = vshrl.u32 %v2570, 7
      %v2572 = vsub.s32 0, %v2571
      %v2573 = vrot.slane %v2555, %v2572
      %v2574 = vmul.f32 %v2569, %v2573
      %v2575 = vlaneseq
      %v2576 = vshrl.u32 %v2575, 7
      %v2577 = vsub.s32 0, %v2576
      %v2578 = vrot.slane %v2556, %v2577
      %v2579 = vadd.f32 %v2574, %v2578
      %v2580 = vpack.c.bf16 %v2579, %v2579
      %v2581 = vld [vmem:[%s11] sm:$0xf]
      %v2582 = vld [vmem:[%s11 + $0x4] sm:$0xf]
      %v2583 = vld [vmem:[%s11 + $0x8] sm:$0xf]
      %v2584 = vld [vmem:[%s11 + $0xc] sm:$0xf]
      %v2585 = vld [vmem:[%s12] sm:$0x1]
      %v2587 = vlaneseq
      %v2588 = vshrl.u32 %v2587, 7
      %v2589 = vsub.s32 0, %v2588
      %v2590 = vrot.slane %v2585, %v2589
      %v2596 = vunpack.c.l.b16 %v2581
      %v2597 = vunpack.c.l.b16 %v2582
      %v2598 = vunpack.c.l.b16 %v2583
      %v2599 = vunpack.c.l.b16 %v2584
      %v2600 = vpack.c.b16 %v2597, %v2596
      %v2601 = vpack.c.b16 %v2599, %v2598
      %v2605 = vsel %vm647, %v2580, 0
      %2607 = vmatprep.subr.bf16.mxu0 0
      %2608 = vmatpush1.bf16.msra.mxu0 0
      %2609 = vmatprep.subr.bf16.mxu0 0
      %2610 = vmatpush1.bf16.msra.mxu0 0
      %2611 = vmatprep.subr.bf16.mxu0 0
      %2612 = vmatpush1.bf16.msra.mxu0 0
      %2613 = vmatprep.subr.bf16.mxu0 0
      %2614 = vmatpush1.bf16.msra.mxu0 0
      %2615 = vmatprep.subr.bf16.mxu0 0
      %2616 = vmatpush1.bf16.msra.mxu0 0
      %2617 = vmatprep.subr.bf16.mxu0 0
      %2618 = vmatpush1.bf16.msra.mxu0 0
      %2619 = vmatprep.subr.bf16.mxu0 0
      %2620 = vmatpush1.bf16.msra.mxu0 %v2601
      %2621 = vmatprep.subr.bf16.mxu0 0
      %2622 = vmatpush1.bf16.msra.mxu0 %v2600
      %2623 = vmatprep.subr.bf16.mxu0 0
      %2624 = vmatpush2.bf16.msra.mxu0 0
      %2625 = vmatprep.subr.bf16.mxu0 0
      %2626 = vmatpush2.bf16.msra.mxu0 0
      %2627 = vmatprep.subr.bf16.mxu0 0
      %2628 = vmatpush2.bf16.msra.mxu0 0
      %2629 = vmatprep.subr.bf16.mxu0 0
      %2630 = vmatpush2.bf16.msra.mxu0 0
      %2631 = vmatprep.subr.bf16.mxu0 0
      %2632 = vmatpush2.bf16.msra.mxu0 0
      %2633 = vmatprep.subr.bf16.mxu0 0
      %2634 = vmatpush2.bf16.msra.mxu0 0
      %2635 = vmatprep.subr.bf16.mxu0 0
      %2636 = vmatpush2.bf16.msra.mxu0 0
      %2637 = vmatprep.subr.bf16.mxu0 0
      %2638 = vmatpush2.bf16.msra.mxu0 0
      %2639 = vmatprep.mubr.bf16.mxu0 0
      %2640 = vmatmul.mubr.bf16.gmra.mxu0 %v2605
      %v2641 = vpop.f32.mrf.mxu0
      %v2642 = vadd.f32 %v2590, %v2641
      %v2643 = vpop.f32.mrf.mxu0
      %v2644 = vpop.f32.mrf.mxu0
      %v2645 = vpop.f32.mrf.mxu0
      %2646 = vdwg.mxu0
      %2647 = vst [vmem:[%s455] sm:$0xff] %v2642
      %p2648 = scmp.lt.s32.totalorder %s24, 1
      %s2649 = scalar_select %p2648, %s24, 1
      %s2650 = smul.addr %s2649, 8
      %s2651 = scalar_lea.vmem %s13, %s2650
      // Predicated region
      $region73: #{vit_forward.1} parent=71 // pred_check
        %p2652 = pneg %p325
      $region74: #{vit_forward.1} parent=71 // pred_check_branch
        %2654 = sbr.rel (%p2652) target = $region76
      $region75: #{vit_forward.1} parent=71 // pred_region
        _
      $region76: #{vit_forward.1} parent=71 // pred_fallthru
        _
    $region72: #{vit_forward.1} parent=5 // pred_fallthru
      _
    %p2655 = scmp.le.s32.totalorder 2, %s19
    // Predicated region
    $region77: #{vit_forward.1} parent=5 // pred_check
      %p2656 = pneg %p2655
    $region78: #{vit_forward.1} parent=5 // pred_check_branch
      %2658 = sbr.rel (%p2656) target = $region80
    $region79: #{vit_forward.1} parent=5 // pred_region
      %s2659 = ssub.s32 %s19, 2
      // Predicated region
      $region81: #{vit_forward.1} parent=79 // pred_check
        %p2660 = pneg %p331
      $region82: #{vit_forward.1} parent=79 // pred_check_branch
        %2662 = sbr.rel (%p2660) target = $region84
      $region83: #{vit_forward.1} parent=79 // pred_region
        %p2663 = scmp.lt.s32.totalorder %s25, 1
        %s2664 = scalar_select %p2663, %s25, 1
        %s2665 = smul.addr %s2664, 8
        %s2666 = scalar_lea.vmem %s13, %s2665
      $region84: #{vit_forward.1} parent=79 // pred_fallthru
        _
    $region80: #{vit_forward.1} parent=5 // pred_fallthru
      _
  $region6: #{vit_forward.1} parent=0 // loop_footer
    %s23 = sadd.s32 1, %s19
  $region7: #{vit_forward.1} parent=0 // loop_footer_branch
    %18 = sbr.rel target = $region3
  $region8: #{vit_forward.1} parent=0 // loop_exit
    _

</llo_original>
